<compile_context>
chip_gen: v7x
topology: tpu7x:2x2x1
jax: 0.10.0
libtpu: 0.0.40
codegen_flags: <defaults>
</compile_context>

<pallas_src>
import math
import functools

import jax
import jax.numpy as jnp
from jax.experimental import pallas as pl
from jax.experimental.pallas import tpu as pltpu

LANE = 128
BN_EPS = 1e-5


def _round_up(v, m):
    return ((v + m - 1) // m) * m


@functools.lru_cache(maxsize=1)
def _vmem_capacity_bytes():
    try:
        cap = int(getattr(pltpu.get_tpu_info(), "vmem_capacity_bytes", 0))
        if cap > 0:
            return cap
    except Exception:
        pass
    return 64 * 1024 * 1024  # safe fallback (v7x-sized per-core VMEM)


def _choose_tiling(n_pad, d_pad, c_pad, weight_bytes, vmem_limit):
    """Pick (row tile tm, #M ring buffers) so the whole working set fits VMEM."""
    resident = (n_pad * d_pad * (4 + 2)     # act (f32) + rhs staging (bf16)
                + n_pad * c_pad * 4         # output slab
                + weight_bytes)
    for nbuf in (3, 2):                     # prefer 3 buffers / 2 outstanding DMAs
        for tm in (512, 256, 128):          # prefer larger row tiles when they fit
            if n_pad % tm != 0:
                continue
            if resident + nbuf * tm * n_pad * 2 <= int(0.8 * vmem_limit):
                return tm, nbuf
    tm = 128 if n_pad % 128 == 0 else n_pad
    return tm, 2


def _full_spec(shape):
    nd = len(shape)
    return pl.BlockSpec(shape, lambda i: (0,) * nd)


# ----------------------------------------------------------------------------
# Fused Pallas kernel
# ----------------------------------------------------------------------------

def _make_fused_kernel(*, num_layers, n_real, n_pad, d_pad, c_pad, tm, nbuf,
                       num_classes):
    n_tiles = n_pad // tm
    n_total = num_layers * n_tiles      # M row-tile fetches across ALL layers
    prefetch = nbuf - 1                 # DMAs kept outstanding
    inv_n = 1.0 / float(n_real)

    def kernel(*refs):
        m_hbm = refs[0]                              # (n_tiles, tm, n_pad) bf16, HBM
        x_hbm = refs[1]                              # (n_pad, d_pad)       bf16, HBM
        conv = refs[2:2 + 3 * num_layers]            # per layer: Wt(bf16), b(f32), C(bf16)
        wt_h_ref = refs[2 + 3 * num_layers]          # (d_pad, c_pad) bf16
        b_h_ref = refs[3 + 3 * num_layers]           # (1, c_pad) f32
        o_ref = refs[4 + 3 * num_layers]             # (n_pad, c_pad) f32
        mbuf, sem, rhs_ref, act_ref = refs[5 + 3 * num_layers:]

        def fetch_static(g):                         # g: Python int
            pltpu.make_async_copy(m_hbm.at[g % n_tiles], mbuf.at[g % nbuf],
                                  sem.at[g % nbuf]).start()

        def fetch_dynamic(g):                        # g: traced int
            slot = g % nbuf
            tile = g % n_tiles
            pltpu.make_async_copy(m_hbm.at[tile], mbuf.at[slot],
                                  sem.at[slot]).start()

        # ---- warm-up: x load + leading M row tiles queued before ANY compute.
        x_copy = pltpu.make_async_copy(x_hbm, rhs_ref, sem.at[nbuf])
        x_copy.start()
        for g in range(min(prefetch, n_total)):
            fetch_static(g)
        x_copy.wait()

        def aggregate(layer, bias):
            """act_ref <- M @ rhs_ref + bias, accumulating masked BN sums while
            streaming M row tiles with `nbuf` buffers / `prefetch` outstanding
            DMAs.  The global counter spans layers so the next layer's leading
            tiles are already in flight during this layer's epilogue."""
            base = layer * n_tiles

            def body(t, carry):
                s_sum, s_sq = carry
                g = base + t
                slot = g % nbuf
                g_pre = g + prefetch
                # Scalar work + next prefetch issued ahead of the wait.
                @pl.when(g_pre < n_total)
                def _():
                    fetch_dynamic(g_pre)
                pltpu.make_async_copy(m_hbm.at[0], mbuf.at[slot],
                                      sem.at[slot]).wait()

                z = jnp.dot(mbuf[slot], rhs_ref[...],
                            preferred_element_type=jnp.float32) + bias
                row0 = pl.multiple_of(t * tm, tm)
                rows = jax.lax.broadcasted_iota(jnp.int32, (tm, 1), 0) + t * tm
                msk = (rows < n_real).astype(jnp.float32)
                zm = z * msk
                s_sum = s_sum + jnp.sum(zm, axis=0, keepdims=True)
                s_sq = s_sq + jnp.sum(z * zm, axis=0, keepdims=True)
                act_ref[pl.ds(row0, tm), :] = z
                return (s_sum, s_sq)

            init = (jnp.zeros((1, d_pad), jnp.float32),
                    jnp.zeros((1, d_pad), jnp.float32))
            kwargs = {"unroll": 2} if n_tiles >= 2 else {}
            return jax.lax.fori_loop(0, n_tiles, body, init, **kwargs)

        for l in range(num_layers):
            wt = conv[3 * l][...]          # (d_pad, d_pad) bf16  (W_eff^T, padded)
            bias = conv[3 * l + 1][...]    # (1, d_pad) f32
            cmat = conv[3 * l + 2][...]    # (d_pad, d_pad) bf16

            # Reassociated SimpleConv + SparseLinear: (M @ x) W^T == M @ (x W^T).
            # Layer 0 consumes x directly from rhs_ref (DMA'd above), so x never
            # needs its own VMEM residency.
            src = rhs_ref[...] if l == 0 else act_ref[...].astype(jnp.bfloat16)
            rhs_ref[...] = jnp.dot(
                src, wt, preferred_element_type=jnp.float32).astype(jnp.bfloat16)

            s_sum, s_sq = aggregate(l, bias)   # act_ref = M @ rhs + b

            # BatchNorm1d (training mode): batch mean / biased variance over the
            # real rows; statistics were accumulated inside the streaming loop.
            mean = s_sum * inv_n
            var = jnp.maximum(s_sq * inv_n - mean * mean, 0.0)
            inv_std = jax.lax.rsqrt(var + BN_EPS)
            zbn = (act_ref[...] - mean) * inv_std

            # AsymSwiGLU: sigmoid(zbn @ C) * zbn.  (F.dropout(p=0.0) == identity.)
            gate = jax.nn.sigmoid(
                jnp.dot(zbn.astype(jnp.bfloat16), cmat,
                        preferred_element_type=jnp.float32))
            act_ref[...] = gate * zbn

        # Head: SparseLinear + log_softmax over the real classes only.
        zh = jnp.dot(act_ref[...].astype(jnp.bfloat16), wt_h_ref[...],
                     preferred_element_type=jnp.float32) + b_h_ref[...]
        col_ids = jax.lax.broadcasted_iota(jnp.int32, (n_pad, c_pad), 1)
        zh = jnp.where(col_ids < num_classes, zh, -1e30)
        mmax = jnp.max(zh, axis=-1, keepdims=True)
        s = zh - mmax
        lse = jnp.log(jnp.sum(jnp.exp(s), axis=-1, keepdims=True))
        o_ref[...] = (s - lse).astype(o_ref.dtype)

    return kernel


def _fused_forward_call(m_tiled, x_pad, conv_params, head_params, *,
                        n_real, num_classes, nbuf, vmem_limit):
    n_tiles, tm, n_pad = m_tiled.shape
    d_pad = x_pad.shape[1]
    wt_h, b_h = head_params
    c_pad = wt_h.shape[1]
    num_layers = len(conv_params)

    kernel = _make_fused_kernel(num_layers=num_layers, n_real=n_real, n_pad=n_pad,
                                d_pad=d_pad, c_pad=c_pad, tm=tm, nbuf=nbuf,
                                num_classes=num_classes)

    in_specs = [pl.BlockSpec(memory_space=pl.ANY),   # M row tiles stay in HBM
                pl.BlockSpec(memory_space=pl.ANY)]   # x stays in HBM (DMA'd once)
    args = [m_tiled, x_pad]
    for (wt, b, c) in conv_params:
        in_specs += [_full_spec(wt.shape), _full_spec(b.shape), _full_spec(c.shape)]
        args += [wt, b, c]
    in_specs += [_full_spec(wt_h.shape), _full_spec(b_h.shape)]
    args += [wt_h, b_h]

    flops = int(num_layers * (2 * n_pad * d_pad * d_pad        # projection x @ W^T
                              + 2 * n_pad * n_pad * d_pad      # aggregation M @ rhs
                              + 2 * n_pad * d_pad * d_pad)     # SwiGLU gate matmul
                + 2 * n_pad * d_pad * c_pad)                   # head
    transcendentals = int(num_layers * n_pad * d_pad + n_pad * c_pad)
    bytes_accessed = int(
        num_layers * m_tiled.size * 2 + x_pad.size * 2 + n_pad * c_pad * 4
        + sum(w.size * 2 + b.size * 4 + c.size * 2 for (w, b, c) in conv_params)
        + wt_h.size * 2 + b_h.size * 4)

    return pl.pallas_call(
        kernel,
        out_shape=jax.ShapeDtypeStruct((n_pad, c_pad), jnp.float32),
        grid=(1,),
        in_specs=in_specs,
        out_specs=_full_spec((n_pad, c_pad)),
        scratch_shapes=[
            pltpu.VMEM((nbuf, tm, n_pad), jnp.bfloat16),   # M row-tile ring buffer
            pltpu.SemaphoreType.DMA((nbuf + 1,)),          # per-slot sems + x-load sem
            pltpu.VMEM((n_pad, d_pad), jnp.bfloat16),      # matmul RHS staging (also x)
            pltpu.VMEM((n_pad, d_pad), jnp.float32),       # resident activations
        ],
        compiler_params=pltpu.CompilerParams(
            dimension_semantics=("arbitrary",),
            vmem_limit_bytes=int(vmem_limit)),
        cost_estimate=pl.CostEstimate(flops=flops,
                                      transcendentals=transcendentals,
                                      bytes_accessed=bytes_accessed),
    )(*args)


# ----------------------------------------------------------------------------
# Parameter construction (deterministic, synthetic) — plain-JAX glue
# ----------------------------------------------------------------------------

def make_mask_random_subsets(key, out_dim, in_dim, num_fixed=6):
    """mask_type='random_subsets': each row has `num_fixed` randomly chosen zeros."""
    assert out_dim < 2 ** in_dim and in_dim > num_fixed
    rows = []
    for r in range(out_dim):
        k = jax.random.fold_in(key, r)
        perm = jax.random.permutation(k, in_dim)
        row = jnp.ones((in_dim,), jnp.float32).at[perm[:num_fixed]].set(0.0)
        rows.append(row)
    return jnp.stack(rows)


def make_sparse_linear_params(key, in_dim, out_dim, mask_constant=0.5, num_fixed=6):
    k_mask, k_nmask, k_w, k_b = jax.random.split(key, 4)
    mask = make_mask_random_subsets(k_mask, out_dim, in_dim, num_fixed)
    normal_mask = jax.random.normal(k_nmask, (out_dim, in_dim), jnp.float32)
    bound = 1.0 / math.sqrt(in_dim)   # kaiming_uniform(a=sqrt(5)) bound == 1/sqrt(fan_in)
    w = jax.random.uniform(k_w, (out_dim, in_dim), jnp.float32, -bound, bound)
    w_eff = w * mask + (1.0 - mask) * mask_constant * normal_mask
    b = jax.random.uniform(k_b, (out_dim,), jnp.float32, -bound, bound)
    return w_eff, b


def _pad2(a, rows, cols, dtype):
    out = jnp.zeros((rows, cols), dtype)
    return out.at[:a.shape[0], :a.shape[1]].set(a.astype(dtype))


def init_asym_gnn(key, num_features, num_classes, hidden_channels, num_layers):
    """Build W_eff^T / b / C already transposed, zero-padded to lane-dense widths
    and cast for the MXU (done once at init, not in the hot path)."""
    d_pad = _round_up(max(num_features, hidden_channels), LANE)
    c_pad = _round_up(num_classes, LANE)

    keys = jax.random.split(key, num_layers + 2)
    conv_params = []
    in_dim = num_features
    for i in range(num_layers):
        w_eff, b = make_sparse_linear_params(keys[i], in_dim, hidden_channels)
        C = (0.01 * jax.random.normal(jax.random.fold_in(keys[-1], i),
                                      (hidden_channels, hidden_channels), jnp.float32)
             / math.sqrt(hidden_channels))
        wt_pad = _pad2(w_eff.T, d_pad, d_pad, jnp.bfloat16)
        b_pad = _pad2(b.reshape(1, -1), 1, d_pad, jnp.float32)
        c_pad_arr = _pad2(C, d_pad, d_pad, jnp.bfloat16)
        conv_params.append((wt_pad, b_pad, c_pad_arr))
        in_dim = hidden_channels

    w_head, b_head = make_sparse_linear_params(keys[-2], hidden_channels, num_classes)
    wt_h = _pad2(w_head.T, d_pad, c_pad, jnp.bfloat16)
    b_h = _pad2(b_head.reshape(1, -1), 1, c_pad, jnp.float32)
    return conv_params, (wt_h, b_h)


def build_agg_matrix(edge_index, num_nodes):
    """M = I + D^{-1} A : SimpleConv(aggr='mean', combine_root='sum')."""
    src = edge_index[0]
    dst = edge_index[1]
    A = jnp.zeros((num_nodes, num_nodes), jnp.float32).at[dst, src].add(1.0)
    deg = A.sum(axis=1, keepdims=True)
    A = jnp.where(deg > 0, A / jnp.maximum(deg, 1.0), 0.0)
    return A + jnp.eye(num_nodes, dtype=jnp.float32)


@functools.partial(jax.jit, static_argnames=("num_nodes", "num_classes"))
def asym_gnn_forward(x, edge_index, conv_params, head_params, *,
                     num_nodes, num_classes):
    d_pad = conv_params[0][0].shape[0]
    c_pad = head_params[0].shape[1]
    n_pad = _round_up(max(num_nodes, LANE), LANE)

    weight_bytes = sum(w.size * 2 + b.size * 4 + c.size * 2
                       for (w, b, c) in conv_params)
    weight_bytes += head_params[0].size * 2 + head_params[1].size * 4

    vmem_limit = int(0.85 * _vmem_capacity_bytes())
    tm, nbuf = _choose_tiling(n_pad, d_pad, c_pad, weight_bytes, vmem_limit)
    n_tiles = n_pad // tm

    vmem_need = (nbuf * tm * n_pad * 2 + n_pad * d_pad * 6 + n_pad * c_pad * 4
                 + weight_bytes)
    if vmem_need > vmem_limit:
        # TODO(synk): add a row-tiled activation fallback for graphs whose resident
        # activations exceed VMEM (stream act_ref too instead of failing).
        raise ValueError(f"graph too large for fully-resident activations: "
                         f"need {vmem_need} B, VMEM limit {vmem_limit} B")

    # Dense aggregation operator M = I + D^{-1}A, zero-padded, bf16, pre-tiled into
    # HBM row tiles for streaming.
    # TODO(synk): replace the dense NxN operator with a CSR / segment-mean gather
    # aggregation (scalar-prefetched row pointers) for large sparse graphs.
    # TODO(synk): on v7x, store M in fp8 (e4m3) and split the row dimension across
    # both TensorCores (parallel grid axis + cross-core BN-stat reduction).
    M = build_agg_matrix(edge_index, num_nodes)
    M_pad = jnp.zeros((n_pad, n_pad), jnp.float32).at[:num_nodes, :num_nodes].set(M)
    M_tiled = M_pad.astype(jnp.bfloat16).reshape(n_tiles, tm, n_pad)

    x_pad = (jnp.zeros((n_pad, d_pad), jnp.bfloat16)
             .at[:num_nodes, :x.shape[1]].set(x.astype(jnp.bfloat16)))

    out_pad = _fused_forward_call(M_tiled, x_pad, tuple(conv_params), head_params,
                                  n_real=num_nodes, num_classes=num_classes,
                                  nbuf=nbuf, vmem_limit=vmem_limit)
    return out_pad[:num_nodes, :num_classes]


# ----------------------------------------------------------------------------
# Demo
# ----------------------------------------------------------------------------

if __name__ == "__main__":
    num_nodes = 16
    num_features = 8
    hidden_channels = 32
    num_classes = 4
    num_layers = 3
    num_edges = 32

    key = jax.random.PRNGKey(0)
    k_x, k_e, k_params = jax.random.split(key, 3)

    x = jax.random.normal(k_x, (num_nodes, num_features), jnp.float32)
    edge_index = jax.random.randint(k_e, (2, num_edges), 0, num_nodes, jnp.int32)

    conv_params, head_params = init_asym_gnn(
        k_params, num_features, num_classes, hidden_channels, num_layers)

    out = asym_gnn_forward(x, edge_index, conv_params, head_params,
                           num_nodes=num_nodes, num_classes=num_classes)
    out = jax.block_until_ready(out)

    assert out.shape == (num_nodes, num_classes)
    # log_softmax rows must sum (in prob space) to ~1
    assert jnp.allclose(jnp.exp(out).sum(axis=-1), 1.0, atol=1e-3)
    print("KERNEL_OK")
</pallas_src>

<mosaic_0001>
module attributes {stable_mosaic.version = 11 : i64} {
  func.func private @main(%arg0: i32) attributes {dimension_semantics = [#tpu.dimension_semantics<core_parallel>], iteration_bounds = array<i64: 2>, tpu.core_type = #tpu.core_type<sc_scalar_subcore>, window_params = []} {
    return
  }
}

module attributes {stable_mosaic.version = 11 : i64} {
  func.func private @main(%arg0: i32) attributes {dimension_semantics = [#tpu.dimension_semantics<core_parallel>], iteration_bounds = array<i64: 2>, tpu.core_type = #tpu.core_type<sc_scalar_subcore>, window_params = []} {
    return
  }
}

module attributes {stable_mosaic.version = 11 : i64} {
  func.func @kernel(%arg0: i32, %arg1: memref<1x128x128xbf16, #tpu.memory_space<any>>, %arg2: memref<128x128xbf16, #tpu.memory_space<any>>, %arg3: memref<128x128xbf16, #tpu.memory_space<vmem>>, %arg4: memref<1x128xf32, #tpu.memory_space<vmem>>, %arg5: memref<128x128xbf16, #tpu.memory_space<vmem>>, %arg6: memref<128x128xbf16, #tpu.memory_space<vmem>>, %arg7: memref<1x128xf32, #tpu.memory_space<vmem>>, %arg8: memref<128x128xbf16, #tpu.memory_space<vmem>>, %arg9: memref<128x128xbf16, #tpu.memory_space<vmem>>, %arg10: memref<1x128xf32, #tpu.memory_space<vmem>>, %arg11: memref<128x128xbf16, #tpu.memory_space<vmem>>, %arg12: memref<128x128xbf16, #tpu.memory_space<vmem>>, %arg13: memref<1x128xf32, #tpu.memory_space<vmem>>, %arg14: memref<128x128xf32, #tpu.memory_space<vmem>>, %arg15: memref<3x128x128xbf16, #tpu.memory_space<vmem>>, %arg16: memref<4x!tpu.dma_semaphore, #tpu.memory_space<semaphore_mem>>, %arg17: memref<128x128xbf16, #tpu.memory_space<vmem>>, %arg18: memref<128x128xf32, #tpu.memory_space<vmem>>) attributes {dimension_semantics = [#tpu.dimension_semantics<arbitrary>], iteration_bounds = array<i64: 1>, scalar_prefetch = 0 : i64, scratch_operands = 4 : i64, tpu.core_type = #tpu.core_type<tc>, window_params = [{}, {}, {pipeline_mode = #tpu.pipeline_mode<synchronous>, transform_indices = @transform_2, window_bounds = array<i64: 128, 128>}, {pipeline_mode = #tpu.pipeline_mode<synchronous>, transform_indices = @transform_3, window_bounds = array<i64: 1, 128>}, {pipeline_mode = #tpu.pipeline_mode<synchronous>, transform_indices = @transform_4, window_bounds = array<i64: 128, 128>}, {pipeline_mode = #tpu.pipeline_mode<synchronous>, transform_indices = @transform_5, window_bounds = array<i64: 128, 128>}, {pipeline_mode = #tpu.pipeline_mode<synchronous>, transform_indices = @transform_6, window_bounds = array<i64: 1, 128>}, {pipeline_mode = #tpu.pipeline_mode<synchronous>, transform_indices = @transform_7, window_bounds = array<i64: 128, 128>}, {pipeline_mode = #tpu.pipeline_mode<synchronous>, transform_indices = @transform_8, window_bounds = array<i64: 128, 128>}, {pipeline_mode = #tpu.pipeline_mode<synchronous>, transform_indices = @transform_9, window_bounds = array<i64: 1, 128>}, {pipeline_mode = #tpu.pipeline_mode<synchronous>, transform_indices = @transform_10, window_bounds = array<i64: 128, 128>}, {pipeline_mode = #tpu.pipeline_mode<synchronous>, transform_indices = @transform_11, window_bounds = array<i64: 128, 128>}, {pipeline_mode = #tpu.pipeline_mode<synchronous>, transform_indices = @transform_12, window_bounds = array<i64: 1, 128>}, {pipeline_mode = #tpu.pipeline_mode<synchronous>, transform_indices = @transform_13, window_bounds = array<i64: 128, 128>}]} {
    %c3_i32 = arith.constant 3 : i32
    %0 = tpu.memref_slice %arg16[%c3_i32] : memref<4x!tpu.dma_semaphore, #tpu.memory_space<semaphore_mem>> -> memref<1x!tpu.dma_semaphore, #tpu.memory_space<semaphore_mem>>
    %1 = tpu.memref_squeeze %0 : memref<1x!tpu.dma_semaphore, #tpu.memory_space<semaphore_mem>> -> memref<!tpu.dma_semaphore, #tpu.memory_space<semaphore_mem>>
    tpu.enqueue_dma source(%arg2 : memref<128x128xbf16, #tpu.memory_space<any>>) target(%arg17 : memref<128x128xbf16, #tpu.memory_space<vmem>>) target_semaphore(%1 : memref<!tpu.dma_semaphore, #tpu.memory_space<semaphore_mem>>)
    %c0_i32 = arith.constant 0 : i32
    %c0_i32_0 = arith.constant 0 : i32
    %c0_i32_1 = arith.constant 0 : i32
    %c0_i32_2 = arith.constant 0 : i32
    %c0_i32_3 = arith.constant 0 : i32
    %2 = tpu.memref_slice %arg1[%c0_i32, %c0_i32_2, %c0_i32_3] : memref<1x128x128xbf16, #tpu.memory_space<any>> -> memref<1x128x128xbf16, #tpu.memory_space<any>>
    %3 = tpu.memref_squeeze %2 : memref<1x128x128xbf16, #tpu.memory_space<any>> -> memref<128x128xbf16, #tpu.memory_space<any>>
    %c0_i32_4 = arith.constant 0 : i32
    %c0_i32_5 = arith.constant 0 : i32
    %4 = tpu.memref_slice %arg15[%c0_i32_0, %c0_i32_4, %c0_i32_5] : memref<3x128x128xbf16, #tpu.memory_space<vmem>> -> memref<1x128x128xbf16, #tpu.memory_space<vmem>>
    %5 = tpu.memref_squeeze %4 : memref<1x128x128xbf16, #tpu.memory_space<vmem>> -> memref<128x128xbf16, #tpu.memory_space<vmem>>
    %6 = tpu.memref_slice %arg16[%c0_i32_1] : memref<4x!tpu.dma_semaphore, #tpu.memory_space<semaphore_mem>> -> memref<1x!tpu.dma_semaphore, #tpu.memory_space<semaphore_mem>>
    %7 = tpu.memref_squeeze %6 : memref<1x!tpu.dma_semaphore, #tpu.memory_space<semaphore_mem>> -> memref<!tpu.dma_semaphore, #tpu.memory_space<semaphore_mem>>
    tpu.enqueue_dma source(%3 : memref<128x128xbf16, #tpu.memory_space<any>>) target(%5 : memref<128x128xbf16, #tpu.memory_space<vmem>>) target_semaphore(%7 : memref<!tpu.dma_semaphore, #tpu.memory_space<semaphore_mem>>)
    %c0_i32_6 = arith.constant 0 : i32
    %c1_i32 = arith.constant 1 : i32
    %c1_i32_7 = arith.constant 1 : i32
    %c0_i32_8 = arith.constant 0 : i32
    %c0_i32_9 = arith.constant 0 : i32
    %8 = tpu.memref_slice %arg1[%c0_i32_6, %c0_i32_8, %c0_i32_9] : memref<1x128x128xbf16, #tpu.memory_space<any>> -> memref<1x128x128xbf16, #tpu.memory_space<any>>
    %9 = tpu.memref_squeeze %8 : memref<1x128x128xbf16, #tpu.memory_space<any>> -> memref<128x128xbf16, #tpu.memory_space<any>>
    %c0_i32_10 = arith.constant 0 : i32
    %c0_i32_11 = arith.constant 0 : i32
    %10 = tpu.memref_slice %arg15[%c1_i32, %c0_i32_10, %c0_i32_11] : memref<3x128x128xbf16, #tpu.memory_space<vmem>> -> memref<1x128x128xbf16, #tpu.memory_space<vmem>>
    %11 = tpu.memref_squeeze %10 : memref<1x128x128xbf16, #tpu.memory_space<vmem>> -> memref<128x128xbf16, #tpu.memory_space<vmem>>
    %12 = tpu.memref_slice %arg16[%c1_i32_7] : memref<4x!tpu.dma_semaphore, #tpu.memory_space<semaphore_mem>> -> memref<1x!tpu.dma_semaphore, #tpu.memory_space<semaphore_mem>>
    %13 = tpu.memref_squeeze %12 : memref<1x!tpu.dma_semaphore, #tpu.memory_space<semaphore_mem>> -> memref<!tpu.dma_semaphore, #tpu.memory_space<semaphore_mem>>
    tpu.enqueue_dma source(%9 : memref<128x128xbf16, #tpu.memory_space<any>>) target(%11 : memref<128x128xbf16, #tpu.memory_space<vmem>>) target_semaphore(%13 : memref<!tpu.dma_semaphore, #tpu.memory_space<semaphore_mem>>)
    %c3_i32_12 = arith.constant 3 : i32
    %14 = tpu.memref_slice %arg16[%c3_i32_12] : memref<4x!tpu.dma_semaphore, #tpu.memory_space<semaphore_mem>> -> memref<1x!tpu.dma_semaphore, #tpu.memory_space<semaphore_mem>>
    %15 = tpu.memref_squeeze %14 : memref<1x!tpu.dma_semaphore, #tpu.memory_space<semaphore_mem>> -> memref<!tpu.dma_semaphore, #tpu.memory_space<semaphore_mem>>
    tpu.wait_dma2 semaphore(%15 : memref<!tpu.dma_semaphore, #tpu.memory_space<semaphore_mem>>) src(%arg2 : memref<128x128xbf16, #tpu.memory_space<any>>) dst(%arg17 : memref<128x128xbf16, #tpu.memory_space<vmem>>)
    %c0 = arith.constant 0 : index
    %c0_13 = arith.constant 0 : index
    %16 = vector.load %arg3[%c0, %c0_13] : memref<128x128xbf16, #tpu.memory_space<vmem>>, vector<128x128xbf16>
    %c0_14 = arith.constant 0 : index
    %c0_15 = arith.constant 0 : index
    %17 = vector.load %arg4[%c0_14, %c0_15] : memref<1x128xf32, #tpu.memory_space<vmem>>, vector<1x128xf32>
    %c0_16 = arith.constant 0 : index
    %c0_17 = arith.constant 0 : index
    %18 = vector.load %arg5[%c0_16, %c0_17] : memref<128x128xbf16, #tpu.memory_space<vmem>>, vector<128x128xbf16>
    %c0_18 = arith.constant 0 : index
    %c0_19 = arith.constant 0 : index
    %19 = vector.load %arg17[%c0_18, %c0_19] : memref<128x128xbf16, #tpu.memory_space<vmem>>, vector<128x128xbf16>
    %cst = arith.constant dense<0.000000e+00> : vector<128x128xf32>
    %20 = tpu.matmul %19, %16, %cst {dimension_numbers = #tpu.dot_dimension_numbers<[1], [0], [0], [1], [0, 0, 1, 1], [], []>} : vector<128x128xbf16>, vector<128x128xbf16>, vector<128x128xf32> -> vector<128x128xf32>
    %21 = arith.truncf %20 : vector<128x128xf32> to vector<128x128xbf16>
    %c0_20 = arith.constant 0 : index
    %c0_21 = arith.constant 0 : index
    %22 = vector.load %arg17[%c0_20, %c0_21] : memref<128x128xbf16, #tpu.memory_space<vmem>>, vector<128x128xbf16>
    tpu.vector_store %arg17[%c0_20, %c0_21], %21 {strides = array<i32>} : memref<128x128xbf16, #tpu.memory_space<vmem>>, vector<128x128xbf16>,
    %cst_22 = arith.constant 0.000000e+00 : f32
    %23 = vector.broadcast %cst_22 : f32 to vector<1x128xf32>
    %cst_23 = arith.constant 0.000000e+00 : f32
    %24 = vector.broadcast %cst_23 : f32 to vector<1x128xf32>
    %c0_i32_24 = arith.constant 0 : i32
    %c0_i32_25 = arith.constant 0 : i32
    %25 = arith.addi %c0_i32_25, %c0_i32_24 : i32
    %c3_i32_26 = arith.constant 3 : i32
    %c0_i32_27 = arith.constant 0 : i32
    %26 = arith.cmpi eq, %c3_i32_26, %c0_i32_27 : i32
    %c1_i32_28 = arith.constant 1 : i32
    %27 = arith.select %26, %c1_i32_28, %c3_i32_26 : i32
    %28 = arith.remsi %25, %27 : i32
    %c0_i32_29 = arith.constant 0 : i32
    %29 = arith.cmpi ne, %28, %c0_i32_29 : i32
    %c0_i32_30 = arith.constant 0 : i32
    %30 = arith.cmpi slt, %28, %c0_i32_30 : i32
    %c0_i32_31 = arith.constant 0 : i32
    %31 = arith.cmpi slt, %27, %c0_i32_31 : i32
    %32 = arith.xori %30, %31 : i1
    %33 = arith.andi %32, %29 : i1
    %34 = arith.addi %28, %27 : i32
    %35 = arith.select %33, %34, %28 : i32
    %c2_i32 = arith.constant 2 : i32
    %36 = arith.addi %25, %c2_i32 : i32
    %c3_i32_32 = arith.constant 3 : i32
    %37 = arith.cmpi slt, %36, %c3_i32_32 : i32
    %38 = arith.extui %37 : i1 to i32
    %c0_i32_33 = arith.constant 0 : i32
    %39 = arith.cmpi ne, %38, %c0_i32_33 : i32
    scf.if %39 {
      %c3_i32_173 = arith.constant 3 : i32
      %c0_i32_174 = arith.constant 0 : i32
      %290 = arith.cmpi eq, %c3_i32_173, %c0_i32_174 : i32
      %c1_i32_175 = arith.constant 1 : i32
      %291 = arith.select %290, %c1_i32_175, %c3_i32_173 : i32
      %292 = arith.remsi %36, %291 : i32
      %c0_i32_176 = arith.constant 0 : i32
      %293 = arith.cmpi ne, %292, %c0_i32_176 : i32
      %c0_i32_177 = arith.constant 0 : i32
      %294 = arith.cmpi slt, %292, %c0_i32_177 : i32
      %c0_i32_178 = arith.constant 0 : i32
      %295 = arith.cmpi slt, %291, %c0_i32_178 : i32
      %296 = arith.xori %294, %295 : i1
      %297 = arith.andi %296, %293 : i1
      %298 = arith.addi %292, %291 : i32
      %299 = arith.select %297, %298, %292 : i32
      %c1_i32_179 = arith.constant 1 : i32
      %c0_i32_180 = arith.constant 0 : i32
      %300 = arith.cmpi eq, %c1_i32_179, %c0_i32_180 : i32
      %c1_i32_181 = arith.constant 1 : i32
      %301 = arith.select %300, %c1_i32_181, %c1_i32_179 : i32
      %302 = arith.remsi %36, %301 : i32
      %c0_i32_182 = arith.constant 0 : i32
      %303 = arith.cmpi ne, %302, %c0_i32_182 : i32
      %c0_i32_183 = arith.constant 0 : i32
      %304 = arith.cmpi slt, %302, %c0_i32_183 : i32
      %c0_i32_184 = arith.constant 0 : i32
      %305 = arith.cmpi slt, %301, %c0_i32_184 : i32
      %306 = arith.xori %304, %305 : i1
      %307 = arith.andi %306, %303 : i1
      %308 = arith.addi %302, %301 : i32
      %309 = arith.select %307, %308, %302 : i32
      %c0_i32_185 = arith.constant 0 : i32
      %c0_i32_186 = arith.constant 0 : i32
      %310 = tpu.memref_slice %arg1[%309, %c0_i32_185, %c0_i32_186] : memref<1x128x128xbf16, #tpu.memory_space<any>> -> memref<1x128x128xbf16, #tpu.memory_space<any>>
      %311 = tpu.memref_squeeze %310 : memref<1x128x128xbf16, #tpu.memory_space<any>> -> memref<128x128xbf16, #tpu.memory_space<any>>
      %c0_i32_187 = arith.constant 0 : i32
      %c0_i32_188 = arith.constant 0 : i32
      %312 = tpu.memref_slice %arg15[%299, %c0_i32_187, %c0_i32_188] : memref<3x128x128xbf16, #tpu.memory_space<vmem>> -> memref<1x128x128xbf16, #tpu.memory_space<vmem>>
      %313 = tpu.memref_squeeze %312 : memref<1x128x128xbf16, #tpu.memory_space<vmem>> -> memref<128x128xbf16, #tpu.memory_space<vmem>>
      %314 = tpu.memref_slice %arg16[%299] : memref<4x!tpu.dma_semaphore, #tpu.memory_space<semaphore_mem>> -> memref<1x!tpu.dma_semaphore, #tpu.memory_space<semaphore_mem>>
      %315 = tpu.memref_squeeze %314 : memref<1x!tpu.dma_semaphore, #tpu.memory_space<semaphore_mem>> -> memref<!tpu.dma_semaphore, #tpu.memory_space<semaphore_mem>>
      tpu.enqueue_dma source(%311 : memref<128x128xbf16, #tpu.memory_space<any>>) target(%313 : memref<128x128xbf16, #tpu.memory_space<vmem>>) target_semaphore(%315 : memref<!tpu.dma_semaphore, #tpu.memory_space<semaphore_mem>>)
    } else {
    }
    %c0_i32_34 = arith.constant 0 : i32
    %c0_i32_35 = arith.constant 0 : i32
    %c0_i32_36 = arith.constant 0 : i32
    %40 = tpu.memref_slice %arg1[%c0_i32_34, %c0_i32_35, %c0_i32_36] : memref<1x128x128xbf16, #tpu.memory_space<any>> -> memref<1x128x128xbf16, #tpu.memory_space<any>>
    %41 = tpu.memref_squeeze %40 : memref<1x128x128xbf16, #tpu.memory_space<any>> -> memref<128x128xbf16, #tpu.memory_space<any>>
    %c0_i32_37 = arith.constant 0 : i32
    %c0_i32_38 = arith.constant 0 : i32
    %42 = tpu.memref_slice %arg15[%35, %c0_i32_37, %c0_i32_38] : memref<3x128x128xbf16, #tpu.memory_space<vmem>> -> memref<1x128x128xbf16, #tpu.memory_space<vmem>>
    %43 = tpu.memref_squeeze %42 : memref<1x128x128xbf16, #tpu.memory_space<vmem>> -> memref<128x128xbf16, #tpu.memory_space<vmem>>
    %44 = tpu.memref_slice %arg16[%35] : memref<4x!tpu.dma_semaphore, #tpu.memory_space<semaphore_mem>> -> memref<1x!tpu.dma_semaphore, #tpu.memory_space<semaphore_mem>>
    %45 = tpu.memref_squeeze %44 : memref<1x!tpu.dma_semaphore, #tpu.memory_space<semaphore_mem>> -> memref<!tpu.dma_semaphore, #tpu.memory_space<semaphore_mem>>
    tpu.wait_dma2 semaphore(%45 : memref<!tpu.dma_semaphore, #tpu.memory_space<semaphore_mem>>) src(%41 : memref<128x128xbf16, #tpu.memory_space<any>>) dst(%43 : memref<128x128xbf16, #tpu.memory_space<vmem>>)
    %46 = arith.index_cast %35 : i32 to index
    %c0_39 = arith.constant 0 : index
    %c0_40 = arith.constant 0 : index
    %47 = vector.load %arg15[%46, %c0_39, %c0_40] : memref<3x128x128xbf16, #tpu.memory_space<vmem>>, vector<1x128x128xbf16>
    %48 = vector.shape_cast %47 : vector<1x128x128xbf16> to vector<128x128xbf16>
    %c0_41 = arith.constant 0 : index
    %c0_42 = arith.constant 0 : index
    %49 = vector.load %arg17[%c0_41, %c0_42] : memref<128x128xbf16, #tpu.memory_space<vmem>>, vector<128x128xbf16>
    %cst_43 = arith.constant dense<0.000000e+00> : vector<128x128xf32>
    %50 = tpu.matmul %48, %49, %cst_43 {dimension_numbers = #tpu.dot_dimension_numbers<[1], [0], [0], [1], [0, 0, 1, 1], [], []>} : vector<128x128xbf16>, vector<128x128xbf16>, vector<128x128xf32> -> vector<128x128xf32>
    %51 = vector.broadcast %17 : vector<1x128xf32> to vector<128x128xf32>
    %52 = arith.addf %50, %51 : vector<128x128xf32>
    %c128_i32 = arith.constant 128 : i32
    %53 = arith.muli %c0_i32_24, %c128_i32 : i32
    %54 = tpu.assume_multiple %53, 128 : i32
    %55 = tpu.iota {dimensions = array<i32: 0>} : vector<128x1xi32>
    %c128_i32_44 = arith.constant 128 : i32
    %56 = arith.muli %c0_i32_24, %c128_i32_44 : i32
    %57 = vector.broadcast %56 : i32 to vector<128x1xi32>
    %58 = arith.addi %55, %57 : vector<128x1xi32>
    %c16_i32 = arith.constant 16 : i32
    %59 = vector.broadcast %c16_i32 : i32 to vector<128x1xi32>
    %60 = arith.cmpi slt, %58, %59 : vector<128x1xi32>
    %61 = arith.extui %60 : vector<128x1xi1> to vector<128x1xi32>
    %62 = arith.sitofp %61 : vector<128x1xi32> to vector<128x1xf32>
    %63 = vector.broadcast %62 : vector<128x1xf32> to vector<128x128xf32>
    %64 = arith.mulf %52, %63 : vector<128x128xf32>
    %cst_45 = arith.constant dense<0.000000e+00> : vector<128xf32>
    %65 = vector.multi_reduction <add>, %64, %cst_45 [0] : vector<128x128xf32> to vector<128xf32>
    %66 = vector.shape_cast %65 : vector<128xf32> to vector<1x128xf32>
    %67 = arith.addf %23, %66 : vector<1x128xf32>
    %68 = arith.mulf %52, %64 : vector<128x128xf32>
    %cst_46 = arith.constant dense<0.000000e+00> : vector<128xf32>
    %69 = vector.multi_reduction <add>, %68, %cst_46 [0] : vector<128x128xf32> to vector<128xf32>
    %70 = vector.shape_cast %69 : vector<128xf32> to vector<1x128xf32>
    %71 = arith.addf %24, %70 : vector<1x128xf32>
    %72 = arith.index_cast %54 : i32 to index
    %c0_47 = arith.constant 0 : index
    %73 = vector.load %arg18[%72, %c0_47] : memref<128x128xf32, #tpu.memory_space<vmem>>, vector<128x128xf32>
    tpu.vector_store %arg18[%72, %c0_47], %52 {strides = array<i32>} : memref<128x128xf32, #tpu.memory_space<vmem>>, vector<128x128xf32>,
    %c1_i32_48 = arith.constant 1 : i32
    %cst_49 = arith.constant 6.250000e-02 : f32
    %74 = vector.broadcast %cst_49 : f32 to vector<1x128xf32>
    %75 = arith.mulf %67, %74 : vector<1x128xf32>
    %cst_50 = arith.constant 6.250000e-02 : f32
    %76 = vector.broadcast %cst_50 : f32 to vector<1x128xf32>
    %77 = arith.mulf %71, %76 : vector<1x128xf32>
    %78 = arith.mulf %75, %75 : vector<1x128xf32>
    %79 = arith.subf %77, %78 : vector<1x128xf32>
    %cst_51 = arith.constant 0.000000e+00 : f32
    %80 = vector.broadcast %cst_51 : f32 to vector<1x128xf32>
    %81 = arith.maximumf %79, %80 : vector<1x128xf32>
    %cst_52 = arith.constant 9.99999974E-6 : f32
    %82 = vector.broadcast %cst_52 : f32 to vector<1x128xf32>
    %83 = arith.addf %81, %82 : vector<1x128xf32>
    %84 = math.rsqrt %83 : vector<1x128xf32>
    %c0_53 = arith.constant 0 : index
    %c0_54 = arith.constant 0 : index
    %85 = vector.load %arg18[%c0_53, %c0_54] : memref<128x128xf32, #tpu.memory_space<vmem>>, vector<128x128xf32>
    %86 = vector.broadcast %75 : vector<1x128xf32> to vector<128x128xf32>
    %87 = arith.subf %85, %86 : vector<128x128xf32>
    %88 = vector.broadcast %84 : vector<1x128xf32> to vector<128x128xf32>
    %89 = arith.mulf %87, %88 : vector<128x128xf32>
    %90 = arith.truncf %89 : vector<128x128xf32> to vector<128x128xbf16>
    %cst_55 = arith.constant dense<0.000000e+00> : vector<128x128xf32>
    %91 = tpu.matmul %90, %18, %cst_55 {dimension_numbers = #tpu.dot_dimension_numbers<[1], [0], [0], [1], [0, 0, 1, 1], [], []>} : vector<128x128xbf16>, vector<128x128xbf16>, vector<128x128xf32> -> vector<128x128xf32>
    %92 = arith.negf %91 : vector<128x128xf32>
    %93 = math.exp %92 : vector<128x128xf32>
    %cst_56 = arith.constant 1.000000e+00 : f32
    %94 = vector.broadcast %cst_56 : f32 to vector<128x128xf32>
    %95 = arith.addf %94, %93 : vector<128x128xf32>
    %96 = arith.divf %94, %95 : vector<128x128xf32>
    %97 = arith.mulf %96, %89 : vector<128x128xf32>
    %c0_57 = arith.constant 0 : index
    %c0_58 = arith.constant 0 : index
    %98 = vector.load %arg18[%c0_57, %c0_58] : memref<128x128xf32, #tpu.memory_space<vmem>>, vector<128x128xf32>
    tpu.vector_store %arg18[%c0_57, %c0_58], %97 {strides = array<i32>} : memref<128x128xf32, #tpu.memory_space<vmem>>, vector<128x128xf32>,
    %c0_59 = arith.constant 0 : index
    %c0_60 = arith.constant 0 : index
    %99 = vector.load %arg6[%c0_59, %c0_60] : memref<128x128xbf16, #tpu.memory_space<vmem>>, vector<128x128xbf16>
    %c0_61 = arith.constant 0 : index
    %c0_62 = arith.constant 0 : index
    %100 = vector.load %arg7[%c0_61, %c0_62] : memref<1x128xf32, #tpu.memory_space<vmem>>, vector<1x128xf32>
    %c0_63 = arith.constant 0 : index
    %c0_64 = arith.constant 0 : index
    %101 = vector.load %arg8[%c0_63, %c0_64] : memref<128x128xbf16, #tpu.memory_space<vmem>>, vector<128x128xbf16>
    %c0_65 = arith.constant 0 : index
    %c0_66 = arith.constant 0 : index
    %102 = vector.load %arg18[%c0_65, %c0_66] : memref<128x128xf32, #tpu.memory_space<vmem>>, vector<128x128xf32>
    %103 = arith.truncf %102 : vector<128x128xf32> to vector<128x128xbf16>
    %cst_67 = arith.constant dense<0.000000e+00> : vector<128x128xf32>
    %104 = tpu.matmul %103, %99, %cst_67 {dimension_numbers = #tpu.dot_dimension_numbers<[1], [0], [0], [1], [0, 0, 1, 1], [], []>} : vector<128x128xbf16>, vector<128x128xbf16>, vector<128x128xf32> -> vector<128x128xf32>
    %105 = arith.truncf %104 : vector<128x128xf32> to vector<128x128xbf16>
    %c0_68 = arith.constant 0 : index
    %c0_69 = arith.constant 0 : index
    %106 = vector.load %arg17[%c0_68, %c0_69] : memref<128x128xbf16, #tpu.memory_space<vmem>>, vector<128x128xbf16>
    tpu.vector_store %arg17[%c0_68, %c0_69], %105 {strides = array<i32>} : memref<128x128xbf16, #tpu.memory_space<vmem>>, vector<128x128xbf16>,
    %cst_70 = arith.constant 0.000000e+00 : f32
    %107 = vector.broadcast %cst_70 : f32 to vector<1x128xf32>
    %cst_71 = arith.constant 0.000000e+00 : f32
    %108 = vector.broadcast %cst_71 : f32 to vector<1x128xf32>
    %c0_i32_72 = arith.constant 0 : i32
    %c1_i32_73 = arith.constant 1 : i32
    %109 = arith.addi %c1_i32_73, %c0_i32_72 : i32
    %c3_i32_74 = arith.constant 3 : i32
    %c0_i32_75 = arith.constant 0 : i32
    %110 = arith.cmpi eq, %c3_i32_74, %c0_i32_75 : i32
    %c1_i32_76 = arith.constant 1 : i32
    %111 = arith.select %110, %c1_i32_76, %c3_i32_74 : i32
    %112 = arith.remsi %109, %111 : i32
    %c0_i32_77 = arith.constant 0 : i32
    %113 = arith.cmpi ne, %112, %c0_i32_77 : i32
    %c0_i32_78 = arith.constant 0 : i32
    %114 = arith.cmpi slt, %112, %c0_i32_78 : i32
    %c0_i32_79 = arith.constant 0 : i32
    %115 = arith.cmpi slt, %111, %c0_i32_79 : i32
    %116 = arith.xori %114, %115 : i1
    %117 = arith.andi %116, %113 : i1
    %118 = arith.addi %112, %111 : i32
    %119 = arith.select %117, %118, %112 : i32
    %c2_i32_80 = arith.constant 2 : i32
    %120 = arith.addi %109, %c2_i32_80 : i32
    %c3_i32_81 = arith.constant 3 : i32
    %121 = arith.cmpi slt, %120, %c3_i32_81 : i32
    %122 = arith.extui %121 : i1 to i32
    %c0_i32_82 = arith.constant 0 : i32
    %123 = arith.cmpi ne, %122, %c0_i32_82 : i32
    scf.if %123 {
      %c3_i32_173 = arith.constant 3 : i32
      %c0_i32_174 = arith.constant 0 : i32
      %290 = arith.cmpi eq, %c3_i32_173, %c0_i32_174 : i32
      %c1_i32_175 = arith.constant 1 : i32
      %291 = arith.select %290, %c1_i32_175, %c3_i32_173 : i32
      %292 = arith.remsi %120, %291 : i32
      %c0_i32_176 = arith.constant 0 : i32
      %293 = arith.cmpi ne, %292, %c0_i32_176 : i32
      %c0_i32_177 = arith.constant 0 : i32
      %294 = arith.cmpi slt, %292, %c0_i32_177 : i32
      %c0_i32_178 = arith.constant 0 : i32
      %295 = arith.cmpi slt, %291, %c0_i32_178 : i32
      %296 = arith.xori %294, %295 : i1
      %297 = arith.andi %296, %293 : i1
      %298 = arith.addi %292, %291 : i32
      %299 = arith.select %297, %298, %292 : i32
      %c1_i32_179 = arith.constant 1 : i32
      %c0_i32_180 = arith.constant 0 : i32
      %300 = arith.cmpi eq, %c1_i32_179, %c0_i32_180 : i32
      %c1_i32_181 = arith.constant 1 : i32
      %301 = arith.select %300, %c1_i32_181, %c1_i32_179 : i32
      %302 = arith.remsi %120, %301 : i32
      %c0_i32_182 = arith.constant 0 : i32
      %303 = arith.cmpi ne, %302, %c0_i32_182 : i32
      %c0_i32_183 = arith.constant 0 : i32
      %304 = arith.cmpi slt, %302, %c0_i32_183 : i32
      %c0_i32_184 = arith.constant 0 : i32
      %305 = arith.cmpi slt, %301, %c0_i32_184 : i32
      %306 = arith.xori %304, %305 : i1
      %307 = arith.andi %306, %303 : i1
      %308 = arith.addi %302, %301 : i32
      %309 = arith.select %307, %308, %302 : i32
      %c0_i32_185 = arith.constant 0 : i32
      %c0_i32_186 = arith.constant 0 : i32
      %310 = tpu.memref_slice %arg1[%309, %c0_i32_185, %c0_i32_186] : memref<1x128x128xbf16, #tpu.memory_space<any>> -> memref<1x128x128xbf16, #tpu.memory_space<any>>
      %311 = tpu.memref_squeeze %310 : memref<1x128x128xbf16, #tpu.memory_space<any>> -> memref<128x128xbf16, #tpu.memory_space<any>>
      %c0_i32_187 = arith.constant 0 : i32
      %c0_i32_188 = arith.constant 0 : i32
      %312 = tpu.memref_slice %arg15[%299, %c0_i32_187, %c0_i32_188] : memref<3x128x128xbf16, #tpu.memory_space<vmem>> -> memref<1x128x128xbf16, #tpu.memory_space<vmem>>
      %313 = tpu.memref_squeeze %312 : memref<1x128x128xbf16, #tpu.memory_space<vmem>> -> memref<128x128xbf16, #tpu.memory_space<vmem>>
      %314 = tpu.memref_slice %arg16[%299] : memref<4x!tpu.dma_semaphore, #tpu.memory_space<semaphore_mem>> -> memref<1x!tpu.dma_semaphore, #tpu.memory_space<semaphore_mem>>
      %315 = tpu.memref_squeeze %314 : memref<1x!tpu.dma_semaphore, #tpu.memory_space<semaphore_mem>> -> memref<!tpu.dma_semaphore, #tpu.memory_space<semaphore_mem>>
      tpu.enqueue_dma source(%311 : memref<128x128xbf16, #tpu.memory_space<any>>) target(%313 : memref<128x128xbf16, #tpu.memory_space<vmem>>) target_semaphore(%315 : memref<!tpu.dma_semaphore, #tpu.memory_space<semaphore_mem>>)
    } else {
    }
    %c0_i32_83 = arith.constant 0 : i32
    %c0_i32_84 = arith.constant 0 : i32
    %c0_i32_85 = arith.constant 0 : i32
    %124 = tpu.memref_slice %arg1[%c0_i32_83, %c0_i32_84, %c0_i32_85] : memref<1x128x128xbf16, #tpu.memory_space<any>> -> memref<1x128x128xbf16, #tpu.memory_space<any>>
    %125 = tpu.memref_squeeze %124 : memref<1x128x128xbf16, #tpu.memory_space<any>> -> memref<128x128xbf16, #tpu.memory_space<any>>
    %c0_i32_86 = arith.constant 0 : i32
    %c0_i32_87 = arith.constant 0 : i32
    %126 = tpu.memref_slice %arg15[%119, %c0_i32_86, %c0_i32_87] : memref<3x128x128xbf16, #tpu.memory_space<vmem>> -> memref<1x128x128xbf16, #tpu.memory_space<vmem>>
    %127 = tpu.memref_squeeze %126 : memref<1x128x128xbf16, #tpu.memory_space<vmem>> -> memref<128x128xbf16, #tpu.memory_space<vmem>>
    %128 = tpu.memref_slice %arg16[%119] : memref<4x!tpu.dma_semaphore, #tpu.memory_space<semaphore_mem>> -> memref<1x!tpu.dma_semaphore, #tpu.memory_space<semaphore_mem>>
    %129 = tpu.memref_squeeze %128 : memref<1x!tpu.dma_semaphore, #tpu.memory_space<semaphore_mem>> -> memref<!tpu.dma_semaphore, #tpu.memory_space<semaphore_mem>>
    tpu.wait_dma2 semaphore(%129 : memref<!tpu.dma_semaphore, #tpu.memory_space<semaphore_mem>>) src(%125 : memref<128x128xbf16, #tpu.memory_space<any>>) dst(%127 : memref<128x128xbf16, #tpu.memory_space<vmem>>)
    %130 = arith.index_cast %119 : i32 to index
    %c0_88 = arith.constant 0 : index
    %c0_89 = arith.constant 0 : index
    %131 = vector.load %arg15[%130, %c0_88, %c0_89] : memref<3x128x128xbf16, #tpu.memory_space<vmem>>, vector<1x128x128xbf16>
    %132 = vector.shape_cast %131 : vector<1x128x128xbf16> to vector<128x128xbf16>
    %c0_90 = arith.constant 0 : index
    %c0_91 = arith.constant 0 : index
    %133 = vector.load %arg17[%c0_90, %c0_91] : memref<128x128xbf16, #tpu.memory_space<vmem>>, vector<128x128xbf16>
    %cst_92 = arith.constant dense<0.000000e+00> : vector<128x128xf32>
    %134 = tpu.matmul %132, %133, %cst_92 {dimension_numbers = #tpu.dot_dimension_numbers<[1], [0], [0], [1], [0, 0, 1, 1], [], []>} : vector<128x128xbf16>, vector<128x128xbf16>, vector<128x128xf32> -> vector<128x128xf32>
    %135 = vector.broadcast %100 : vector<1x128xf32> to vector<128x128xf32>
    %136 = arith.addf %134, %135 : vector<128x128xf32>
    %c128_i32_93 = arith.constant 128 : i32
    %137 = arith.muli %c0_i32_72, %c128_i32_93 : i32
    %138 = tpu.assume_multiple %137, 128 : i32
    %139 = tpu.iota {dimensions = array<i32: 0>} : vector<128x1xi32>
    %c128_i32_94 = arith.constant 128 : i32
    %140 = arith.muli %c0_i32_72, %c128_i32_94 : i32
    %141 = vector.broadcast %140 : i32 to vector<128x1xi32>
    %142 = arith.addi %139, %141 : vector<128x1xi32>
    %c16_i32_95 = arith.constant 16 : i32
    %143 = vector.broadcast %c16_i32_95 : i32 to vector<128x1xi32>
    %144 = arith.cmpi slt, %142, %143 : vector<128x1xi32>
    %145 = arith.extui %144 : vector<128x1xi1> to vector<128x1xi32>
    %146 = arith.sitofp %145 : vector<128x1xi32> to vector<128x1xf32>
    %147 = vector.broadcast %146 : vector<128x1xf32> to vector<128x128xf32>
    %148 = arith.mulf %136, %147 : vector<128x128xf32>
    %cst_96 = arith.constant dense<0.000000e+00> : vector<128xf32>
    %149 = vector.multi_reduction <add>, %148, %cst_96 [0] : vector<128x128xf32> to vector<128xf32>
    %150 = vector.shape_cast %149 : vector<128xf32> to vector<1x128xf32>
    %151 = arith.addf %107, %150 : vector<1x128xf32>
    %152 = arith.mulf %136, %148 : vector<128x128xf32>
    %cst_97 = arith.constant dense<0.000000e+00> : vector<128xf32>
    %153 = vector.multi_reduction <add>, %152, %cst_97 [0] : vector<128x128xf32> to vector<128xf32>
    %154 = vector.shape_cast %153 : vector<128xf32> to vector<1x128xf32>
    %155 = arith.addf %108, %154 : vector<1x128xf32>
    %156 = arith.index_cast %138 : i32 to index
    %c0_98 = arith.constant 0 : index
    %157 = vector.load %arg18[%156, %c0_98] : memref<128x128xf32, #tpu.memory_space<vmem>>, vector<128x128xf32>
    tpu.vector_store %arg18[%156, %c0_98], %136 {strides = array<i32>} : memref<128x128xf32, #tpu.memory_space<vmem>>, vector<128x128xf32>,
    %c1_i32_99 = arith.constant 1 : i32
    %cst_100 = arith.constant 6.250000e-02 : f32
    %158 = vector.broadcast %cst_100 : f32 to vector<1x128xf32>
    %159 = arith.mulf %151, %158 : vector<1x128xf32>
    %cst_101 = arith.constant 6.250000e-02 : f32
    %160 = vector.broadcast %cst_101 : f32 to vector<1x128xf32>
    %161 = arith.mulf %155, %160 : vector<1x128xf32>
    %162 = arith.mulf %159, %159 : vector<1x128xf32>
    %163 = arith.subf %161, %162 : vector<1x128xf32>
    %cst_102 = arith.constant 0.000000e+00 : f32
    %164 = vector.broadcast %cst_102 : f32 to vector<1x128xf32>
    %165 = arith.maximumf %163, %164 : vector<1x128xf32>
    %cst_103 = arith.constant 9.99999974E-6 : f32
    %166 = vector.broadcast %cst_103 : f32 to vector<1x128xf32>
    %167 = arith.addf %165, %166 : vector<1x128xf32>
    %168 = math.rsqrt %167 : vector<1x128xf32>
    %c0_104 = arith.constant 0 : index
    %c0_105 = arith.constant 0 : index
    %169 = vector.load %arg18[%c0_104, %c0_105] : memref<128x128xf32, #tpu.memory_space<vmem>>, vector<128x128xf32>
    %170 = vector.broadcast %159 : vector<1x128xf32> to vector<128x128xf32>
    %171 = arith.subf %169, %170 : vector<128x128xf32>
    %172 = vector.broadcast %168 : vector<1x128xf32> to vector<128x128xf32>
    %173 = arith.mulf %171, %172 : vector<128x128xf32>
    %174 = arith.truncf %173 : vector<128x128xf32> to vector<128x128xbf16>
    %cst_106 = arith.constant dense<0.000000e+00> : vector<128x128xf32>
    %175 = tpu.matmul %174, %101, %cst_106 {dimension_numbers = #tpu.dot_dimension_numbers<[1], [0], [0], [1], [0, 0, 1, 1], [], []>} : vector<128x128xbf16>, vector<128x128xbf16>, vector<128x128xf32> -> vector<128x128xf32>
    %176 = arith.negf %175 : vector<128x128xf32>
    %177 = math.exp %176 : vector<128x128xf32>
    %cst_107 = arith.constant 1.000000e+00 : f32
    %178 = vector.broadcast %cst_107 : f32 to vector<128x128xf32>
    %179 = arith.addf %178, %177 : vector<128x128xf32>
    %180 = arith.divf %178, %179 : vector<128x128xf32>
    %181 = arith.mulf %180, %173 : vector<128x128xf32>
    %c0_108 = arith.constant 0 : index
    %c0_109 = arith.constant 0 : index
    %182 = vector.load %arg18[%c0_108, %c0_109] : memref<128x128xf32, #tpu.memory_space<vmem>>, vector<128x128xf32>
    tpu.vector_store %arg18[%c0_108, %c0_109], %181 {strides = array<i32>} : memref<128x128xf32, #tpu.memory_space<vmem>>, vector<128x128xf32>,
    %c0_110 = arith.constant 0 : index
    %c0_111 = arith.constant 0 : index
    %183 = vector.load %arg9[%c0_110, %c0_111] : memref<128x128xbf16, #tpu.memory_space<vmem>>, vector<128x128xbf16>
    %c0_112 = arith.constant 0 : index
    %c0_113 = arith.constant 0 : index
    %184 = vector.load %arg10[%c0_112, %c0_113] : memref<1x128xf32, #tpu.memory_space<vmem>>, vector<1x128xf32>
    %c0_114 = arith.constant 0 : index
    %c0_115 = arith.constant 0 : index
    %185 = vector.load %arg11[%c0_114, %c0_115] : memref<128x128xbf16, #tpu.memory_space<vmem>>, vector<128x128xbf16>
    %c0_116 = arith.constant 0 : index
    %c0_117 = arith.constant 0 : index
    %186 = vector.load %arg18[%c0_116, %c0_117] : memref<128x128xf32, #tpu.memory_space<vmem>>, vector<128x128xf32>
    %187 = arith.truncf %186 : vector<128x128xf32> to vector<128x128xbf16>
    %cst_118 = arith.constant dense<0.000000e+00> : vector<128x128xf32>
    %188 = tpu.matmul %187, %183, %cst_118 {dimension_numbers = #tpu.dot_dimension_numbers<[1], [0], [0], [1], [0, 0, 1, 1], [], []>} : vector<128x128xbf16>, vector<128x128xbf16>, vector<128x128xf32> -> vector<128x128xf32>
    %189 = arith.truncf %188 : vector<128x128xf32> to vector<128x128xbf16>
    %c0_119 = arith.constant 0 : index
    %c0_120 = arith.constant 0 : index
    %190 = vector.load %arg17[%c0_119, %c0_120] : memref<128x128xbf16, #tpu.memory_space<vmem>>, vector<128x128xbf16>
    tpu.vector_store %arg17[%c0_119, %c0_120], %189 {strides = array<i32>} : memref<128x128xbf16, #tpu.memory_space<vmem>>, vector<128x128xbf16>,
    %cst_121 = arith.constant 0.000000e+00 : f32
    %191 = vector.broadcast %cst_121 : f32 to vector<1x128xf32>
    %cst_122 = arith.constant 0.000000e+00 : f32
    %192 = vector.broadcast %cst_122 : f32 to vector<1x128xf32>
    %c0_i32_123 = arith.constant 0 : i32
    %c2_i32_124 = arith.constant 2 : i32
    %193 = arith.addi %c2_i32_124, %c0_i32_123 : i32
    %c3_i32_125 = arith.constant 3 : i32
    %c0_i32_126 = arith.constant 0 : i32
    %194 = arith.cmpi eq, %c3_i32_125, %c0_i32_126 : i32
    %c1_i32_127 = arith.constant 1 : i32
    %195 = arith.select %194, %c1_i32_127, %c3_i32_125 : i32
    %196 = arith.remsi %193, %195 : i32
    %c0_i32_128 = arith.constant 0 : i32
    %197 = arith.cmpi ne, %196, %c0_i32_128 : i32
    %c0_i32_129 = arith.constant 0 : i32
    %198 = arith.cmpi slt, %196, %c0_i32_129 : i32
    %c0_i32_130 = arith.constant 0 : i32
    %199 = arith.cmpi slt, %195, %c0_i32_130 : i32
    %200 = arith.xori %198, %199 : i1
    %201 = arith.andi %200, %197 : i1
    %202 = arith.addi %196, %195 : i32
    %203 = arith.select %201, %202, %196 : i32
    %c2_i32_131 = arith.constant 2 : i32
    %204 = arith.addi %193, %c2_i32_131 : i32
    %c3_i32_132 = arith.constant 3 : i32
    %205 = arith.cmpi slt, %204, %c3_i32_132 : i32
    %206 = arith.extui %205 : i1 to i32
    %c0_i32_133 = arith.constant 0 : i32
    %207 = arith.cmpi ne, %206, %c0_i32_133 : i32
    scf.if %207 {
      %c3_i32_173 = arith.constant 3 : i32
      %c0_i32_174 = arith.constant 0 : i32
      %290 = arith.cmpi eq, %c3_i32_173, %c0_i32_174 : i32
      %c1_i32_175 = arith.constant 1 : i32
      %291 = arith.select %290, %c1_i32_175, %c3_i32_173 : i32
      %292 = arith.remsi %204, %291 : i32
      %c0_i32_176 = arith.constant 0 : i32
      %293 = arith.cmpi ne, %292, %c0_i32_176 : i32
      %c0_i32_177 = arith.constant 0 : i32
      %294 = arith.cmpi slt, %292, %c0_i32_177 : i32
      %c0_i32_178 = arith.constant 0 : i32
      %295 = arith.cmpi slt, %291, %c0_i32_178 : i32
      %296 = arith.xori %294, %295 : i1
      %297 = arith.andi %296, %293 : i1
      %298 = arith.addi %292, %291 : i32
      %299 = arith.select %297, %298, %292 : i32
      %c1_i32_179 = arith.constant 1 : i32
      %c0_i32_180 = arith.constant 0 : i32
      %300 = arith.cmpi eq, %c1_i32_179, %c0_i32_180 : i32
      %c1_i32_181 = arith.constant 1 : i32
      %301 = arith.select %300, %c1_i32_181, %c1_i32_179 : i32
      %302 = arith.remsi %204, %301 : i32
      %c0_i32_182 = arith.constant 0 : i32
      %303 = arith.cmpi ne, %302, %c0_i32_182 : i32
      %c0_i32_183 = arith.constant 0 : i32
      %304 = arith.cmpi slt, %302, %c0_i32_183 : i32
      %c0_i32_184 = arith.constant 0 : i32
      %305 = arith.cmpi slt, %301, %c0_i32_184 : i32
      %306 = arith.xori %304, %305 : i1
      %307 = arith.andi %306, %303 : i1
      %308 = arith.addi %302, %301 : i32
      %309 = arith.select %307, %308, %302 : i32
      %c0_i32_185 = arith.constant 0 : i32
      %c0_i32_186 = arith.constant 0 : i32
      %310 = tpu.memref_slice %arg1[%309, %c0_i32_185, %c0_i32_186] : memref<1x128x128xbf16, #tpu.memory_space<any>> -> memref<1x128x128xbf16, #tpu.memory_space<any>>
      %311 = tpu.memref_squeeze %310 : memref<1x128x128xbf16, #tpu.memory_space<any>> -> memref<128x128xbf16, #tpu.memory_space<any>>
      %c0_i32_187 = arith.constant 0 : i32
      %c0_i32_188 = arith.constant 0 : i32
      %312 = tpu.memref_slice %arg15[%299, %c0_i32_187, %c0_i32_188] : memref<3x128x128xbf16, #tpu.memory_space<vmem>> -> memref<1x128x128xbf16, #tpu.memory_space<vmem>>
      %313 = tpu.memref_squeeze %312 : memref<1x128x128xbf16, #tpu.memory_space<vmem>> -> memref<128x128xbf16, #tpu.memory_space<vmem>>
      %314 = tpu.memref_slice %arg16[%299] : memref<4x!tpu.dma_semaphore, #tpu.memory_space<semaphore_mem>> -> memref<1x!tpu.dma_semaphore, #tpu.memory_space<semaphore_mem>>
      %315 = tpu.memref_squeeze %314 : memref<1x!tpu.dma_semaphore, #tpu.memory_space<semaphore_mem>> -> memref<!tpu.dma_semaphore, #tpu.memory_space<semaphore_mem>>
      tpu.enqueue_dma source(%311 : memref<128x128xbf16, #tpu.memory_space<any>>) target(%313 : memref<128x128xbf16, #tpu.memory_space<vmem>>) target_semaphore(%315 : memref<!tpu.dma_semaphore, #tpu.memory_space<semaphore_mem>>)
    } else {
    }
    %c0_i32_134 = arith.constant 0 : i32
    %c0_i32_135 = arith.constant 0 : i32
    %c0_i32_136 = arith.constant 0 : i32
    %208 = tpu.memref_slice %arg1[%c0_i32_134, %c0_i32_135, %c0_i32_136] : memref<1x128x128xbf16, #tpu.memory_space<any>> -> memref<1x128x128xbf16, #tpu.memory_space<any>>
    %209 = tpu.memref_squeeze %208 : memref<1x128x128xbf16, #tpu.memory_space<any>> -> memref<128x128xbf16, #tpu.memory_space<any>>
    %c0_i32_137 = arith.constant 0 : i32
    %c0_i32_138 = arith.constant 0 : i32
    %210 = tpu.memref_slice %arg15[%203, %c0_i32_137, %c0_i32_138] : memref<3x128x128xbf16, #tpu.memory_space<vmem>> -> memref<1x128x128xbf16, #tpu.memory_space<vmem>>
    %211 = tpu.memref_squeeze %210 : memref<1x128x128xbf16, #tpu.memory_space<vmem>> -> memref<128x128xbf16, #tpu.memory_space<vmem>>
    %212 = tpu.memref_slice %arg16[%203] : memref<4x!tpu.dma_semaphore, #tpu.memory_space<semaphore_mem>> -> memref<1x!tpu.dma_semaphore, #tpu.memory_space<semaphore_mem>>
    %213 = tpu.memref_squeeze %212 : memref<1x!tpu.dma_semaphore, #tpu.memory_space<semaphore_mem>> -> memref<!tpu.dma_semaphore, #tpu.memory_space<semaphore_mem>>
    tpu.wait_dma2 semaphore(%213 : memref<!tpu.dma_semaphore, #tpu.memory_space<semaphore_mem>>) src(%209 : memref<128x128xbf16, #tpu.memory_space<any>>) dst(%211 : memref<128x128xbf16, #tpu.memory_space<vmem>>)
    %214 = arith.index_cast %203 : i32 to index
    %c0_139 = arith.constant 0 : index
    %c0_140 = arith.constant 0 : index
    %215 = vector.load %arg15[%214, %c0_139, %c0_140] : memref<3x128x128xbf16, #tpu.memory_space<vmem>>, vector<1x128x128xbf16>
    %216 = vector.shape_cast %215 : vector<1x128x128xbf16> to vector<128x128xbf16>
    %c0_141 = arith.constant 0 : index
    %c0_142 = arith.constant 0 : index
    %217 = vector.load %arg17[%c0_141, %c0_142] : memref<128x128xbf16, #tpu.memory_space<vmem>>, vector<128x128xbf16>
    %cst_143 = arith.constant dense<0.000000e+00> : vector<128x128xf32>
    %218 = tpu.matmul %216, %217, %cst_143 {dimension_numbers = #tpu.dot_dimension_numbers<[1], [0], [0], [1], [0, 0, 1, 1], [], []>} : vector<128x128xbf16>, vector<128x128xbf16>, vector<128x128xf32> -> vector<128x128xf32>
    %219 = vector.broadcast %184 : vector<1x128xf32> to vector<128x128xf32>
    %220 = arith.addf %218, %219 : vector<128x128xf32>
    %c128_i32_144 = arith.constant 128 : i32
    %221 = arith.muli %c0_i32_123, %c128_i32_144 : i32
    %222 = tpu.assume_multiple %221, 128 : i32
    %223 = tpu.iota {dimensions = array<i32: 0>} : vector<128x1xi32>
    %c128_i32_145 = arith.constant 128 : i32
    %224 = arith.muli %c0_i32_123, %c128_i32_145 : i32
    %225 = vector.broadcast %224 : i32 to vector<128x1xi32>
    %226 = arith.addi %223, %225 : vector<128x1xi32>
    %c16_i32_146 = arith.constant 16 : i32
    %227 = vector.broadcast %c16_i32_146 : i32 to vector<128x1xi32>
    %228 = arith.cmpi slt, %226, %227 : vector<128x1xi32>
    %229 = arith.extui %228 : vector<128x1xi1> to vector<128x1xi32>
    %230 = arith.sitofp %229 : vector<128x1xi32> to vector<128x1xf32>
    %231 = vector.broadcast %230 : vector<128x1xf32> to vector<128x128xf32>
    %232 = arith.mulf %220, %231 : vector<128x128xf32>
    %cst_147 = arith.constant dense<0.000000e+00> : vector<128xf32>
    %233 = vector.multi_reduction <add>, %232, %cst_147 [0] : vector<128x128xf32> to vector<128xf32>
    %234 = vector.shape_cast %233 : vector<128xf32> to vector<1x128xf32>
    %235 = arith.addf %191, %234 : vector<1x128xf32>
    %236 = arith.mulf %220, %232 : vector<128x128xf32>
    %cst_148 = arith.constant dense<0.000000e+00> : vector<128xf32>
    %237 = vector.multi_reduction <add>, %236, %cst_148 [0] : vector<128x128xf32> to vector<128xf32>
    %238 = vector.shape_cast %237 : vector<128xf32> to vector<1x128xf32>
    %239 = arith.addf %192, %238 : vector<1x128xf32>
    %240 = arith.index_cast %222 : i32 to index
    %c0_149 = arith.constant 0 : index
    %241 = vector.load %arg18[%240, %c0_149] : memref<128x128xf32, #tpu.memory_space<vmem>>, vector<128x128xf32>
    tpu.vector_store %arg18[%240, %c0_149], %220 {strides = array<i32>} : memref<128x128xf32, #tpu.memory_space<vmem>>, vector<128x128xf32>,
    %c1_i32_150 = arith.constant 1 : i32
    %cst_151 = arith.constant 6.250000e-02 : f32
    %242 = vector.broadcast %cst_151 : f32 to vector<1x128xf32>
    %243 = arith.mulf %235, %242 : vector<1x128xf32>
    %cst_152 = arith.constant 6.250000e-02 : f32
    %244 = vector.broadcast %cst_152 : f32 to vector<1x128xf32>
    %245 = arith.mulf %239, %244 : vector<1x128xf32>
    %246 = arith.mulf %243, %243 : vector<1x128xf32>
    %247 = arith.subf %245, %246 : vector<1x128xf32>
    %cst_153 = arith.constant 0.000000e+00 : f32
    %248 = vector.broadcast %cst_153 : f32 to vector<1x128xf32>
    %249 = arith.maximumf %247, %248 : vector<1x128xf32>
    %cst_154 = arith.constant 9.99999974E-6 : f32
    %250 = vector.broadcast %cst_154 : f32 to vector<1x128xf32>
    %251 = arith.addf %249, %250 : vector<1x128xf32>
    %252 = math.rsqrt %251 : vector<1x128xf32>
    %c0_155 = arith.constant 0 : index
    %c0_156 = arith.constant 0 : index
    %253 = vector.load %arg18[%c0_155, %c0_156] : memref<128x128xf32, #tpu.memory_space<vmem>>, vector<128x128xf32>
    %254 = vector.broadcast %243 : vector<1x128xf32> to vector<128x128xf32>
    %255 = arith.subf %253, %254 : vector<128x128xf32>
    %256 = vector.broadcast %252 : vector<1x128xf32> to vector<128x128xf32>
    %257 = arith.mulf %255, %256 : vector<128x128xf32>
    %258 = arith.truncf %257 : vector<128x128xf32> to vector<128x128xbf16>
    %cst_157 = arith.constant dense<0.000000e+00> : vector<128x128xf32>
    %259 = tpu.matmul %258, %185, %cst_157 {dimension_numbers = #tpu.dot_dimension_numbers<[1], [0], [0], [1], [0, 0, 1, 1], [], []>} : vector<128x128xbf16>, vector<128x128xbf16>, vector<128x128xf32> -> vector<128x128xf32>
    %260 = arith.negf %259 : vector<128x128xf32>
    %261 = math.exp %260 : vector<128x128xf32>
    %cst_158 = arith.constant 1.000000e+00 : f32
    %262 = vector.broadcast %cst_158 : f32 to vector<128x128xf32>
    %263 = arith.addf %262, %261 : vector<128x128xf32>
    %264 = arith.divf %262, %263 : vector<128x128xf32>
    %265 = arith.mulf %264, %257 : vector<128x128xf32>
    %c0_159 = arith.constant 0 : index
    %c0_160 = arith.constant 0 : index
    %266 = vector.load %arg18[%c0_159, %c0_160] : memref<128x128xf32, #tpu.memory_space<vmem>>, vector<128x128xf32>
    tpu.vector_store %arg18[%c0_159, %c0_160], %265 {strides = array<i32>} : memref<128x128xf32, #tpu.memory_space<vmem>>, vector<128x128xf32>,
    %c0_161 = arith.constant 0 : index
    %c0_162 = arith.constant 0 : index
    %267 = vector.load %arg18[%c0_161, %c0_162] : memref<128x128xf32, #tpu.memory_space<vmem>>, vector<128x128xf32>
    %268 = arith.truncf %267 : vector<128x128xf32> to vector<128x128xbf16>
    %c0_163 = arith.constant 0 : index
    %c0_164 = arith.constant 0 : index
    %269 = vector.load %arg12[%c0_163, %c0_164] : memref<128x128xbf16, #tpu.memory_space<vmem>>, vector<128x128xbf16>
    %cst_165 = arith.constant dense<0.000000e+00> : vector<128x128xf32>
    %270 = tpu.matmul %268, %269, %cst_165 {dimension_numbers = #tpu.dot_dimension_numbers<[1], [0], [0], [1], [0, 0, 1, 1], [], []>} : vector<128x128xbf16>, vector<128x128xbf16>, vector<128x128xf32> -> vector<128x128xf32>
    %c0_166 = arith.constant 0 : index
    %c0_167 = arith.constant 0 : index
    %271 = vector.load %arg13[%c0_166, %c0_167] : memref<1x128xf32, #tpu.memory_space<vmem>>, vector<1x128xf32>
    %272 = vector.broadcast %271 : vector<1x128xf32> to vector<128x128xf32>
    %273 = arith.addf %270, %272 : vector<128x128xf32>
    %274 = tpu.iota {dimensions = array<i32: 1>} : vector<128x128xi32>
    %c4_i32 = arith.constant 4 : i32
    %275 = vector.broadcast %c4_i32 : i32 to vector<128x128xi32>
    %276 = arith.cmpi slt, %274, %275 : vector<128x128xi32>
    %cst_168 = arith.constant -1.000000e+30 : f32
    %277 = vector.broadcast %cst_168 : f32 to vector<128x128xf32>
    %278 = arith.select %276, %273, %277 : vector<128x128xi1>, vector<128x128xf32>
    %cst_169 = arith.constant dense<0xFF800000> : vector<128xf32>
    %279 = vector.multi_reduction <maximumf>, %278, %cst_169 [1] : vector<128x128xf32> to vector<128xf32>
    %280 = vector.shape_cast %279 : vector<128xf32> to vector<128x1xf32>
    %281 = vector.broadcast %280 : vector<128x1xf32> to vector<128x128xf32>
    %282 = arith.subf %278, %281 : vector<128x128xf32>
    %283 = math.exp %282 : vector<128x128xf32>
    %cst_170 = arith.constant dense<0.000000e+00> : vector<128xf32>
    %284 = vector.multi_reduction <add>, %283, %cst_170 [1] : vector<128x128xf32> to vector<128xf32>
    %285 = vector.shape_cast %284 : vector<128xf32> to vector<128x1xf32>
    %286 = math.log %285 : vector<128x1xf32>
    %287 = vector.broadcast %286 : vector<128x1xf32> to vector<128x128xf32>
    %288 = arith.subf %282, %287 : vector<128x128xf32>
    %c0_171 = arith.constant 0 : index
    %c0_172 = arith.constant 0 : index
    %289 = vector.load %arg14[%c0_171, %c0_172] : memref<128x128xf32, #tpu.memory_space<vmem>>, vector<128x128xf32>
    tpu.vector_store %arg14[%c0_171, %c0_172], %288 {strides = array<i32>} : memref<128x128xf32, #tpu.memory_space<vmem>>, vector<128x128xf32>,
    return
  }
  func.func @transform_2(%arg0: i32) -> (i32, i32) {
    %c0_i32 = arith.constant 0 : i32
    %c0_i32_0 = arith.constant 0 : i32
    %c0_i32_1 = arith.constant 0 : i32
    return %c0_i32, %c0_i32_0 : i32, i32
  }
  func.func @transform_3(%arg0: i32) -> (i32, i32) {
    %c0_i32 = arith.constant 0 : i32
    %c0_i32_0 = arith.constant 0 : i32
    %c0_i32_1 = arith.constant 0 : i32
    return %c0_i32, %c0_i32_0 : i32, i32
  }
  func.func @transform_4(%arg0: i32) -> (i32, i32) {
    %c0_i32 = arith.constant 0 : i32
    %c0_i32_0 = arith.constant 0 : i32
    %c0_i32_1 = arith.constant 0 : i32
    return %c0_i32, %c0_i32_0 : i32, i32
  }
  func.func @transform_5(%arg0: i32) -> (i32, i32) {
    %c0_i32 = arith.constant 0 : i32
    %c0_i32_0 = arith.constant 0 : i32
    %c0_i32_1 = arith.constant 0 : i32
    return %c0_i32, %c0_i32_0 : i32, i32
  }
  func.func @transform_6(%arg0: i32) -> (i32, i32) {
    %c0_i32 = arith.constant 0 : i32
    %c0_i32_0 = arith.constant 0 : i32
    %c0_i32_1 = arith.constant 0 : i32
    return %c0_i32, %c0_i32_0 : i32, i32
  }
  func.func @transform_7(%arg0: i32) -> (i32, i32) {
    %c0_i32 = arith.constant 0 : i32
    %c0_i32_0 = arith.constant 0 : i32
    %c0_i32_1 = arith.constant 0 : i32
    return %c0_i32, %c0_i32_0 : i32, i32
  }
  func.func @transform_8(%arg0: i32) -> (i32, i32) {
    %c0_i32 = arith.constant 0 : i32
    %c0_i32_0 = arith.constant 0 : i32
    %c0_i32_1 = arith.constant 0 : i32
    return %c0_i32, %c0_i32_0 : i32, i32
  }
  func.func @transform_9(%arg0: i32) -> (i32, i32) {
    %c0_i32 = arith.constant 0 : i32
    %c0_i32_0 = arith.constant 0 : i32
    %c0_i32_1 = arith.constant 0 : i32
    return %c0_i32, %c0_i32_0 : i32, i32
  }
  func.func @transform_10(%arg0: i32) -> (i32, i32) {
    %c0_i32 = arith.constant 0 : i32
    %c0_i32_0 = arith.constant 0 : i32
    %c0_i32_1 = arith.constant 0 : i32
    return %c0_i32, %c0_i32_0 : i32, i32
  }
  func.func @transform_11(%arg0: i32) -> (i32, i32) {
    %c0_i32 = arith.constant 0 : i32
    %c0_i32_0 = arith.constant 0 : i32
    %c0_i32_1 = arith.constant 0 : i32
    return %c0_i32, %c0_i32_0 : i32, i32
  }
  func.func @transform_12(%arg0: i32) -> (i32, i32) {
    %c0_i32 = arith.constant 0 : i32
    %c0_i32_0 = arith.constant 0 : i32
    %c0_i32_1 = arith.constant 0 : i32
    return %c0_i32, %c0_i32_0 : i32, i32
  }
  func.func @transform_13(%arg0: i32) -> (i32, i32) {
    %c0_i32 = arith.constant 0 : i32
    %c0_i32_0 = arith.constant 0 : i32
    %c0_i32_1 = arith.constant 0 : i32
    return %c0_i32, %c0_i32_0 : i32, i32
  }
}

</mosaic_0001>

<llo_original>
// kernel: asym_gnn_forward.1
$region0: #{asym_gnn_forward.1}
  #allocation0 [shape = 'u32[]', space=smem, size = 0x4, offset = 0x4, fixed_abs, tag = 'smem constant byte address 0x4 - core index']
  #allocation1 [shape = 'u32[144,128]{1,0:T(1,128)}', space=vmem, size = 0x12000, scoped, tag = 'internal scratch']
  #allocation2 [shape = 'bf16[3,128,128]{2,1,0:T(16,128)(2,1)}', space=vmem, size = 0x18000, scoped, tag = 'scratch operand']
  #allocation3 [shape = 's32[4]{0}', space=sflag, size = 0x10, scoped, tag = 'scratch operand']
  #allocation4 [shape = 'bf16[128,128]{1,0:T(16,128)(2,1)}', space=vmem, size = 0x8000, scoped, tag = 'scratch operand']
  #allocation5 [shape = 'f32[128,128]{1,0:T(8,128)}', space=vmem, size = 0x10000, scoped, tag = 'scratch operand']
  #allocation6 [shape = 's32[]', space=sflag, size = 0x4, offset = 0, fixed_abs, tag = 'sflag constant byte address 0x0 - dummy sync flag']
  #allocation7 [shape = 's32[]', space=sflag, size = 0x4, offset = 0, fixed_abs, tag = 'sflag constant byte address 0x0 - dummy sync flag']
  #allocation8 [shape = 's32[]', space=sflag, size = 0x4, offset = 0, fixed_abs, tag = 'sflag constant byte address 0x0 - dummy sync flag']
  #allocation9 [shape = 's32[]', space=sflag, size = 0x4, offset = 0, fixed_abs, tag = 'sflag constant byte address 0x0 - dummy sync flag']
  %s0 = inlined_call_operand.vmem [shape: bf16[1,128,128], index: 0, kind: input, shape index: {}]
  %s1 = inlined_call_operand.vmem [shape: bf16[128,128], index: 1, kind: input, shape index: {}]
  %s2 = inlined_call_operand.vmem [shape: bf16[128,128], index: 2, kind: input, shape index: {}]
  %s3 = inlined_call_operand.vmem [shape: f32[1,128], index: 3, kind: input, shape index: {}]
  %s4 = inlined_call_operand.vmem [shape: bf16[128,128], index: 4, kind: input, shape index: {}]
  %s5 = inlined_call_operand.vmem [shape: bf16[128,128], index: 5, kind: input, shape index: {}]
  %s6 = inlined_call_operand.vmem [shape: f32[1,128], index: 6, kind: input, shape index: {}]
  %s7 = inlined_call_operand.vmem [shape: bf16[128,128], index: 7, kind: input, shape index: {}]
  %s8 = inlined_call_operand.vmem [shape: bf16[128,128], index: 8, kind: input, shape index: {}]
  %s9 = inlined_call_operand.vmem [shape: f32[1,128], index: 9, kind: input, shape index: {}]
  %s10 = inlined_call_operand.vmem [shape: bf16[128,128], index: 10, kind: input, shape index: {}]
  %s11 = inlined_call_operand.vmem [shape: bf16[128,128], index: 11, kind: input, shape index: {}]
  %s12 = inlined_call_operand.vmem [shape: f32[1,128], index: 12, kind: input, shape index: {}]
  %s13 = inlined_call_operand.vmem [shape: f32[128,128], index: 13, kind: output, shape index: {}]
  %s14 = sld [smem:[#allocation0]]
  $region190: #{asym_gnn_forward.1} parent=0
    _
  %s16 = ssub.s32 1, %s14
  %s17 = scalar_select 0, %s16, %s14
  // Predicated region
  $region2: #{asym_gnn_forward.1} parent=0 // pred_check
    _
  $region3: #{asym_gnn_forward.1} parent=0 // pred_check_branch
    %19 = sbr.rel (0) target = $region5
  $region4: #{asym_gnn_forward.1} parent=0 // pred_region
    _
  $region5: #{asym_gnn_forward.1} parent=0 // pred_fallthru
    _
  // Predicated region
  $region6: #{asym_gnn_forward.1} parent=0 // pred_check
    _
  $region7: #{asym_gnn_forward.1} parent=0 // pred_check_branch
    %21 = sbr.rel (0) target = $region9
  $region8: #{asym_gnn_forward.1} parent=0 // pred_region
    _
  $region9: #{asym_gnn_forward.1} parent=0 // pred_fallthru
    _
  // Predicated region
  $region10: #{asym_gnn_forward.1} parent=0 // pred_check
    _
  $region11: #{asym_gnn_forward.1} parent=0 // pred_check_branch
    %23 = sbr.rel (0) target = $region13
  $region12: #{asym_gnn_forward.1} parent=0 // pred_region
    _
  $region13: #{asym_gnn_forward.1} parent=0 // pred_fallthru
    _
  // Predicated region
  $region14: #{asym_gnn_forward.1} parent=0 // pred_check
    _
  $region15: #{asym_gnn_forward.1} parent=0 // pred_check_branch
    %25 = sbr.rel (0) target = $region17
  $region16: #{asym_gnn_forward.1} parent=0 // pred_region
    _
  $region17: #{asym_gnn_forward.1} parent=0 // pred_fallthru
    _
  // Predicated region
  $region18: #{asym_gnn_forward.1} parent=0 // pred_check
    _
  $region19: #{asym_gnn_forward.1} parent=0 // pred_check_branch
    %27 = sbr.rel (0) target = $region21
  $region20: #{asym_gnn_forward.1} parent=0 // pred_region
    _
  $region21: #{asym_gnn_forward.1} parent=0 // pred_fallthru
    _
  // Predicated region
  $region22: #{asym_gnn_forward.1} parent=0 // pred_check
    _
  $region23: #{asym_gnn_forward.1} parent=0 // pred_check_branch
    %29 = sbr.rel (0) target = $region25
  $region24: #{asym_gnn_forward.1} parent=0 // pred_region
    _
  $region25: #{asym_gnn_forward.1} parent=0 // pred_fallthru
    _
  // Predicated region
  $region26: #{asym_gnn_forward.1} parent=0 // pred_check
    _
  $region27: #{asym_gnn_forward.1} parent=0 // pred_check_branch
    %31 = sbr.rel (0) target = $region29
  $region28: #{asym_gnn_forward.1} parent=0 // pred_region
    _
  $region29: #{asym_gnn_forward.1} parent=0 // pred_fallthru
    _
  // Predicated region
  $region30: #{asym_gnn_forward.1} parent=0 // pred_check
    _
  $region31: #{asym_gnn_forward.1} parent=0 // pred_check_branch
    %33 = sbr.rel (0) target = $region33
  $region32: #{asym_gnn_forward.1} parent=0 // pred_region
    _
  $region33: #{asym_gnn_forward.1} parent=0 // pred_fallthru
    _
  // Predicated region
  $region34: #{asym_gnn_forward.1} parent=0 // pred_check
    _
  $region35: #{asym_gnn_forward.1} parent=0 // pred_check_branch
    %35 = sbr.rel (0) target = $region37
  $region36: #{asym_gnn_forward.1} parent=0 // pred_region
    _
  $region37: #{asym_gnn_forward.1} parent=0 // pred_fallthru
    _
  // Predicated region
  $region38: #{asym_gnn_forward.1} parent=0 // pred_check
    _
  $region39: #{asym_gnn_forward.1} parent=0 // pred_check_branch
    %37 = sbr.rel (0) target = $region41
  $region40: #{asym_gnn_forward.1} parent=0 // pred_region
    _
  $region41: #{asym_gnn_forward.1} parent=0 // pred_fallthru
    _
  // Predicated region
  $region42: #{asym_gnn_forward.1} parent=0 // pred_check
    _
  $region43: #{asym_gnn_forward.1} parent=0 // pred_check_branch
    %39 = sbr.rel (0) target = $region45
  $region44: #{asym_gnn_forward.1} parent=0 // pred_region
    _
  $region45: #{asym_gnn_forward.1} parent=0 // pred_fallthru
    _
  %s41 = scalar_lea.sflag [#allocation3], 3
  %p43 = scmp.lt.u32.totalorder 64, 8
  %p44 = pneg %p43
  // Predicated region
  $region46: #{asym_gnn_forward.1} parent=0 // pred_check
    _
  $region47: #{asym_gnn_forward.1} parent=0 // pred_check_branch
    %46 = sbr.rel (%p43) target = $region49
  $region48: #{asym_gnn_forward.1} parent=0 // pred_region
    %s61 = sand.u32 64, 7
    %p62 = scmp.eq.s32.totalorder %s61, 0
    // Predicated region
    $region61: #{asym_gnn_forward.1} parent=48 // pred_check
      %p63 = pneg %p62
    $region62: #{asym_gnn_forward.1} parent=48 // pred_check_branch
      %65 = sbr.rel (%p63) target = $region64
    $region63: #{asym_gnn_forward.1} parent=48 // pred_region
      loop: start=0, step=1, limit=1
      $region65: #{asym_gnn_forward.1} parent=63 // loop_pre_header
        _
      $region66: #{asym_gnn_forward.1} parent=63 // loop_header
        %s67 = sphi 0, %s71
        %p68 = scmp.ge.s32.totalorder %s67, 1
        %s72 = sphi %s1, %s1
        %s73 = sphi [#allocation4], [#allocation4]
      $region67: #{asym_gnn_forward.1} parent=63 // loop_header_branch
        %70 = sbr.rel (%p68) target = $region71
      $region68: #{asym_gnn_forward.1} parent=63 // loop_body
        %v74 = vld [vmem:[%s72] sm:$0xff]
        %75 = vst [vmem:[%s73] sm:$0xff] %v74
        %v76 = vld [vmem:[%s72 + $0x8] sm:$0xff]
        %77 = vst [vmem:[%s73 + $0x8] sm:$0xff] %v76
        %v78 = vld [vmem:[%s72 + $0x10] sm:$0xff]
        %79 = vst [vmem:[%s73 + $0x10] sm:$0xff] %v78
        %v80 = vld [vmem:[%s72 + $0x18] sm:$0xff]
        %81 = vst [vmem:[%s73 + $0x18] sm:$0xff] %v80
        %v82 = vld [vmem:[%s72 + $0x20] sm:$0xff]
        %83 = vst [vmem:[%s73 + $0x20] sm:$0xff] %v82
        %v84 = vld [vmem:[%s72 + $0x28] sm:$0xff]
        %85 = vst [vmem:[%s73 + $0x28] sm:$0xff] %v84
        %v86 = vld [vmem:[%s72 + $0x30] sm:$0xff]
        %87 = vst [vmem:[%s73 + $0x30] sm:$0xff] %v86
        %v88 = vld [vmem:[%s72 + $0x38] sm:$0xff]
        %89 = vst [vmem:[%s73 + $0x38] sm:$0xff] %v88
      $region69: #{asym_gnn_forward.1} parent=63 // loop_footer
        %s71 = sadd.s32 1, %s67
      $region70: #{asym_gnn_forward.1} parent=63 // loop_footer_branch
        %66 = sbr.rel target = $region66
      $region71: #{asym_gnn_forward.1} parent=63 // loop_exit
        _
    $region64: #{asym_gnn_forward.1} parent=48 // pred_fallthru
      _
    %p90 = pneg %p62
    // Predicated region
    $region72: #{asym_gnn_forward.1} parent=48 // pred_check
      _
    $region73: #{asym_gnn_forward.1} parent=48 // pred_check_branch
      %92 = sbr.rel (%p62) target = $region75
    $region74: #{asym_gnn_forward.1} parent=48 // pred_region
      %s93 = sand.u32 64, 7
    $region75: #{asym_gnn_forward.1} parent=48 // pred_fallthru
      _
  $region49: #{asym_gnn_forward.1} parent=0 // pred_fallthru
    _
  // Predicated region
  $region50: #{asym_gnn_forward.1} parent=0 // pred_check
    %p47 = pneg %p43
  $region51: #{asym_gnn_forward.1} parent=0 // pred_check_branch
    %49 = sbr.rel (%p47) target = $region53
  $region52: #{asym_gnn_forward.1} parent=0 // pred_region
    %s50 = sshllo.u32 0, 64
    loop: start=0, step=1, limit=1
    $region54: #{asym_gnn_forward.1} parent=52 // loop_pre_header
      _
    $region55: #{asym_gnn_forward.1} parent=52 // loop_header
      %s52 = sphi 0, %s56
      %p53 = scmp.ge.s32.totalorder %s52, 1
      %s57 = sphi %s1, %s1
      %s58 = sphi [#allocation4], [#allocation4]
    $region56: #{asym_gnn_forward.1} parent=52 // loop_header_branch
      %55 = sbr.rel (%p53) target = $region60
    $region57: #{asym_gnn_forward.1} parent=52 // loop_body
      %v59 = vld [vmem:[%s57] sm:%s50]
      %60 = vst [vmem:[%s58] sm:%s50] %v59
    $region58: #{asym_gnn_forward.1} parent=52 // loop_footer
      %s56 = sadd.s32 1, %s52
    $region59: #{asym_gnn_forward.1} parent=52 // loop_footer_branch
      %51 = sbr.rel target = $region55
    $region60: #{asym_gnn_forward.1} parent=52 // loop_exit
      _
  $region53: #{asym_gnn_forward.1} parent=0 // pred_fallthru
    _
  // Predicated region
  $region76: #{asym_gnn_forward.1} parent=0 // pred_check
    _
  $region77: #{asym_gnn_forward.1} parent=0 // pred_check_branch
    %96 = sbr.rel (0) target = $region79
  $region78: #{asym_gnn_forward.1} parent=0 // pred_region
    %97 = vsyncadd %s41, 1024
  $region79: #{asym_gnn_forward.1} parent=0 // pred_fallthru
    _
  %p99 = scmp.lt.u32.totalorder 64, 8
  %p100 = pneg %p99
  // Predicated region
  $region80: #{asym_gnn_forward.1} parent=0 // pred_check
    _
  $region81: #{asym_gnn_forward.1} parent=0 // pred_check_branch
    %102 = sbr.rel (%p99) target = $region83
  $region82: #{asym_gnn_forward.1} parent=0 // pred_region
    %s117 = sand.u32 64, 7
    %p118 = scmp.eq.s32.totalorder %s117, 0
    // Predicated region
    $region95: #{asym_gnn_forward.1} parent=82 // pred_check
      %p119 = pneg %p118
    $region96: #{asym_gnn_forward.1} parent=82 // pred_check_branch
      %121 = sbr.rel (%p119) target = $region98
    $region97: #{asym_gnn_forward.1} parent=82 // pred_region
      loop: start=0, step=1, limit=1
      $region99: #{asym_gnn_forward.1} parent=97 // loop_pre_header
        _
      $region100: #{asym_gnn_forward.1} parent=97 // loop_header
        %s123 = sphi 0, %s127
        %p124 = scmp.ge.s32.totalorder %s123, 1
        %s128 = sphi %s0, %s0
        %s129 = sphi [#allocation2], [#allocation2]
      $region101: #{asym_gnn_forward.1} parent=97 // loop_header_branch
        %126 = sbr.rel (%p124) target = $region105
      $region102: #{asym_gnn_forward.1} parent=97 // loop_body
        %v130 = vld [vmem:[%s128] sm:$0xff]
        %131 = vst [vmem:[%s129] sm:$0xff] %v130
        %v132 = vld [vmem:[%s128 + $0x8] sm:$0xff]
        %133 = vst [vmem:[%s129 + $0x8] sm:$0xff] %v132
        %v134 = vld [vmem:[%s128 + $0x10] sm:$0xff]
        %135 = vst [vmem:[%s129 + $0x10] sm:$0xff] %v134
        %v136 = vld [vmem:[%s128 + $0x18] sm:$0xff]
        %137 = vst [vmem:[%s129 + $0x18] sm:$0xff] %v136
        %v138 = vld [vmem:[%s128 + $0x20] sm:$0xff]
        %139 = vst [vmem:[%s129 + $0x20] sm:$0xff] %v138
        %v140 = vld [vmem:[%s128 + $0x28] sm:$0xff]
        %141 = vst [vmem:[%s129 + $0x28] sm:$0xff] %v140
        %v142 = vld [vmem:[%s128 + $0x30] sm:$0xff]
        %143 = vst [vmem:[%s129 + $0x30] sm:$0xff] %v142
        %v144 = vld [vmem:[%s128 + $0x38] sm:$0xff]
        %145 = vst [vmem:[%s129 + $0x38] sm:$0xff] %v144
      $region103: #{asym_gnn_forward.1} parent=97 // loop_footer
        %s127 = sadd.s32 1, %s123
      $region104: #{asym_gnn_forward.1} parent=97 // loop_footer_branch
        %122 = sbr.rel target = $region100
      $region105: #{asym_gnn_forward.1} parent=97 // loop_exit
        _
    $region98: #{asym_gnn_forward.1} parent=82 // pred_fallthru
      _
    %p146 = pneg %p118
    // Predicated region
    $region106: #{asym_gnn_forward.1} parent=82 // pred_check
      _
    $region107: #{asym_gnn_forward.1} parent=82 // pred_check_branch
      %148 = sbr.rel (%p118) target = $region109
    $region108: #{asym_gnn_forward.1} parent=82 // pred_region
      %s149 = sand.u32 64, 7
    $region109: #{asym_gnn_forward.1} parent=82 // pred_fallthru
      _
  $region83: #{asym_gnn_forward.1} parent=0 // pred_fallthru
    _
  // Predicated region
  $region84: #{asym_gnn_forward.1} parent=0 // pred_check
    %p103 = pneg %p99
  $region85: #{asym_gnn_forward.1} parent=0 // pred_check_branch
    %105 = sbr.rel (%p103) target = $region87
  $region86: #{asym_gnn_forward.1} parent=0 // pred_region
    %s106 = sshllo.u32 0, 64
    loop: start=0, step=1, limit=1
    $region88: #{asym_gnn_forward.1} parent=86 // loop_pre_header
      _
    $region89: #{asym_gnn_forward.1} parent=86 // loop_header
      %s108 = sphi 0, %s112
      %p109 = scmp.ge.s32.totalorder %s108, 1
      %s113 = sphi %s0, %s0
      %s114 = sphi [#allocation2], [#allocation2]
    $region90: #{asym_gnn_forward.1} parent=86 // loop_header_branch
      %111 = sbr.rel (%p109) target = $region94
    $region91: #{asym_gnn_forward.1} parent=86 // loop_body
      %v115 = vld [vmem:[%s113] sm:%s106]
      %116 = vst [vmem:[%s114] sm:%s106] %v115
    $region92: #{asym_gnn_forward.1} parent=86 // loop_footer
      %s112 = sadd.s32 1, %s108
    $region93: #{asym_gnn_forward.1} parent=86 // loop_footer_branch
      %107 = sbr.rel target = $region89
    $region94: #{asym_gnn_forward.1} parent=86 // loop_exit
      _
  $region87: #{asym_gnn_forward.1} parent=0 // pred_fallthru
    _
  // Predicated region
  $region110: #{asym_gnn_forward.1} parent=0 // pred_check
    _
  $region111: #{asym_gnn_forward.1} parent=0 // pred_check_branch
    %152 = sbr.rel (0) target = $region113
  $region112: #{asym_gnn_forward.1} parent=0 // pred_region
    %153 = vsyncadd [#allocation3], 1024
  $region113: #{asym_gnn_forward.1} parent=0 // pred_fallthru
    _
  %s154 = scalar_lea.vmem [#allocation2], 64
  %s155 = scalar_lea.sflag [#allocation3], 1
  %p157 = scmp.lt.u32.totalorder 64, 8
  %p158 = pneg %p157
  // Predicated region
  $region114: #{asym_gnn_forward.1} parent=0 // pred_check
    _
  $region115: #{asym_gnn_forward.1} parent=0 // pred_check_branch
    %160 = sbr.rel (%p157) target = $region117
  $region116: #{asym_gnn_forward.1} parent=0 // pred_region
    %s175 = sand.u32 64, 7
    %p176 = scmp.eq.s32.totalorder %s175, 0
    // Predicated region
    $region129: #{asym_gnn_forward.1} parent=116 // pred_check
      %p177 = pneg %p176
    $region130: #{asym_gnn_forward.1} parent=116 // pred_check_branch
      %179 = sbr.rel (%p177) target = $region132
    $region131: #{asym_gnn_forward.1} parent=116 // pred_region
      loop: start=0, step=1, limit=1
      $region133: #{asym_gnn_forward.1} parent=131 // loop_pre_header
        _
      $region134: #{asym_gnn_forward.1} parent=131 // loop_header
        %s181 = sphi 0, %s185
        %p182 = scmp.ge.s32.totalorder %s181, 1
        %s186 = sphi %s0, %s0
        %s187 = sphi %s154, %s154
      $region135: #{asym_gnn_forward.1} parent=131 // loop_header_branch
        %184 = sbr.rel (%p182) target = $region139
      $region136: #{asym_gnn_forward.1} parent=131 // loop_body
        %v188 = vld [vmem:[%s186] sm:$0xff]
        %189 = vst [vmem:[%s187] sm:$0xff] %v188
        %v190 = vld [vmem:[%s186 + $0x8] sm:$0xff]
        %191 = vst [vmem:[%s187 + $0x8] sm:$0xff] %v190
        %v192 = vld [vmem:[%s186 + $0x10] sm:$0xff]
        %193 = vst [vmem:[%s187 + $0x10] sm:$0xff] %v192
        %v194 = vld [vmem:[%s186 + $0x18] sm:$0xff]
        %195 = vst [vmem:[%s187 + $0x18] sm:$0xff] %v194
        %v196 = vld [vmem:[%s186 + $0x20] sm:$0xff]
        %197 = vst [vmem:[%s187 + $0x20] sm:$0xff] %v196
        %v198 = vld [vmem:[%s186 + $0x28] sm:$0xff]
        %199 = vst [vmem:[%s187 + $0x28] sm:$0xff] %v198
        %v200 = vld [vmem:[%s186 + $0x30] sm:$0xff]
        %201 = vst [vmem:[%s187 + $0x30] sm:$0xff] %v200
        %v202 = vld [vmem:[%s186 + $0x38] sm:$0xff]
        %203 = vst [vmem:[%s187 + $0x38] sm:$0xff] %v202
      $region137: #{asym_gnn_forward.1} parent=131 // loop_footer
        %s185 = sadd.s32 1, %s181
      $region138: #{asym_gnn_forward.1} parent=131 // loop_footer_branch
        %180 = sbr.rel target = $region134
      $region139: #{asym_gnn_forward.1} parent=131 // loop_exit
        _
    $region132: #{asym_gnn_forward.1} parent=116 // pred_fallthru
      _
    %p204 = pneg %p176
    // Predicated region
    $region140: #{asym_gnn_forward.1} parent=116 // pred_check
      _
    $region141: #{asym_gnn_forward.1} parent=116 // pred_check_branch
      %206 = sbr.rel (%p176) target = $region143
    $region142: #{asym_gnn_forward.1} parent=116 // pred_region
      %s207 = sand.u32 64, 7
    $region143: #{asym_gnn_forward.1} parent=116 // pred_fallthru
      _
  $region117: #{asym_gnn_forward.1} parent=0 // pred_fallthru
    _
  // Predicated region
  $region118: #{asym_gnn_forward.1} parent=0 // pred_check
    %p161 = pneg %p157
  $region119: #{asym_gnn_forward.1} parent=0 // pred_check_branch
    %163 = sbr.rel (%p161) target = $region121
  $region120: #{asym_gnn_forward.1} parent=0 // pred_region
    %s164 = sshllo.u32 0, 64
    loop: start=0, step=1, limit=1
    $region122: #{asym_gnn_forward.1} parent=120 // loop_pre_header
      _
    $region123: #{asym_gnn_forward.1} parent=120 // loop_header
      %s166 = sphi 0, %s170
      %p167 = scmp.ge.s32.totalorder %s166, 1
      %s171 = sphi %s0, %s0
      %s172 = sphi %s154, %s154
    $region124: #{asym_gnn_forward.1} parent=120 // loop_header_branch
      %169 = sbr.rel (%p167) target = $region128
    $region125: #{asym_gnn_forward.1} parent=120 // loop_body
      %v173 = vld [vmem:[%s171] sm:%s164]
      %174 = vst [vmem:[%s172] sm:%s164] %v173
    $region126: #{asym_gnn_forward.1} parent=120 // loop_footer
      %s170 = sadd.s32 1, %s166
    $region127: #{asym_gnn_forward.1} parent=120 // loop_footer_branch
      %165 = sbr.rel target = $region123
    $region128: #{asym_gnn_forward.1} parent=120 // loop_exit
      _
  $region121: #{asym_gnn_forward.1} parent=0 // pred_fallthru
    _
  // Predicated region
  $region144: #{asym_gnn_forward.1} parent=0 // pred_check
    _
  $region145: #{asym_gnn_forward.1} parent=0 // pred_check_branch
    %210 = sbr.rel (0) target = $region147
  $region146: #{asym_gnn_forward.1} parent=0 // pred_region
    %211 = vsyncadd %s155, 1024
  $region147: #{asym_gnn_forward.1} parent=0 // pred_fallthru
    _
  %s212 = smul.u32 4, 16
  %s213 = smul.u32 %s212, 1
  %s214 = sshll.u32 %s213, 4
  %215 = dma.done %s41, %s214
  %v216 = vld [vmem:[%s2] sm:$0xf]
  %v217 = vld [vmem:[%s2 + $0x4] sm:$0xf]
  %v218 = vld [vmem:[%s2 + $0x8] sm:$0xf]
  %v219 = vld [vmem:[%s2 + $0xc] sm:$0xf]
  %v220 = vld [vmem:[%s2 + $0x10] sm:$0xf]
  %v221 = vld [vmem:[%s2 + $0x14] sm:$0xf]
  %v222 = vld [vmem:[%s2 + $0x18] sm:$0xf]
  %v223 = vld [vmem:[%s2 + $0x1c] sm:$0xf]
  %v224 = vld [vmem:[%s2 + $0x20] sm:$0xf]
  %v225 = vld [vmem:[%s2 + $0x24] sm:$0xf]
  %v226 = vld [vmem:[%s2 + $0x28] sm:$0xf]
  %v227 = vld [vmem:[%s2 + $0x2c] sm:$0xf]
  %v228 = vld [vmem:[%s2 + $0x30] sm:$0xf]
  %v229 = vld [vmem:[%s2 + $0x34] sm:$0xf]
  %v230 = vld [vmem:[%s2 + $0x38] sm:$0xf]
  %v231 = vld [vmem:[%s2 + $0x3c] sm:$0xf]
  %v232 = vld [vmem:[%s3] sm:$0x1]
  %v233 = vld [vmem:[%s4] sm:$0xf]
  %v234 = vld [vmem:[%s4 + $0x4] sm:$0xf]
  %v235 = vld [vmem:[%s4 + $0x8] sm:$0xf]
  %v236 = vld [vmem:[%s4 + $0xc] sm:$0xf]
  %v237 = vld [vmem:[%s4 + $0x10] sm:$0xf]
  %v238 = vld [vmem:[%s4 + $0x14] sm:$0xf]
  %v239 = vld [vmem:[%s4 + $0x18] sm:$0xf]
  %v240 = vld [vmem:[%s4 + $0x1c] sm:$0xf]
  %v241 = vld [vmem:[%s4 + $0x20] sm:$0xf]
  %v242 = vld [vmem:[%s4 + $0x24] sm:$0xf]
  %v243 = vld [vmem:[%s4 + $0x28] sm:$0xf]
  %v244 = vld [vmem:[%s4 + $0x2c] sm:$0xf]
  %v245 = vld [vmem:[%s4 + $0x30] sm:$0xf]
  %v246 = vld [vmem:[%s4 + $0x34] sm:$0xf]
  %v247 = vld [vmem:[%s4 + $0x38] sm:$0xf]
  %v248 = vld [vmem:[%s4 + $0x3c] sm:$0xf]
  %v249 = vld [vmem:[#allocation4] sm:$0xff]
  %v250 = vld [vmem:[#allocation4 + $0x8] sm:$0xff]
  %v251 = vld [vmem:[#allocation4 + $0x10] sm:$0xff]
  %v252 = vld [vmem:[#allocation4 + $0x18] sm:$0xff]
  %v253 = vld [vmem:[#allocation4 + $0x20] sm:$0xff]
  %v254 = vld [vmem:[#allocation4 + $0x28] sm:$0xff]
  %v255 = vld [vmem:[#allocation4 + $0x30] sm:$0xff]
  %v256 = vld [vmem:[#allocation4 + $0x38] sm:$0xff]
  %v273 = vunpack.c.l.b16 %v216
  %v274 = vunpack.c.l.b16 %v217
  %v275 = vunpack.c.l.b16 %v218
  %v276 = vunpack.c.l.b16 %v219
  %v277 = vunpack.c.l.b16 %v220
  %v278 = vunpack.c.l.b16 %v221
  %v279 = vunpack.c.l.b16 %v222
  %v280 = vunpack.c.l.b16 %v223
  %v281 = vunpack.c.l.b16 %v224
  %v282 = vunpack.c.l.b16 %v225
  %v283 = vunpack.c.l.b16 %v226
  %v284 = vunpack.c.l.b16 %v227
  %v285 = vunpack.c.l.b16 %v228
  %v286 = vunpack.c.l.b16 %v229
  %v287 = vunpack.c.l.b16 %v230
  %v288 = vunpack.c.l.b16 %v231
  %v289 = vpack.c.b16 %v274, %v273
  %v290 = vpack.c.b16 %v276, %v275
  %v291 = vpack.c.b16 %v278, %v277
  %v292 = vpack.c.b16 %v280, %v279
  %v293 = vpack.c.b16 %v282, %v281
  %v294 = vpack.c.b16 %v284, %v283
  %v295 = vpack.c.b16 %v286, %v285
  %v296 = vpack.c.b16 %v288, %v287
  %305 = vmatprep.subr.bf16.mxu0 0
  %306 = vmatpush1.bf16.msra.mxu0 %v289
  %307 = vmatprep.subr.bf16.mxu0 0
  %308 = vmatpush1.bf16.msra.mxu0 %v290
  %309 = vmatprep.subr.bf16.mxu0 0
  %310 = vmatpush1.bf16.msra.mxu0 %v291
  %311 = vmatprep.subr.bf16.mxu0 0
  %312 = vmatpush1.bf16.msra.mxu0 %v292
  %313 = vmatprep.subr.bf16.mxu0 0
  %314 = vmatpush1.bf16.msra.mxu0 %v293
  %315 = vmatprep.subr.bf16.mxu0 0
  %316 = vmatpush1.bf16.msra.mxu0 %v294
  %317 = vmatprep.subr.bf16.mxu0 0
  %318 = vmatpush1.bf16.msra.mxu0 %v295
  %319 = vmatprep.subr.bf16.mxu0 0
  %320 = vmatpush1.bf16.msra.mxu0 %v296
  %321 = vmatprep.subr.bf16.mxu0 0
  %322 = vmatpush1.bf16.msra.mxu0 0
  %323 = vmatprep.subr.bf16.mxu0 0
  %324 = vmatpush1.bf16.msra.mxu0 0
  %325 = vmatprep.subr.bf16.mxu0 0
  %326 = vmatpush1.bf16.msra.mxu0 0
  %327 = vmatprep.subr.bf16.mxu0 0
  %328 = vmatpush1.bf16.msra.mxu0 0
  %329 = vmatprep.subr.bf16.mxu0 0
  %330 = vmatpush1.bf16.msra.mxu0 0
  %331 = vmatprep.subr.bf16.mxu0 0
  %332 = vmatpush1.bf16.msra.mxu0 0
  %333 = vmatprep.subr.bf16.mxu0 0
  %334 = vmatpush1.bf16.msra.mxu0 0
  %335 = vmatprep.subr.bf16.mxu0 0
  %336 = vmatpush1.bf16.msra.mxu0 0
  %337 = vmatprep.mubr.bf16.mxu0 0
  %338 = vmatmul.mubr.bf16.gmra.mrb[0].mxu0 %v249
  %v339 = vpop.f32.mrb[0].mxu0
  %v340 = vadd.f32 0.0, %v339
  %v341 = vpop.f32.mrb[0].mxu0
  %v342 = vpop.f32.mrb[0].mxu0
  %v343 = vadd.f32 0.0, %v342
  %v344 = vpop.f32.mrb[0].mxu0
  %345 = vmatprep.mubr.bf16.mxu0 0
  %346 = vmatmul.mubr.bf16.gmra.mrb[0].mxu0 %v250
  %v347 = vpop.f32.mrb[0].mxu0
  %v348 = vadd.f32 0.0, %v347
  %v349 = vpop.f32.mrb[0].mxu0
  %v350 = vpop.f32.mrb[0].mxu0
  %v351 = vadd.f32 0.0, %v350
  %v352 = vpop.f32.mrb[0].mxu0
  %353 = vmatprep.mubr.bf16.mxu0 0
  %354 = vmatmul.mubr.bf16.gmra.mrb[0].mxu0 %v251
  %v355 = vpop.f32.mrb[0].mxu0
  %v356 = vadd.f32 0.0, %v355
  %v357 = vpop.f32.mrb[0].mxu0
  %v358 = vpop.f32.mrb[0].mxu0
  %v359 = vadd.f32 0.0, %v358
  %v360 = vpop.f32.mrb[0].mxu0
  %361 = vmatprep.mubr.bf16.mxu0 0
  %362 = vmatmul.mubr.bf16.gmra.mrb[0].mxu0 %v252
  %v363 = vpop.f32.mrb[0].mxu0
  %v364 = vadd.f32 0.0, %v363
  %v365 = vpop.f32.mrb[0].mxu0
  %v366 = vpop.f32.mrb[0].mxu0
  %v367 = vadd.f32 0.0, %v366
  %v368 = vpop.f32.mrb[0].mxu0
  %369 = vmatprep.mubr.bf16.mxu0 0
  %370 = vmatmul.mubr.bf16.gmra.mrb[0].mxu0 %v253
  %v371 = vpop.f32.mrb[0].mxu0
  %v372 = vadd.f32 0.0, %v371
  %v373 = vpop.f32.mrb[0].mxu0
  %v374 = vpop.f32.mrb[0].mxu0
  %v375 = vadd.f32 0.0, %v374
  %v376 = vpop.f32.mrb[0].mxu0
  %377 = vmatprep.mubr.bf16.mxu0 0
  %378 = vmatmul.mubr.bf16.gmra.mrb[0].mxu0 %v254
  %v379 = vpop.f32.mrb[0].mxu0
  %v380 = vadd.f32 0.0, %v379
  %v381 = vpop.f32.mrb[0].mxu0
  %v382 = vpop.f32.mrb[0].mxu0
  %v383 = vadd.f32 0.0, %v382
  %v384 = vpop.f32.mrb[0].mxu0
  %385 = vmatprep.mubr.bf16.mxu0 0
  %386 = vmatmul.mubr.bf16.gmra.mrb[0].mxu0 %v255
  %v387 = vpop.f32.mrb[0].mxu0
  %v388 = vadd.f32 0.0, %v387
  %v389 = vpop.f32.mrb[0].mxu0
  %v390 = vpop.f32.mrb[0].mxu0
  %v391 = vadd.f32 0.0, %v390
  %v392 = vpop.f32.mrb[0].mxu0
  %393 = vmatprep.mubr.bf16.mxu0 0
  %394 = vmatmul.mubr.bf16.gmra.mrb[0].mxu0 %v256
  %v395 = vpop.f32.mrb[0].mxu0
  %v396 = vadd.f32 0.0, %v395
  %v397 = vpop.f32.mrb[0].mxu0
  %v398 = vpop.f32.mrb[0].mxu0
  %v399 = vadd.f32 0.0, %v398
  %v400 = vpop.f32.mrb[0].mxu0
  %401 = vdwg.mxu0
  %v402 = vpack.c.bf16 %v343, %v340
  %v403 = vpack.c.bf16 %v351, %v348
  %v404 = vpack.c.bf16 %v359, %v356
  %v405 = vpack.c.bf16 %v367, %v364
  %v406 = vpack.c.bf16 %v375, %v372
  %v407 = vpack.c.bf16 %v383, %v380
  %v408 = vpack.c.bf16 %v391, %v388
  %v409 = vpack.c.bf16 %v399, %v396
  %410 = vst [vmem:[#allocation4] sm:$0xff] %v402
  %411 = vst [vmem:[#allocation4 + $0x8] sm:$0xff] %v403
  %412 = vst [vmem:[#allocation4 + $0x10] sm:$0xff] %v404
  %413 = vst [vmem:[#allocation4 + $0x18] sm:$0xff] %v405
  %414 = vst [vmem:[#allocation4 + $0x20] sm:$0xff] %v406
  %415 = vst [vmem:[#allocation4 + $0x28] sm:$0xff] %v407
  %416 = vst [vmem:[#allocation4 + $0x30] sm:$0xff] %v408
  %417 = vst [vmem:[#allocation4 + $0x38] sm:$0xff] %v409
  %s418 = scalar_lea.vmem [#allocation2], 128
  %s419 = scalar_lea.sflag [#allocation3], 2
  %p421 = scmp.lt.u32.totalorder 64, 8
  %p422 = pneg %p421
  // Predicated region
  $region148: #{asym_gnn_forward.1} parent=0 // pred_check
    _
  $region149: #{asym_gnn_forward.1} parent=0 // pred_check_branch
    %424 = sbr.rel (%p421) target = $region151
  $region150: #{asym_gnn_forward.1} parent=0 // pred_region
    %s439 = sand.u32 64, 7
    %p440 = scmp.eq.s32.totalorder %s439, 0
    // Predicated region
    $region163: #{asym_gnn_forward.1} parent=150 // pred_check
      %p441 = pneg %p440
    $region164: #{asym_gnn_forward.1} parent=150 // pred_check_branch
      %443 = sbr.rel (%p441) target = $region166
    $region165: #{asym_gnn_forward.1} parent=150 // pred_region
      loop: start=0, step=1, limit=1
      $region167: #{asym_gnn_forward.1} parent=165 // loop_pre_header
        _
      $region168: #{asym_gnn_forward.1} parent=165 // loop_header
        %s445 = sphi 0, %s449
        %p446 = scmp.ge.s32.totalorder %s445, 1
        %s450 = sphi %s0, %s0
        %s451 = sphi %s418, %s418
      $region169: #{asym_gnn_forward.1} parent=165 // loop_header_branch
        %448 = sbr.rel (%p446) target = $region173
      $region170: #{asym_gnn_forward.1} parent=165 // loop_body
        %v452 = vld [vmem:[%s450] sm:$0xff]
        %453 = vst [vmem:[%s451] sm:$0xff] %v452
        %v454 = vld [vmem:[%s450 + $0x8] sm:$0xff]
        %455 = vst [vmem:[%s451 + $0x8] sm:$0xff] %v454
        %v456 = vld [vmem:[%s450 + $0x10] sm:$0xff]
        %457 = vst [vmem:[%s451 + $0x10] sm:$0xff] %v456
        %v458 = vld [vmem:[%s450 + $0x18] sm:$0xff]
        %459 = vst [vmem:[%s451 + $0x18] sm:$0xff] %v458
        %v460 = vld [vmem:[%s450 + $0x20] sm:$0xff]
        %461 = vst [vmem:[%s451 + $0x20] sm:$0xff] %v460
        %v462 = vld [vmem:[%s450 + $0x28] sm:$0xff]
        %463 = vst [vmem:[%s451 + $0x28] sm:$0xff] %v462
        %v464 = vld [vmem:[%s450 + $0x30] sm:$0xff]
        %465 = vst [vmem:[%s451 + $0x30] sm:$0xff] %v464
        %v466 = vld [vmem:[%s450 + $0x38] sm:$0xff]
        %467 = vst [vmem:[%s451 + $0x38] sm:$0xff] %v466
      $region171: #{asym_gnn_forward.1} parent=165 // loop_footer
        %s449 = sadd.s32 1, %s445
      $region172: #{asym_gnn_forward.1} parent=165 // loop_footer_branch
        %444 = sbr.rel target = $region168
      $region173: #{asym_gnn_forward.1} parent=165 // loop_exit
        _
    $region166: #{asym_gnn_forward.1} parent=150 // pred_fallthru
      _
    %p468 = pneg %p440
    // Predicated region
    $region174: #{asym_gnn_forward.1} parent=150 // pred_check
      _
    $region175: #{asym_gnn_forward.1} parent=150 // pred_check_branch
      %470 = sbr.rel (%p440) target = $region177
    $region176: #{asym_gnn_forward.1} parent=150 // pred_region
      %s471 = sand.u32 64, 7
    $region177: #{asym_gnn_forward.1} parent=150 // pred_fallthru
      _
  $region151: #{asym_gnn_forward.1} parent=0 // pred_fallthru
    _
  // Predicated region
  $region152: #{asym_gnn_forward.1} parent=0 // pred_check
    %p425 = pneg %p421
  $region153: #{asym_gnn_forward.1} parent=0 // pred_check_branch
    %427 = sbr.rel (%p425) target = $region155
  $region154: #{asym_gnn_forward.1} parent=0 // pred_region
    %s428 = sshllo.u32 0, 64
    loop: start=0, step=1, limit=1
    $region156: #{asym_gnn_forward.1} parent=154 // loop_pre_header
      _
    $region157: #{asym_gnn_forward.1} parent=154 // loop_header
      %s430 = sphi 0, %s434
      %p431 = scmp.ge.s32.totalorder %s430, 1
      %s435 = sphi %s0, %s0
      %s436 = sphi %s418, %s418
    $region158: #{asym_gnn_forward.1} parent=154 // loop_header_branch
      %433 = sbr.rel (%p431) target = $region162
    $region159: #{asym_gnn_forward.1} parent=154 // loop_body
      %v437 = vld [vmem:[%s435] sm:%s428]
      %438 = vst [vmem:[%s436] sm:%s428] %v437
    $region160: #{asym_gnn_forward.1} parent=154 // loop_footer
      %s434 = sadd.s32 1, %s430
    $region161: #{asym_gnn_forward.1} parent=154 // loop_footer_branch
      %429 = sbr.rel target = $region157
    $region162: #{asym_gnn_forward.1} parent=154 // loop_exit
      _
  $region155: #{asym_gnn_forward.1} parent=0 // pred_fallthru
    _
  // Predicated region
  $region178: #{asym_gnn_forward.1} parent=0 // pred_check
    _
  $region179: #{asym_gnn_forward.1} parent=0 // pred_check_branch
    %474 = sbr.rel (0) target = $region181
  $region180: #{asym_gnn_forward.1} parent=0 // pred_region
    %475 = vsyncadd %s419, 1024
  $region181: #{asym_gnn_forward.1} parent=0 // pred_fallthru
    _
  %s476 = sshll.u32 %s213, 4
  %477 = dma.done [#allocation3], %s476
  %v478 = vld [vmem:[#allocation2] sm:$0xff]
  %v479 = vld [vmem:[#allocation2 + $0x8] sm:$0xff]
  %v480 = vld [vmem:[#allocation2 + $0x10] sm:$0xff]
  %v481 = vld [vmem:[#allocation2 + $0x18] sm:$0xff]
  %v482 = vld [vmem:[#allocation2 + $0x20] sm:$0xff]
  %v483 = vld [vmem:[#allocation2 + $0x28] sm:$0xff]
  %v484 = vld [vmem:[#allocation2 + $0x30] sm:$0xff]
  %v485 = vld [vmem:[#allocation2 + $0x38] sm:$0xff]
  %v486 = vld [vmem:[#allocation4] sm:$0xff]
  %v487 = vld [vmem:[#allocation4 + $0x8] sm:$0xff]
  %v488 = vld [vmem:[#allocation4 + $0x10] sm:$0xff]
  %v489 = vld [vmem:[#allocation4 + $0x18] sm:$0xff]
  %v490 = vld [vmem:[#allocation4 + $0x20] sm:$0xff]
  %v491 = vld [vmem:[#allocation4 + $0x28] sm:$0xff]
  %v492 = vld [vmem:[#allocation4 + $0x30] sm:$0xff]
  %v493 = vld [vmem:[#allocation4 + $0x38] sm:$0xff]
  %v495 = vlaneseq
  %v496 = vshrl.u32 %v495, 7
  %v497 = vsub.s32 0, %v496
  %v498 = vrot.slane %v232, %v497
  %500 = vmatprep.subr.bf16.mxu0 0
  %501 = vmatpush1.bf16.msra.mxu0 %v486
  %502 = vmatprep.subr.bf16.mxu0 0
  %503 = vmatpush1.bf16.msra.mxu0 %v487
  %504 = vmatprep.subr.bf16.mxu0 0
  %505 = vmatpush1.bf16.msra.mxu0 %v488
  %506 = vmatprep.subr.bf16.mxu0 0
  %507 = vmatpush1.bf16.msra.mxu0 %v489
  %508 = vmatprep.subr.bf16.mxu0 0
  %509 = vmatpush1.bf16.msra.mxu0 %v490
  %510 = vmatprep.subr.bf16.mxu0 0
  %511 = vmatpush1.bf16.msra.mxu0 %v491
  %512 = vmatprep.subr.bf16.mxu0 0
  %513 = vmatpush1.bf16.msra.mxu0 %v492
  %514 = vmatprep.subr.bf16.mxu0 0
  %515 = vmatpush1.bf16.msra.mxu0 %v493
  %516 = vmatprep.subr.bf16.mxu0 0
  %517 = vmatpush1.bf16.msra.mxu0 0
  %518 = vmatprep.subr.bf16.mxu0 0
  %519 = vmatpush1.bf16.msra.mxu0 0
  %520 = vmatprep.subr.bf16.mxu0 0
  %521 = vmatpush1.bf16.msra.mxu0 0
  %522 = vmatprep.subr.bf16.mxu0 0
  %523 = vmatpush1.bf16.msra.mxu0 0
  %524 = vmatprep.subr.bf16.mxu0 0
  %525 = vmatpush1.bf16.msra.mxu0 0
  %526 = vmatprep.subr.bf16.mxu0 0
  %527 = vmatpush1.bf16.msra.mxu0 0
  %528 = vmatprep.subr.bf16.mxu0 0
  %529 = vmatpush1.bf16.msra.mxu0 0
  %530 = vmatprep.subr.bf16.mxu0 0
  %531 = vmatpush1.bf16.msra.mxu0 0
  %532 = vmatprep.mubr.bf16.mxu0 0
  %533 = vmatmul.mubr.bf16.gmra.mrb[0].mxu0 %v478
  %v534 = vpop.f32.mrb[0].mxu0
  %v535 = vadd.f32 %v498, %v534
  %v536 = vpop.f32.mrb[0].mxu0
  %v537 = vpop.f32.mrb[0].mxu0
  %v538 = vadd.f32 %v498, %v537
  %v539 = vpop.f32.mrb[0].mxu0
  %540 = vmatprep.mubr.bf16.mxu0 0
  %541 = vmatmul.mubr.bf16.gmra.mrb[0].mxu0 %v479
  %v542 = vpop.f32.mrb[0].mxu0
  %v543 = vadd.f32 %v498, %v542
  %v544 = vpop.f32.mrb[0].mxu0
  %v545 = vpop.f32.mrb[0].mxu0
  %v546 = vadd.f32 %v498, %v545
  %v547 = vpop.f32.mrb[0].mxu0
  %548 = vmatprep.mubr.bf16.mxu0 0
  %549 = vmatmul.mubr.bf16.gmra.mrb[0].mxu0 %v480
  %v550 = vpop.f32.mrb[0].mxu0
  %v551 = vadd.f32 %v498, %v550
  %v552 = vpop.f32.mrb[0].mxu0
  %v553 = vpop.f32.mrb[0].mxu0
  %v554 = vadd.f32 %v498, %v553
  %v555 = vpop.f32.mrb[0].mxu0
  %556 = vmatprep.mubr.bf16.mxu0 0
  %557 = vmatmul.mubr.bf16.gmra.mrb[0].mxu0 %v481
  %v558 = vpop.f32.mrb[0].mxu0
  %v559 = vadd.f32 %v498, %v558
  %v560 = vpop.f32.mrb[0].mxu0
  %v561 = vpop.f32.mrb[0].mxu0
  %v562 = vadd.f32 %v498, %v561
  %v563 = vpop.f32.mrb[0].mxu0
  %564 = vmatprep.mubr.bf16.mxu0 0
  %565 = vmatmul.mubr.bf16.gmra.mrb[0].mxu0 %v482
  %v566 = vpop.f32.mrb[0].mxu0
  %v567 = vadd.f32 %v498, %v566
  %v568 = vpop.f32.mrb[0].mxu0
  %v569 = vpop.f32.mrb[0].mxu0
  %v570 = vadd.f32 %v498, %v569
  %v571 = vpop.f32.mrb[0].mxu0
  %572 = vmatprep.mubr.bf16.mxu0 0
  %573 = vmatmul.mubr.bf16.gmra.mrb[0].mxu0 %v483
  %v574 = vpop.f32.mrb[0].mxu0
  %v575 = vadd.f32 %v498, %v574
  %v576 = vpop.f32.mrb[0].mxu0
  %v577 = vpop.f32.mrb[0].mxu0
  %v578 = vadd.f32 %v498, %v577
  %v579 = vpop.f32.mrb[0].mxu0
  %580 = vmatprep.mubr.bf16.mxu0 0
  %581 = vmatmul.mubr.bf16.gmra.mrb[0].mxu0 %v484
  %v582 = vpop.f32.mrb[0].mxu0
  %v583 = vadd.f32 %v498, %v582
  %v584 = vpop.f32.mrb[0].mxu0
  %v585 = vpop.f32.mrb[0].mxu0
  %v586 = vadd.f32 %v498, %v585
  %v587 = vpop.f32.mrb[0].mxu0
  %588 = vmatprep.mubr.bf16.mxu0 0
  %589 = vmatmul.mubr.bf16.gmra.mrb[0].mxu0 %v485
  %v590 = vpop.f32.mrb[0].mxu0
  %v591 = vadd.f32 %v498, %v590
  %v592 = vpop.f32.mrb[0].mxu0
  %v593 = vpop.f32.mrb[0].mxu0
  %v594 = vadd.f32 %v498, %v593
  %v595 = vpop.f32.mrb[0].mxu0
  %596 = vdwg.mxu0
  %v597 = vlaneseq
  %v598 = vshrl.u32 %v597, 7
  %v599 = vadd.s32 %v598, 8
  %v600 = vadd.s32 %v598, 16
  %v601 = vadd.s32 %v598, 24
  %v602 = vadd.s32 %v598, 32
  %v603 = vadd.s32 %v598, 40
  %v604 = vadd.s32 %v598, 48
  %v605 = vadd.s32 %v598, 56
  %v606 = vadd.s32 %v598, 64
  %v607 = vadd.s32 %v598, 72
  %v608 = vadd.s32 %v598, 80
  %v609 = vadd.s32 %v598, 88
  %v610 = vadd.s32 %v598, 96
  %v611 = vadd.s32 %v598, 104
  %v612 = vadd.s32 %v598, 112
  %v613 = vadd.s32 %v598, 120
  %vm614 = vcmp.lt.s32.totalorder %v598, 16
  %vm615 = vcmp.lt.s32.totalorder %v599, 16
  %vm616 = vcmp.lt.s32.totalorder %v600, 16
  %vm617 = vcmp.lt.s32.totalorder %v601, 16
  %vm618 = vcmp.lt.s32.totalorder %v602, 16
  %vm619 = vcmp.lt.s32.totalorder %v603, 16
  %vm620 = vcmp.lt.s32.totalorder %v604, 16
  %vm621 = vcmp.lt.s32.totalorder %v605, 16
  %vm622 = vcmp.lt.s32.totalorder %v606, 16
  %vm623 = vcmp.lt.s32.totalorder %v607, 16
  %vm624 = vcmp.lt.s32.totalorder %v608, 16
  %vm625 = vcmp.lt.s32.totalorder %v609, 16
  %vm626 = vcmp.lt.s32.totalorder %v610, 16
  %vm627 = vcmp.lt.s32.totalorder %v611, 16
  %vm628 = vcmp.lt.s32.totalorder %v612, 16
  %vm629 = vcmp.lt.s32.totalorder %v613, 16
  %v630 = vsel %vm614, 1, 0
  %v631 = vsel %vm615, 1, 0
  %v632 = vsel %vm616, 1, 0
  %v633 = vsel %vm617, 1, 0
  %v634 = vsel %vm618, 1, 0
  %v635 = vsel %vm619, 1, 0
  %v636 = vsel %vm620, 1, 0
  %v637 = vsel %vm621, 1, 0
  %v638 = vsel %vm622, 1, 0
  %v639 = vsel %vm623, 1, 0
  %v640 = vsel %vm624, 1, 0
  %v641 = vsel %vm625, 1, 0
  %v642 = vsel %vm626, 1, 0
  %v643 = vsel %vm627, 1, 0
  %v644 = vsel %vm628, 1, 0
  %v645 = vsel %vm629, 1, 0
  %v646 = vcvt.s32.f32 %v630
  %v647 = vcvt.s32.f32 %v631
  %v648 = vcvt.s32.f32 %v632
  %v649 = vcvt.s32.f32 %v633
  %v650 = vcvt.s32.f32 %v634
  %v651 = vcvt.s32.f32 %v635
  %v652 = vcvt.s32.f32 %v636
  %v653 = vcvt.s32.f32 %v637
  %v654 = vcvt.s32.f32 %v638
  %v655 = vcvt.s32.f32 %v639
  %v656 = vcvt.s32.f32 %v640
  %v657 = vcvt.s32.f32 %v641
  %v658 = vcvt.s32.f32 %v642
  %v659 = vcvt.s32.f32 %v643
  %v660 = vcvt.s32.f32 %v644
  %v661 = vcvt.s32.f32 %v645
  %v662 = vmul.f32 %v535, %v646
  %v663 = vmul.f32 %v538, %v647
  %v664 = vmul.f32 %v543, %v648
  %v665 = vmul.f32 %v546, %v649
  %v666 = vmul.f32 %v551, %v650
  %v667 = vmul.f32 %v554, %v651
  %v668 = vmul.f32 %v559, %v652
  %v669 = vmul.f32 %v562, %v653
  %v670 = vmul.f32 %v567, %v654
  %v671 = vmul.f32 %v570, %v655
  %v672 = vmul.f32 %v575, %v656
  %v673 = vmul.f32 %v578, %v657
  %v674 = vmul.f32 %v583, %v658
  %v675 = vmul.f32 %v586, %v659
  %v676 = vmul.f32 %v591, %v660
  %v677 = vmul.f32 %v594, %v661
  %v678 = vadd.f32 %v662, %v663
  %v679 = vadd.f32 %v678, %v664
  %v680 = vadd.f32 %v679, %v665
  %v681 = vadd.f32 %v680, %v666
  %v682 = vadd.f32 %v681, %v667
  %v683 = vadd.f32 %v682, %v668
  %v684 = vadd.f32 %v683, %v669
  %v685 = vadd.f32 %v684, %v670
  %v686 = vadd.f32 %v685, %v671
  %v687 = vadd.f32 %v686, %v672
  %v688 = vadd.f32 %v687, %v673
  %v689 = vadd.f32 %v688, %v674
  %v690 = vadd.f32 %v689, %v675
  %v691 = vadd.f32 %v690, %v676
  %v692 = vadd.f32 %v691, %v677
  %v693 = vrot.slane %v692, 4
  %v694 = vadd.f32 %v692, %v693
  %v695 = vrot.slane %v694, 2
  %v696 = vadd.f32 %v694, %v695
  %v697 = vrot.slane %v696, 1
  %v698 = vadd.f32 %v696, %v697
  %v699 = vadd.f32 %v698, 0.0
  %v700 = vmul.f32 %v535, %v662
  %v701 = vmul.f32 %v538, %v663
  %v702 = vmul.f32 %v543, %v664
  %v703 = vmul.f32 %v546, %v665
  %v704 = vmul.f32 %v551, %v666
  %v705 = vmul.f32 %v554, %v667
  %v706 = vmul.f32 %v559, %v668
  %v707 = vmul.f32 %v562, %v669
  %v708 = vmul.f32 %v567, %v670
  %v709 = vmul.f32 %v570, %v671
  %v710 = vmul.f32 %v575, %v672
  %v711 = vmul.f32 %v578, %v673
  %v712 = vmul.f32 %v583, %v674
  %v713 = vmul.f32 %v586, %v675
  %v714 = vmul.f32 %v591, %v676
  %v715 = vmul.f32 %v594, %v677
  %v716 = vadd.f32 %v700, %v701
  %v717 = vadd.f32 %v716, %v702
  %v718 = vadd.f32 %v717, %v703
  %v719 = vadd.f32 %v718, %v704
  %v720 = vadd.f32 %v719, %v705
  %v721 = vadd.f32 %v720, %v706
  %v722 = vadd.f32 %v721, %v707
  %v723 = vadd.f32 %v722, %v708
  %v724 = vadd.f32 %v723, %v709
  %v725 = vadd.f32 %v724, %v710
  %v726 = vadd.f32 %v725, %v711
  %v727 = vadd.f32 %v726, %v712
  %v728 = vadd.f32 %v727, %v713
  %v729 = vadd.f32 %v728, %v714
  %v730 = vadd.f32 %v729, %v715
  %v731 = vrot.slane %v730, 4
  %v732 = vadd.f32 %v730, %v731
  %v733 = vrot.slane %v732, 2
  %v734 = vadd.f32 %v732, %v733
  %v735 = vrot.slane %v734, 1
  %v736 = vadd.f32 %v734, %v735
  %v737 = vadd.f32 %v736, 0.0
  %738 = vst [vmem:[#allocation5] sm:$0xff] %v535
  %739 = vst [vmem:[#allocation5 + $0x8] sm:$0xff] %v538
  %740 = vst [vmem:[#allocation5 + $0x10] sm:$0xff] %v543
  %741 = vst [vmem:[#allocation5 + $0x18] sm:$0xff] %v546
  %742 = vst [vmem:[#allocation5 + $0x20] sm:$0xff] %v551
  %743 = vst [vmem:[#allocation5 + $0x28] sm:$0xff] %v554
  %744 = vst [vmem:[#allocation5 + $0x30] sm:$0xff] %v559
  %745 = vst [vmem:[#allocation5 + $0x38] sm:$0xff] %v562
  %746 = vst [vmem:[#allocation5 + $0x40] sm:$0xff] %v567
  %747 = vst [vmem:[#allocation5 + $0x48] sm:$0xff] %v570
  %748 = vst [vmem:[#allocation5 + $0x50] sm:$0xff] %v575
  %749 = vst [vmem:[#allocation5 + $0x58] sm:$0xff] %v578
  %750 = vst [vmem:[#allocation5 + $0x60] sm:$0xff] %v583
  %751 = vst [vmem:[#allocation5 + $0x68] sm:$0xff] %v586
  %752 = vst [vmem:[#allocation5 + $0x70] sm:$0xff] %v591
  %753 = vst [vmem:[#allocation5 + $0x78] sm:$0xff] %v594
  %v754 = vmul.f32 %v699, 0.0625
  %v755 = vmul.f32 %v737, 0.0625
  %v756 = vmul.f32 %v754, %v754
  %v757 = vsub.f32 %v755, %v756
  %v758 = vmax.f32 %v757, 0.0
  %v759 = vadd.f32 %v758, 1e-05
  %v760 = vrsqrt.pop %v759
  %v761 = vld [vmem:[#allocation5] sm:$0xff]
  %v762 = vld [vmem:[#allocation5 + $0x8] sm:$0xff]
  %v763 = vld [vmem:[#allocation5 + $0x10] sm:$0xff]
  %v764 = vld [vmem:[#allocation5 + $0x18] sm:$0xff]
  %v765 = vld [vmem:[#allocation5 + $0x20] sm:$0xff]
  %v766 = vld [vmem:[#allocation5 + $0x28] sm:$0xff]
  %v767 = vld [vmem:[#allocation5 + $0x30] sm:$0xff]
  %v768 = vld [vmem:[#allocation5 + $0x38] sm:$0xff]
  %v769 = vld [vmem:[#allocation5 + $0x40] sm:$0xff]
  %v770 = vld [vmem:[#allocation5 + $0x48] sm:$0xff]
  %v771 = vld [vmem:[#allocation5 + $0x50] sm:$0xff]
  %v772 = vld [vmem:[#allocation5 + $0x58] sm:$0xff]
  %v773 = vld [vmem:[#allocation5 + $0x60] sm:$0xff]
  %v774 = vld [vmem:[#allocation5 + $0x68] sm:$0xff]
  %v775 = vld [vmem:[#allocation5 + $0x70] sm:$0xff]
  %v776 = vld [vmem:[#allocation5 + $0x78] sm:$0xff]
  %v777 = vsub.f32 %v761, %v754
  %v778 = vsub.f32 %v762, %v754
  %v779 = vsub.f32 %v763, %v754
  %v780 = vsub.f32 %v764, %v754
  %v781 = vsub.f32 %v765, %v754
  %v782 = vsub.f32 %v766, %v754
  %v783 = vsub.f32 %v767, %v754
  %v784 = vsub.f32 %v768, %v754
  %v785 = vsub.f32 %v769, %v754
  %v786 = vsub.f32 %v770, %v754
  %v787 = vsub.f32 %v771, %v754
  %v788 = vsub.f32 %v772, %v754
  %v789 = vsub.f32 %v773, %v754
  %v790 = vsub.f32 %v774, %v754
  %v791 = vsub.f32 %v775, %v754
  %v792 = vsub.f32 %v776, %v754
  %v793 = vmul.f32 %v777, %v760
  %v794 = vmul.f32 %v778, %v760
  %v795 = vmul.f32 %v779, %v760
  %v796 = vmul.f32 %v780, %v760
  %v797 = vmul.f32 %v781, %v760
  %v798 = vmul.f32 %v782, %v760
  %v799 = vmul.f32 %v783, %v760
  %v800 = vmul.f32 %v784, %v760
  %v801 = vmul.f32 %v785, %v760
  %v802 = vmul.f32 %v786, %v760
  %v803 = vmul.f32 %v787, %v760
  %v804 = vmul.f32 %v788, %v760
  %v805 = vmul.f32 %v789, %v760
  %v806 = vmul.f32 %v790, %v760
  %v807 = vmul.f32 %v791, %v760
  %v808 = vmul.f32 %v792, %v760
  %v809 = vpack.c.bf16 %v794, %v793
  %v810 = vpack.c.bf16 %v796, %v795
  %v811 = vpack.c.bf16 %v798, %v797
  %v812 = vpack.c.bf16 %v800, %v799
  %v813 = vpack.c.bf16 %v802, %v801
  %v814 = vpack.c.bf16 %v804, %v803
  %v815 = vpack.c.bf16 %v806, %v805
  %v816 = vpack.c.bf16 %v808, %v807
  %v833 = vunpack.c.l.b16 %v233
  %v834 = vunpack.c.l.b16 %v234
  %v835 = vunpack.c.l.b16 %v235
  %v836 = vunpack.c.l.b16 %v236
  %v837 = vunpack.c.l.b16 %v237
  %v838 = vunpack.c.l.b16 %v238
  %v839 = vunpack.c.l.b16 %v239
  %v840 = vunpack.c.l.b16 %v240
  %v841 = vunpack.c.l.b16 %v241
  %v842 = vunpack.c.l.b16 %v242
  %v843 = vunpack.c.l.b16 %v243
  %v844 = vunpack.c.l.b16 %v244
  %v845 = vunpack.c.l.b16 %v245
  %v846 = vunpack.c.l.b16 %v246
  %v847 = vunpack.c.l.b16 %v247
  %v848 = vunpack.c.l.b16 %v248
  %v849 = vpack.c.b16 %v834, %v833
  %v850 = vpack.c.b16 %v836, %v835
  %v851 = vpack.c.b16 %v838, %v837
  %v852 = vpack.c.b16 %v840, %v839
  %v853 = vpack.c.b16 %v842, %v841
  %v854 = vpack.c.b16 %v844, %v843
  %v855 = vpack.c.b16 %v846, %v845
  %v856 = vpack.c.b16 %v848, %v847
  %865 = vmatprep.subr.bf16.mxu0 0
  %866 = vmatpush1.bf16.msra.mxu0 %v849
  %867 = vmatprep.subr.bf16.mxu0 0
  %868 = vmatpush1.bf16.msra.mxu0 %v850
  %869 = vmatprep.subr.bf16.mxu0 0
  %870 = vmatpush1.bf16.msra.mxu0 %v851
  %871 = vmatprep.subr.bf16.mxu0 0
  %872 = vmatpush1.bf16.msra.mxu0 %v852
  %873 = vmatprep.subr.bf16.mxu0 0
  %874 = vmatpush1.bf16.msra.mxu0 %v853
  %875 = vmatprep.subr.bf16.mxu0 0
  %876 = vmatpush1.bf16.msra.mxu0 %v854
  %877 = vmatprep.subr.bf16.mxu0 0
  %878 = vmatpush1.bf16.msra.mxu0 %v855
  %879 = vmatprep.subr.bf16.mxu0 0
  %880 = vmatpush1.bf16.msra.mxu0 %v856
  %881 = vmatprep.subr.bf16.mxu0 0
  %882 = vmatpush1.bf16.msra.mxu0 0
  %883 = vmatprep.subr.bf16.mxu0 0
  %884 = vmatpush1.bf16.msra.mxu0 0
  %885 = vmatprep.subr.bf16.mxu0 0
  %886 = vmatpush1.bf16.msra.mxu0 0
  %887 = vmatprep.subr.bf16.mxu0 0
  %888 = vmatpush1.bf16.msra.mxu0 0
  %889 = vmatprep.subr.bf16.mxu0 0
  %890 = vmatpush1.bf16.msra.mxu0 0
  %891 = vmatprep.subr.bf16.mxu0 0
  %892 = vmatpush1.bf16.msra.mxu0 0
  %893 = vmatprep.subr.bf16.mxu0 0
  %894 = vmatpush1.bf16.msra.mxu0 0
  %895 = vmatprep.subr.bf16.mxu0 0
  %896 = vmatpush1.bf16.msra.mxu0 0
  %897 = vmatprep.mubr.bf16.mxu0 0
  %898 = vmatmul.mubr.bf16.gmra.mrb[0].mxu0 %v809
  %v899 = vpop.f32.mrb[0].mxu0
  %v900 = vadd.f32 0.0, %v899
  %v901 = vpop.f32.mrb[0].mxu0
  %v902 = vpop.f32.mrb[0].mxu0
  %v903 = vadd.f32 0.0, %v902
  %v904 = vpop.f32.mrb[0].mxu0
  %905 = vmatprep.mubr.bf16.mxu0 0
  %906 = vmatmul.mubr.bf16.gmra.mrb[0].mxu0 %v810
  %v907 = vpop.f32.mrb[0].mxu0
  %v908 = vadd.f32 0.0, %v907
  %v909 = vpop.f32.mrb[0].mxu0
  %v910 = vpop.f32.mrb[0].mxu0
  %v911 = vadd.f32 0.0, %v910
  %v912 = vpop.f32.mrb[0].mxu0
  %913 = vmatprep.mubr.bf16.mxu0 0
  %914 = vmatmul.mubr.bf16.gmra.mrb[0].mxu0 %v811
  %v915 = vpop.f32.mrb[0].mxu0
  %v916 = vadd.f32 0.0, %v915
  %v917 = vpop.f32.mrb[0].mxu0
  %v918 = vpop.f32.mrb[0].mxu0
  %v919 = vadd.f32 0.0, %v918
  %v920 = vpop.f32.mrb[0].mxu0
  %921 = vmatprep.mubr.bf16.mxu0 0
  %922 = vmatmul.mubr.bf16.gmra.mrb[0].mxu0 %v812
  %v923 = vpop.f32.mrb[0].mxu0
  %v924 = vadd.f32 0.0, %v923
  %v925 = vpop.f32.mrb[0].mxu0
  %v926 = vpop.f32.mrb[0].mxu0
  %v927 = vadd.f32 0.0, %v926
  %v928 = vpop.f32.mrb[0].mxu0
  %929 = vmatprep.mubr.bf16.mxu0 0
  %930 = vmatmul.mubr.bf16.gmra.mrb[0].mxu0 %v813
  %v931 = vpop.f32.mrb[0].mxu0
  %v932 = vadd.f32 0.0, %v931
  %v933 = vpop.f32.mrb[0].mxu0
  %v934 = vpop.f32.mrb[0].mxu0
  %v935 = vadd.f32 0.0, %v934
  %v936 = vpop.f32.mrb[0].mxu0
  %937 = vmatprep.mubr.bf16.mxu0 0
  %938 = vmatmul.mubr.bf16.gmra.mrb[0].mxu0 %v814
  %v939 = vpop.f32.mrb[0].mxu0
  %v940 = vadd.f32 0.0, %v939
  %v941 = vpop.f32.mrb[0].mxu0
  %v942 = vpop.f32.mrb[0].mxu0
  %v943 = vadd.f32 0.0, %v942
  %v944 = vpop.f32.mrb[0].mxu0
  %945 = vmatprep.mubr.bf16.mxu0 0
  %946 = vmatmul.mubr.bf16.gmra.mrb[0].mxu0 %v815
  %v947 = vpop.f32.mrb[0].mxu0
  %v948 = vadd.f32 0.0, %v947
  %v949 = vpop.f32.mrb[0].mxu0
  %v950 = vpop.f32.mrb[0].mxu0
  %v951 = vadd.f32 0.0, %v950
  %v952 = vpop.f32.mrb[0].mxu0
  %953 = vmatprep.mubr.bf16.mxu0 0
  %954 = vmatmul.mubr.bf16.gmra.mrb[0].mxu0 %v816
  %v955 = vpop.f32.mrb[0].mxu0
  %v956 = vadd.f32 0.0, %v955
  %v957 = vpop.f32.mrb[0].mxu0
  %v958 = vpop.f32.mrb[0].mxu0
  %v959 = vadd.f32 0.0, %v958
  %v960 = vpop.f32.mrb[0].mxu0
  %961 = vdwg.mxu0
  %v962 = vxor.u32 %v900, 2147483648
  %v963 = vxor.u32 %v903, 2147483648
  %v964 = vxor.u32 %v908, 2147483648
  %v965 = vxor.u32 %v911, 2147483648
  %v966 = vxor.u32 %v916, 2147483648
  %v967 = vxor.u32 %v919, 2147483648
  %v968 = vxor.u32 %v924, 2147483648
  %v969 = vxor.u32 %v927, 2147483648
  %v970 = vxor.u32 %v932, 2147483648
  %v971 = vxor.u32 %v935, 2147483648
  %v972 = vxor.u32 %v940, 2147483648
  %v973 = vxor.u32 %v943, 2147483648
  %v974 = vxor.u32 %v948, 2147483648
  %v975 = vxor.u32 %v951, 2147483648
  %v976 = vxor.u32 %v956, 2147483648
  %v977 = vxor.u32 %v959, 2147483648
  %v978 = vmul.f32 %v962, 1.442695
  %v979 = vpow.pop %v978
  %v980 = vmul.f32 %v963, 1.442695
  %v981 = vpow.pop %v980
  %v982 = vmul.f32 %v964, 1.442695
  %v983 = vpow.pop %v982
  %v984 = vmul.f32 %v965, 1.442695
  %v985 = vpow.pop %v984
  %v986 = vmul.f32 %v966, 1.442695
  %v987 = vpow.pop %v986
  %v988 = vmul.f32 %v967, 1.442695
  %v989 = vpow.pop %v988
  %v990 = vmul.f32 %v968, 1.442695
  %v991 = vpow.pop %v990
  %v992 = vmul.f32 %v969, 1.442695
  %v993 = vpow.pop %v992
  %v994 = vmul.f32 %v970, 1.442695
  %v995 = vpow.pop %v994
  %v996 = vmul.f32 %v971, 1.442695
  %v997 = vpow.pop %v996
  %v998 = vmul.f32 %v972, 1.442695
  %v999 = vpow.pop %v998
  %v1000 = vmul.f32 %v973, 1.442695
  %v1001 = vpow.pop %v1000
  %v1002 = vmul.f32 %v974, 1.442695
  %v1003 = vpow.pop %v1002
  %v1004 = vmul.f32 %v975, 1.442695
  %v1005 = vpow.pop %v1004
  %v1006 = vmul.f32 %v976, 1.442695
  %v1007 = vpow.pop %v1006
  %v1008 = vmul.f32 %v977, 1.442695
  %v1009 = vpow.pop %v1008
  %v1010 = vadd.f32 %v979, 1.0
  %v1011 = vadd.f32 %v981, 1.0
  %v1012 = vadd.f32 %v983, 1.0
  %v1013 = vadd.f32 %v985, 1.0
  %v1014 = vadd.f32 %v987, 1.0
  %v1015 = vadd.f32 %v989, 1.0
  %v1016 = vadd.f32 %v991, 1.0
  %v1017 = vadd.f32 %v993, 1.0
  %v1018 = vadd.f32 %v995, 1.0
  %v1019 = vadd.f32 %v997, 1.0
  %v1020 = vadd.f32 %v999, 1.0
  %v1021 = vadd.f32 %v1001, 1.0
  %v1022 = vadd.f32 %v1003, 1.0
  %v1023 = vadd.f32 %v1005, 1.0
  %v1024 = vadd.f32 %v1007, 1.0
  %v1025 = vadd.f32 %v1009, 1.0
  %v1026 = vrcp.pop %v1010
  %v1027 = vmul.f32 1.0, %v1026
  %v1028 = vrcp.pop %v1011
  %v1029 = vmul.f32 1.0, %v1028
  %v1030 = vrcp.pop %v1012
  %v1031 = vmul.f32 1.0, %v1030
  %v1032 = vrcp.pop %v1013
  %v1033 = vmul.f32 1.0, %v1032
  %v1034 = vrcp.pop %v1014
  %v1035 = vmul.f32 1.0, %v1034
  %v1036 = vrcp.pop %v1015
  %v1037 = vmul.f32 1.0, %v1036
  %v1038 = vrcp.pop %v1016
  %v1039 = vmul.f32 1.0, %v1038
  %v1040 = vrcp.pop %v1017
  %v1041 = vmul.f32 1.0, %v1040
  %v1042 = vrcp.pop %v1018
  %v1043 = vmul.f32 1.0, %v1042
  %v1044 = vrcp.pop %v1019
  %v1045 = vmul.f32 1.0, %v1044
  %v1046 = vrcp.pop %v1020
  %v1047 = vmul.f32 1.0, %v1046
  %v1048 = vrcp.pop %v1021
  %v1049 = vmul.f32 1.0, %v1048
  %v1050 = vrcp.pop %v1022
  %v1051 = vmul.f32 1.0, %v1050
  %v1052 = vrcp.pop %v1023
  %v1053 = vmul.f32 1.0, %v1052
  %v1054 = vrcp.pop %v1024
  %v1055 = vmul.f32 1.0, %v1054
  %v1056 = vrcp.pop %v1025
  %v1057 = vmul.f32 1.0, %v1056
  %v1058 = vmul.f32 %v1027, %v793
  %v1059 = vmul.f32 %v1029, %v794
  %v1060 = vmul.f32 %v1031, %v795
  %v1061 = vmul.f32 %v1033, %v796
  %v1062 = vmul.f32 %v1035, %v797
  %v1063 = vmul.f32 %v1037, %v798
  %v1064 = vmul.f32 %v1039, %v799
  %v1065 = vmul.f32 %v1041, %v800
  %v1066 = vmul.f32 %v1043, %v801
  %v1067 = vmul.f32 %v1045, %v802
  %v1068 = vmul.f32 %v1047, %v803
  %v1069 = vmul.f32 %v1049, %v804
  %v1070 = vmul.f32 %v1051, %v805
  %v1071 = vmul.f32 %v1053, %v806
  %v1072 = vmul.f32 %v1055, %v807
  %v1073 = vmul.f32 %v1057, %v808
  %1074 = vst [vmem:[#allocation5] sm:$0xff] %v1058
  %1075 = vst [vmem:[#allocation5 + $0x8] sm:$0xff] %v1059
  %1076 = vst [vmem:[#allocation5 + $0x10] sm:$0xff] %v1060
  %1077 = vst [vmem:[#allocation5 + $0x18] sm:$0xff] %v1061
  %1078 = vst [vmem:[#allocation5 + $0x20] sm:$0xff] %v1062
  %1079 = vst [vmem:[#allocation5 + $0x28] sm:$0xff] %v1063
  %1080 = vst [vmem:[#allocation5 + $0x30] sm:$0xff] %v1064
  %1081 = vst [vmem:[#allocation5 + $0x38] sm:$0xff] %v1065
  %1082 = vst [vmem:[#allocation5 + $0x40] sm:$0xff] %v1066
  %1083 = vst [vmem:[#allocation5 + $0x48] sm:$0xff] %v1067
  %1084 = vst [vmem:[#allocation5 + $0x50] sm:$0xff] %v1068
  %1085 = vst [vmem:[#allocation5 + $0x58] sm:$0xff] %v1069
  %1086 = vst [vmem:[#allocation5 + $0x60] sm:$0xff] %v1070
  %1087 = vst [vmem:[#allocation5 + $0x68] sm:$0xff] %v1071
  %1088 = vst [vmem:[#allocation5 + $0x70] sm:$0xff] %v1072
  %1089 = vst [vmem:[#allocation5 + $0x78] sm:$0xff] %v1073
  %v1090 = vld [vmem:[%s5] sm:$0xf]
  %v1091 = vld [vmem:[%s5 + $0x4] sm:$0xf]
  %v1092 = vld [vmem:[%s5 + $0x8] sm:$0xf]
  %v1093 = vld [vmem:[%s5 + $0xc] sm:$0xf]
  %v1094 = vld [vmem:[%s5 + $0x10] sm:$0xf]
  %v1095 = vld [vmem:[%s5 + $0x14] sm:$0xf]
  %v1096 = vld [vmem:[%s5 + $0x18] sm:$0xf]
  %v1097 = vld [vmem:[%s5 + $0x1c] sm:$0xf]
  %v1098 = vld [vmem:[%s5 + $0x20] sm:$0xf]
  %v1099 = vld [vmem:[%s5 + $0x24] sm:$0xf]
  %v1100 = vld [vmem:[%s5 + $0x28] sm:$0xf]
  %v1101 = vld [vmem:[%s5 + $0x2c] sm:$0xf]
  %v1102 = vld [vmem:[%s5 + $0x30] sm:$0xf]
  %v1103 = vld [vmem:[%s5 + $0x34] sm:$0xf]
  %v1104 = vld [vmem:[%s5 + $0x38] sm:$0xf]
  %v1105 = vld [vmem:[%s5 + $0x3c] sm:$0xf]
  %v1106 = vld [vmem:[%s6] sm:$0x1]
  %v1107 = vld [vmem:[%s7] sm:$0xf]
  %v1108 = vld [vmem:[%s7 + $0x4] sm:$0xf]
  %v1109 = vld [vmem:[%s7 + $0x8] sm:$0xf]
  %v1110 = vld [vmem:[%s7 + $0xc] sm:$0xf]
  %v1111 = vld [vmem:[%s7 + $0x10] sm:$0xf]
  %v1112 = vld [vmem:[%s7 + $0x14] sm:$0xf]
  %v1113 = vld [vmem:[%s7 + $0x18] sm:$0xf]
  %v1114 = vld [vmem:[%s7 + $0x1c] sm:$0xf]
  %v1115 = vld [vmem:[%s7 + $0x20] sm:$0xf]
  %v1116 = vld [vmem:[%s7 + $0x24] sm:$0xf]
  %v1117 = vld [vmem:[%s7 + $0x28] sm:$0xf]
  %v1118 = vld [vmem:[%s7 + $0x2c] sm:$0xf]
  %v1119 = vld [vmem:[%s7 + $0x30] sm:$0xf]
  %v1120 = vld [vmem:[%s7 + $0x34] sm:$0xf]
  %v1121 = vld [vmem:[%s7 + $0x38] sm:$0xf]
  %v1122 = vld [vmem:[%s7 + $0x3c] sm:$0xf]
  %v1123 = vld [vmem:[#allocation5] sm:$0xff]
  %v1124 = vld [vmem:[#allocation5 + $0x8] sm:$0xff]
  %v1125 = vld [vmem:[#allocation5 + $0x10] sm:$0xff]
  %v1126 = vld [vmem:[#allocation5 + $0x18] sm:$0xff]
  %v1127 = vld [vmem:[#allocation5 + $0x20] sm:$0xff]
  %v1128 = vld [vmem:[#allocation5 + $0x28] sm:$0xff]
  %v1129 = vld [vmem:[#allocation5 + $0x30] sm:$0xff]
  %v1130 = vld [vmem:[#allocation5 + $0x38] sm:$0xff]
  %v1131 = vld [vmem:[#allocation5 + $0x40] sm:$0xff]
  %v1132 = vld [vmem:[#allocation5 + $0x48] sm:$0xff]
  %v1133 = vld [vmem:[#allocation5 + $0x50] sm:$0xff]
  %v1134 = vld [vmem:[#allocation5 + $0x58] sm:$0xff]
  %v1135 = vld [vmem:[#allocation5 + $0x60] sm:$0xff]
  %v1136 = vld [vmem:[#allocation5 + $0x68] sm:$0xff]
  %v1137 = vld [vmem:[#allocation5 + $0x70] sm:$0xff]
  %v1138 = vld [vmem:[#allocation5 + $0x78] sm:$0xff]
  %v1139 = vpack.c.bf16 %v1124, %v1123
  %v1140 = vpack.c.bf16 %v1126, %v1125
  %v1141 = vpack.c.bf16 %v1128, %v1127
  %v1142 = vpack.c.bf16 %v1130, %v1129
  %v1143 = vpack.c.bf16 %v1132, %v1131
  %v1144 = vpack.c.bf16 %v1134, %v1133
  %v1145 = vpack.c.bf16 %v1136, %v1135
  %v1146 = vpack.c.bf16 %v1138, %v1137
  %v1163 = vunpack.c.l.b16 %v1090
  %v1164 = vunpack.c.l.b16 %v1091
  %v1165 = vunpack.c.l.b16 %v1092
  %v1166 = vunpack.c.l.b16 %v1093
  %v1167 = vunpack.c.l.b16 %v1094
  %v1168 = vunpack.c.l.b16 %v1095
  %v1169 = vunpack.c.l.b16 %v1096
  %v1170 = vunpack.c.l.b16 %v1097
  %v1171 = vunpack.c.l.b16 %v1098
  %v1172 = vunpack.c.l.b16 %v1099
  %v1173 = vunpack.c.l.b16 %v1100
  %v1174 = vunpack.c.l.b16 %v1101
  %v1175 = vunpack.c.l.b16 %v1102
  %v1176 = vunpack.c.l.b16 %v1103
  %v1177 = vunpack.c.l.b16 %v1104
  %v1178 = vunpack.c.l.b16 %v1105
  %v1179 = vpack.c.b16 %v1164, %v1163
  %v1180 = vpack.c.b16 %v1166, %v1165
  %v1181 = vpack.c.b16 %v1168, %v1167
  %v1182 = vpack.c.b16 %v1170, %v1169
  %v1183 = vpack.c.b16 %v1172, %v1171
  %v1184 = vpack.c.b16 %v1174, %v1173
  %v1185 = vpack.c.b16 %v1176, %v1175
  %v1186 = vpack.c.b16 %v1178, %v1177
  %1195 = vmatprep.subr.bf16.mxu0 0
  %1196 = vmatpush1.bf16.msra.mxu0 %v1179
  %1197 = vmatprep.subr.bf16.mxu0 0
  %1198 = vmatpush1.bf16.msra.mxu0 %v1180
  %1199 = vmatprep.subr.bf16.mxu0 0
  %1200 = vmatpush1.bf16.msra.mxu0 %v1181
  %1201 = vmatprep.subr.bf16.mxu0 0
  %1202 = vmatpush1.bf16.msra.mxu0 %v1182
  %1203 = vmatprep.subr.bf16.mxu0 0
  %1204 = vmatpush1.bf16.msra.mxu0 %v1183
  %1205 = vmatprep.subr.bf16.mxu0 0
  %1206 = vmatpush1.bf16.msra.mxu0 %v1184
  %1207 = vmatprep.subr.bf16.mxu0 0
  %1208 = vmatpush1.bf16.msra.mxu0 %v1185
  %1209 = vmatprep.subr.bf16.mxu0 0
  %1210 = vmatpush1.bf16.msra.mxu0 %v1186
  %1211 = vmatprep.subr.bf16.mxu0 0
  %1212 = vmatpush1.bf16.msra.mxu0 0
  %1213 = vmatprep.subr.bf16.mxu0 0
  %1214 = vmatpush1.bf16.msra.mxu0 0
  %1215 = vmatprep.subr.bf16.mxu0 0
  %1216 = vmatpush1.bf16.msra.mxu0 0
  %1217 = vmatprep.subr.bf16.mxu0 0
  %1218 = vmatpush1.bf16.msra.mxu0 0
  %1219 = vmatprep.subr.bf16.mxu0 0
  %1220 = vmatpush1.bf16.msra.mxu0 0
  %1221 = vmatprep.subr.bf16.mxu0 0
  %1222 = vmatpush1.bf16.msra.mxu0 0
  %1223 = vmatprep.subr.bf16.mxu0 0
  %1224 = vmatpush1.bf16.msra.mxu0 0
  %1225 = vmatprep.subr.bf16.mxu0 0
  %1226 = vmatpush1.bf16.msra.mxu0 0
  %1227 = vmatprep.mubr.bf16.mxu0 0
  %1228 = vmatmul.mubr.bf16.gmra.mrb[0].mxu0 %v1139
  %v1229 = vpop.f32.mrb[0].mxu0
  %v1230 = vadd.f32 0.0, %v1229
  %v1231 = vpop.f32.mrb[0].mxu0
  %v1232 = vpop.f32.mrb[0].mxu0
  %v1233 = vadd.f32 0.0, %v1232
  %v1234 = vpop.f32.mrb[0].mxu0
  %1235 = vmatprep.mubr.bf16.mxu0 0
  %1236 = vmatmul.mubr.bf16.gmra.mrb[0].mxu0 %v1140
  %v1237 = vpop.f32.mrb[0].mxu0
  %v1238 = vadd.f32 0.0, %v1237
  %v1239 = vpop.f32.mrb[0].mxu0
  %v1240 = vpop.f32.mrb[0].mxu0
  %v1241 = vadd.f32 0.0, %v1240
  %v1242 = vpop.f32.mrb[0].mxu0
  %1243 = vmatprep.mubr.bf16.mxu0 0
  %1244 = vmatmul.mubr.bf16.gmra.mrb[0].mxu0 %v1141
  %v1245 = vpop.f32.mrb[0].mxu0
  %v1246 = vadd.f32 0.0, %v1245
  %v1247 = vpop.f32.mrb[0].mxu0
  %v1248 = vpop.f32.mrb[0].mxu0
  %v1249 = vadd.f32 0.0, %v1248
  %v1250 = vpop.f32.mrb[0].mxu0
  %1251 = vmatprep.mubr.bf16.mxu0 0
  %1252 = vmatmul.mubr.bf16.gmra.mrb[0].mxu0 %v1142
  %v1253 = vpop.f32.mrb[0].mxu0
  %v1254 = vadd.f32 0.0, %v1253
  %v1255 = vpop.f32.mrb[0].mxu0
  %v1256 = vpop.f32.mrb[0].mxu0
  %v1257 = vadd.f32 0.0, %v1256
  %v1258 = vpop.f32.mrb[0].mxu0
  %1259 = vmatprep.mubr.bf16.mxu0 0
  %1260 = vmatmul.mubr.bf16.gmra.mrb[0].mxu0 %v1143
  %v1261 = vpop.f32.mrb[0].mxu0
  %v1262 = vadd.f32 0.0, %v1261
  %v1263 = vpop.f32.mrb[0].mxu0
  %v1264 = vpop.f32.mrb[0].mxu0
  %v1265 = vadd.f32 0.0, %v1264
  %v1266 = vpop.f32.mrb[0].mxu0
  %1267 = vmatprep.mubr.bf16.mxu0 0
  %1268 = vmatmul.mubr.bf16.gmra.mrb[0].mxu0 %v1144
  %v1269 = vpop.f32.mrb[0].mxu0
  %v1270 = vadd.f32 0.0, %v1269
  %v1271 = vpop.f32.mrb[0].mxu0
  %v1272 = vpop.f32.mrb[0].mxu0
  %v1273 = vadd.f32 0.0, %v1272
  %v1274 = vpop.f32.mrb[0].mxu0
  %1275 = vmatprep.mubr.bf16.mxu0 0
  %1276 = vmatmul.mubr.bf16.gmra.mrb[0].mxu0 %v1145
  %v1277 = vpop.f32.mrb[0].mxu0
  %v1278 = vadd.f32 0.0, %v1277
  %v1279 = vpop.f32.mrb[0].mxu0
  %v1280 = vpop.f32.mrb[0].mxu0
  %v1281 = vadd.f32 0.0, %v1280
  %v1282 = vpop.f32.mrb[0].mxu0
  %1283 = vmatprep.mubr.bf16.mxu0 0
  %1284 = vmatmul.mubr.bf16.gmra.mrb[0].mxu0 %v1146
  %v1285 = vpop.f32.mrb[0].mxu0
  %v1286 = vadd.f32 0.0, %v1285
  %v1287 = vpop.f32.mrb[0].mxu0
  %v1288 = vpop.f32.mrb[0].mxu0
  %v1289 = vadd.f32 0.0, %v1288
  %v1290 = vpop.f32.mrb[0].mxu0
  %1291 = vdwg.mxu0
  %v1292 = vpack.c.bf16 %v1233, %v1230
  %v1293 = vpack.c.bf16 %v1241, %v1238
  %v1294 = vpack.c.bf16 %v1249, %v1246
  %v1295 = vpack.c.bf16 %v1257, %v1254
  %v1296 = vpack.c.bf16 %v1265, %v1262
  %v1297 = vpack.c.bf16 %v1273, %v1270
  %v1298 = vpack.c.bf16 %v1281, %v1278
  %v1299 = vpack.c.bf16 %v1289, %v1286
  %1300 = vst [vmem:[#allocation4] sm:$0xff] %v1292
  %1301 = vst [vmem:[#allocation4 + $0x8] sm:$0xff] %v1293
  %1302 = vst [vmem:[#allocation4 + $0x10] sm:$0xff] %v1294
  %1303 = vst [vmem:[#allocation4 + $0x18] sm:$0xff] %v1295
  %1304 = vst [vmem:[#allocation4 + $0x20] sm:$0xff] %v1296
  %1305 = vst [vmem:[#allocation4 + $0x28] sm:$0xff] %v1297
  %1306 = vst [vmem:[#allocation4 + $0x30] sm:$0xff] %v1298
  %1307 = vst [vmem:[#allocation4 + $0x38] sm:$0xff] %v1299
  %s1308 = sshll.u32 %s213, 4
  %1309 = dma.done %s155, %s1308
  %v1310 = vld [vmem:[%s154] sm:$0xff]
  %v1311 = vld [vmem:[%s154 + $0x8] sm:$0xff]
  %v1312 = vld [vmem:[%s154 + $0x10] sm:$0xff]
  %v1313 = vld [vmem:[%s154 + $0x18] sm:$0xff]
  %v1314 = vld [vmem:[%s154 + $0x20] sm:$0xff]
  %v1315 = vld [vmem:[%s154 + $0x28] sm:$0xff]
  %v1316 = vld [vmem:[%s154 + $0x30] sm:$0xff]
  %v1317 = vld [vmem:[%s154 + $0x38] sm:$0xff]
  %v1318 = vld [vmem:[#allocation4] sm:$0xff]
  %v1319 = vld [vmem:[#allocation4 + $0x8] sm:$0xff]
  %v1320 = vld [vmem:[#allocation4 + $0x10] sm:$0xff]
  %v1321 = vld [vmem:[#allocation4 + $0x18] sm:$0xff]
  %v1322 = vld [vmem:[#allocation4 + $0x20] sm:$0xff]
  %v1323 = vld [vmem:[#allocation4 + $0x28] sm:$0xff]
  %v1324 = vld [vmem:[#allocation4 + $0x30] sm:$0xff]
  %v1325 = vld [vmem:[#allocation4 + $0x38] sm:$0xff]
  %v1327 = vlaneseq
  %v1328 = vshrl.u32 %v1327, 7
  %v1329 = vsub.s32 0, %v1328
  %v1330 = vrot.slane %v1106, %v1329
  %1332 = vmatprep.subr.bf16.mxu0 0
  %1333 = vmatpush1.bf16.msra.mxu0 %v1318
  %1334 = vmatprep.subr.bf16.mxu0 0
  %1335 = vmatpush1.bf16.msra.mxu0 %v1319
  %1336 = vmatprep.subr.bf16.mxu0 0
  %1337 = vmatpush1.bf16.msra.mxu0 %v1320
  %1338 = vmatprep.subr.bf16.mxu0 0
  %1339 = vmatpush1.bf16.msra.mxu0 %v1321
  %1340 = vmatprep.subr.bf16.mxu0 0
  %1341 = vmatpush1.bf16.msra.mxu0 %v1322
  %1342 = vmatprep.subr.bf16.mxu0 0
  %1343 = vmatpush1.bf16.msra.mxu0 %v1323
  %1344 = vmatprep.subr.bf16.mxu0 0
  %1345 = vmatpush1.bf16.msra.mxu0 %v1324
  %1346 = vmatprep.subr.bf16.mxu0 0
  %1347 = vmatpush1.bf16.msra.mxu0 %v1325
  %1348 = vmatprep.subr.bf16.mxu0 0
  %1349 = vmatpush1.bf16.msra.mxu0 0
  %1350 = vmatprep.subr.bf16.mxu0 0
  %1351 = vmatpush1.bf16.msra.mxu0 0
  %1352 = vmatprep.subr.bf16.mxu0 0
  %1353 = vmatpush1.bf16.msra.mxu0 0
  %1354 = vmatprep.subr.bf16.mxu0 0
  %1355 = vmatpush1.bf16.msra.mxu0 0
  %1356 = vmatprep.subr.bf16.mxu0 0
  %1357 = vmatpush1.bf16.msra.mxu0 0
  %1358 = vmatprep.subr.bf16.mxu0 0
  %1359 = vmatpush1.bf16.msra.mxu0 0
  %1360 = vmatprep.subr.bf16.mxu0 0
  %1361 = vmatpush1.bf16.msra.mxu0 0
  %1362 = vmatprep.subr.bf16.mxu0 0
  %1363 = vmatpush1.bf16.msra.mxu0 0
  %1364 = vmatprep.mubr.bf16.mxu0 0
  %1365 = vmatmul.mubr.bf16.gmra.mrb[0].mxu0 %v1310
  %v1366 = vpop.f32.mrb[0].mxu0
  %v1367 = vadd.f32 %v1330, %v1366
  %v1368 = vpop.f32.mrb[0].mxu0
  %v1369 = vpop.f32.mrb[0].mxu0
  %v1370 = vadd.f32 %v1330, %v1369
  %v1371 = vpop.f32.mrb[0].mxu0
  %1372 = vmatprep.mubr.bf16.mxu0 0
  %1373 = vmatmul.mubr.bf16.gmra.mrb[0].mxu0 %v1311
  %v1374 = vpop.f32.mrb[0].mxu0
  %v1375 = vadd.f32 %v1330, %v1374
  %v1376 = vpop.f32.mrb[0].mxu0
  %v1377 = vpop.f32.mrb[0].mxu0
  %v1378 = vadd.f32 %v1330, %v1377
  %v1379 = vpop.f32.mrb[0].mxu0
  %1380 = vmatprep.mubr.bf16.mxu0 0
  %1381 = vmatmul.mubr.bf16.gmra.mrb[0].mxu0 %v1312
  %v1382 = vpop.f32.mrb[0].mxu0
  %v1383 = vadd.f32 %v1330, %v1382
  %v1384 = vpop.f32.mrb[0].mxu0
  %v1385 = vpop.f32.mrb[0].mxu0
  %v1386 = vadd.f32 %v1330, %v1385
  %v1387 = vpop.f32.mrb[0].mxu0
  %1388 = vmatprep.mubr.bf16.mxu0 0
  %1389 = vmatmul.mubr.bf16.gmra.mrb[0].mxu0 %v1313
  %v1390 = vpop.f32.mrb[0].mxu0
  %v1391 = vadd.f32 %v1330, %v1390
  %v1392 = vpop.f32.mrb[0].mxu0
  %v1393 = vpop.f32.mrb[0].mxu0
  %v1394 = vadd.f32 %v1330, %v1393
  %v1395 = vpop.f32.mrb[0].mxu0
  %1396 = vmatprep.mubr.bf16.mxu0 0
  %1397 = vmatmul.mubr.bf16.gmra.mrb[0].mxu0 %v1314
  %v1398 = vpop.f32.mrb[0].mxu0
  %v1399 = vadd.f32 %v1330, %v1398
  %v1400 = vpop.f32.mrb[0].mxu0
  %v1401 = vpop.f32.mrb[0].mxu0
  %v1402 = vadd.f32 %v1330, %v1401
  %v1403 = vpop.f32.mrb[0].mxu0
  %1404 = vmatprep.mubr.bf16.mxu0 0
  %1405 = vmatmul.mubr.bf16.gmra.mrb[0].mxu0 %v1315
  %v1406 = vpop.f32.mrb[0].mxu0
  %v1407 = vadd.f32 %v1330, %v1406
  %v1408 = vpop.f32.mrb[0].mxu0
  %v1409 = vpop.f32.mrb[0].mxu0
  %v1410 = vadd.f32 %v1330, %v1409
  %v1411 = vpop.f32.mrb[0].mxu0
  %1412 = vmatprep.mubr.bf16.mxu0 0
  %1413 = vmatmul.mubr.bf16.gmra.mrb[0].mxu0 %v1316
  %v1414 = vpop.f32.mrb[0].mxu0
  %v1415 = vadd.f32 %v1330, %v1414
  %v1416 = vpop.f32.mrb[0].mxu0
  %v1417 = vpop.f32.mrb[0].mxu0
  %v1418 = vadd.f32 %v1330, %v1417
  %v1419 = vpop.f32.mrb[0].mxu0
  %1420 = vmatprep.mubr.bf16.mxu0 0
  %1421 = vmatmul.mubr.bf16.gmra.mrb[0].mxu0 %v1317
  %v1422 = vpop.f32.mrb[0].mxu0
  %v1423 = vadd.f32 %v1330, %v1422
  %v1424 = vpop.f32.mrb[0].mxu0
  %v1425 = vpop.f32.mrb[0].mxu0
  %v1426 = vadd.f32 %v1330, %v1425
  %v1427 = vpop.f32.mrb[0].mxu0
  %1428 = vdwg.mxu0
  %v1429 = vmul.f32 %v1367, %v646
  %v1430 = vmul.f32 %v1370, %v647
  %v1431 = vmul.f32 %v1375, %v648
  %v1432 = vmul.f32 %v1378, %v649
  %v1433 = vmul.f32 %v1383, %v650
  %v1434 = vmul.f32 %v1386, %v651
  %v1435 = vmul.f32 %v1391, %v652
  %v1436 = vmul.f32 %v1394, %v653
  %v1437 = vmul.f32 %v1399, %v654
  %v1438 = vmul.f32 %v1402, %v655
  %v1439 = vmul.f32 %v1407, %v656
  %v1440 = vmul.f32 %v1410, %v657
  %v1441 = vmul.f32 %v1415, %v658
  %v1442 = vmul.f32 %v1418, %v659
  %v1443 = vmul.f32 %v1423, %v660
  %v1444 = vmul.f32 %v1426, %v661
  %v1445 = vadd.f32 %v1429, %v1430
  %v1446 = vadd.f32 %v1445, %v1431
  %v1447 = vadd.f32 %v1446, %v1432
  %v1448 = vadd.f32 %v1447, %v1433
  %v1449 = vadd.f32 %v1448, %v1434
  %v1450 = vadd.f32 %v1449, %v1435
  %v1451 = vadd.f32 %v1450, %v1436
  %v1452 = vadd.f32 %v1451, %v1437
  %v1453 = vadd.f32 %v1452, %v1438
  %v1454 = vadd.f32 %v1453, %v1439
  %v1455 = vadd.f32 %v1454, %v1440
  %v1456 = vadd.f32 %v1455, %v1441
  %v1457 = vadd.f32 %v1456, %v1442
  %v1458 = vadd.f32 %v1457, %v1443
  %v1459 = vadd.f32 %v1458, %v1444
  %v1460 = vrot.slane %v1459, 4
  %v1461 = vadd.f32 %v1459, %v1460
  %v1462 = vrot.slane %v1461, 2
  %v1463 = vadd.f32 %v1461, %v1462
  %v1464 = vrot.slane %v1463, 1
  %v1465 = vadd.f32 %v1463, %v1464
  %v1466 = vadd.f32 %v1465, 0.0
  %v1467 = vmul.f32 %v1367, %v1429
  %v1468 = vmul.f32 %v1370, %v1430
  %v1469 = vmul.f32 %v1375, %v1431
  %v1470 = vmul.f32 %v1378, %v1432
  %v1471 = vmul.f32 %v1383, %v1433
  %v1472 = vmul.f32 %v1386, %v1434
  %v1473 = vmul.f32 %v1391, %v1435
  %v1474 = vmul.f32 %v1394, %v1436
  %v1475 = vmul.f32 %v1399, %v1437
  %v1476 = vmul.f32 %v1402, %v1438
  %v1477 = vmul.f32 %v1407, %v1439
  %v1478 = vmul.f32 %v1410, %v1440
  %v1479 = vmul.f32 %v1415, %v1441
  %v1480 = vmul.f32 %v1418, %v1442
  %v1481 = vmul.f32 %v1423, %v1443
  %v1482 = vmul.f32 %v1426, %v1444
  %v1483 = vadd.f32 %v1467, %v1468
  %v1484 = vadd.f32 %v1483, %v1469
  %v1485 = vadd.f32 %v1484, %v1470
  %v1486 = vadd.f32 %v1485, %v1471
  %v1487 = vadd.f32 %v1486, %v1472
  %v1488 = vadd.f32 %v1487, %v1473
  %v1489 = vadd.f32 %v1488, %v1474
  %v1490 = vadd.f32 %v1489, %v1475
  %v1491 = vadd.f32 %v1490, %v1476
  %v1492 = vadd.f32 %v1491, %v1477
  %v1493 = vadd.f32 %v1492, %v1478
  %v1494 = vadd.f32 %v1493, %v1479
  %v1495 = vadd.f32 %v1494, %v1480
  %v1496 = vadd.f32 %v1495, %v1481
  %v1497 = vadd.f32 %v1496, %v1482
  %v1498 = vrot.slane %v1497, 4
  %v1499 = vadd.f32 %v1497, %v1498
  %v1500 = vrot.slane %v1499, 2
  %v1501 = vadd.f32 %v1499, %v1500
  %v1502 = vrot.slane %v1501, 1
  %v1503 = vadd.f32 %v1501, %v1502
  %v1504 = vadd.f32 %v1503, 0.0
  %1505 = vst [vmem:[#allocation5] sm:$0xff] %v1367
  %1506 = vst [vmem:[#allocation5 + $0x8] sm:$0xff] %v1370
  %1507 = vst [vmem:[#allocation5 + $0x10] sm:$0xff] %v1375
  %1508 = vst [vmem:[#allocation5 + $0x18] sm:$0xff] %v1378
  %1509 = vst [vmem:[#allocation5 + $0x20] sm:$0xff] %v1383
  %1510 = vst [vmem:[#allocation5 + $0x28] sm:$0xff] %v1386
  %1511 = vst [vmem:[#allocation5 + $0x30] sm:$0xff] %v1391
  %1512 = vst [vmem:[#allocation5 + $0x38] sm:$0xff] %v1394
  %1513 = vst [vmem:[#allocation5 + $0x40] sm:$0xff] %v1399
  %1514 = vst [vmem:[#allocation5 + $0x48] sm:$0xff] %v1402
  %1515 = vst [vmem:[#allocation5 + $0x50] sm:$0xff] %v1407
  %1516 = vst [vmem:[#allocation5 + $0x58] sm:$0xff] %v1410
  %1517 = vst [vmem:[#allocation5 + $0x60] sm:$0xff] %v1415
  %1518 = vst [vmem:[#allocation5 + $0x68] sm:$0xff] %v1418
  %1519 = vst [vmem:[#allocation5 + $0x70] sm:$0xff] %v1423
  %1520 = vst [vmem:[#allocation5 + $0x78] sm:$0xff] %v1426
  %v1521 = vmul.f32 %v1466, 0.0625
  %v1522 = vmul.f32 %v1504, 0.0625
  %v1523 = vmul.f32 %v1521, %v1521
  %v1524 = vsub.f32 %v1522, %v1523
  %v1525 = vmax.f32 %v1524, 0.0
  %v1526 = vadd.f32 %v1525, 1e-05
  %v1527 = vrsqrt.pop %v1526
  %v1528 = vld [vmem:[#allocation5] sm:$0xff]
  %v1529 = vld [vmem:[#allocation5 + $0x8] sm:$0xff]
  %v1530 = vld [vmem:[#allocation5 + $0x10] sm:$0xff]
  %v1531 = vld [vmem:[#allocation5 + $0x18] sm:$0xff]
  %v1532 = vld [vmem:[#allocation5 + $0x20] sm:$0xff]
  %v1533 = vld [vmem:[#allocation5 + $0x28] sm:$0xff]
  %v1534 = vld [vmem:[#allocation5 + $0x30] sm:$0xff]
  %v1535 = vld [vmem:[#allocation5 + $0x38] sm:$0xff]
  %v1536 = vld [vmem:[#allocation5 + $0x40] sm:$0xff]
  %v1537 = vld [vmem:[#allocation5 + $0x48] sm:$0xff]
  %v1538 = vld [vmem:[#allocation5 + $0x50] sm:$0xff]
  %v1539 = vld [vmem:[#allocation5 + $0x58] sm:$0xff]
  %v1540 = vld [vmem:[#allocation5 + $0x60] sm:$0xff]
  %v1541 = vld [vmem:[#allocation5 + $0x68] sm:$0xff]
  %v1542 = vld [vmem:[#allocation5 + $0x70] sm:$0xff]
  %v1543 = vld [vmem:[#allocation5 + $0x78] sm:$0xff]
  %v1544 = vsub.f32 %v1528, %v1521
  %v1545 = vsub.f32 %v1529, %v1521
  %v1546 = vsub.f32 %v1530, %v1521
  %v1547 = vsub.f32 %v1531, %v1521
  %v1548 = vsub.f32 %v1532, %v1521
  %v1549 = vsub.f32 %v1533, %v1521
  %v1550 = vsub.f32 %v1534, %v1521
  %v1551 = vsub.f32 %v1535, %v1521
  %v1552 = vsub.f32 %v1536, %v1521
  %v1553 = vsub.f32 %v1537, %v1521
  %v1554 = vsub.f32 %v1538, %v1521
  %v1555 = vsub.f32 %v1539, %v1521
  %v1556 = vsub.f32 %v1540, %v1521
  %v1557 = vsub.f32 %v1541, %v1521
  %v1558 = vsub.f32 %v1542, %v1521
  %v1559 = vsub.f32 %v1543, %v1521
  %v1560 = vmul.f32 %v1544, %v1527
  %v1561 = vmul.f32 %v1545, %v1527
  %v1562 = vmul.f32 %v1546, %v1527
  %v1563 = vmul.f32 %v1547, %v1527
  %v1564 = vmul.f32 %v1548, %v1527
  %v1565 = vmul.f32 %v1549, %v1527
  %v1566 = vmul.f32 %v1550, %v1527
  %v1567 = vmul.f32 %v1551, %v1527
  %v1568 = vmul.f32 %v1552, %v1527
  %v1569 = vmul.f32 %v1553, %v1527
  %v1570 = vmul.f32 %v1554, %v1527
  %v1571 = vmul.f32 %v1555, %v1527
  %v1572 = vmul.f32 %v1556, %v1527
  %v1573 = vmul.f32 %v1557, %v1527
  %v1574 = vmul.f32 %v1558, %v1527
  %v1575 = vmul.f32 %v1559, %v1527
  %v1576 = vpack.c.bf16 %v1561, %v1560
  %v1577 = vpack.c.bf16 %v1563, %v1562
  %v1578 = vpack.c.bf16 %v1565, %v1564
  %v1579 = vpack.c.bf16 %v1567, %v1566
  %v1580 = vpack.c.bf16 %v1569, %v1568
  %v1581 = vpack.c.bf16 %v1571, %v1570
  %v1582 = vpack.c.bf16 %v1573, %v1572
  %v1583 = vpack.c.bf16 %v1575, %v1574
  %v1600 = vunpack.c.l.b16 %v1107
  %v1601 = vunpack.c.l.b16 %v1108
  %v1602 = vunpack.c.l.b16 %v1109
  %v1603 = vunpack.c.l.b16 %v1110
  %v1604 = vunpack.c.l.b16 %v1111
  %v1605 = vunpack.c.l.b16 %v1112
  %v1606 = vunpack.c.l.b16 %v1113
  %v1607 = vunpack.c.l.b16 %v1114
  %v1608 = vunpack.c.l.b16 %v1115
  %v1609 = vunpack.c.l.b16 %v1116
  %v1610 = vunpack.c.l.b16 %v1117
  %v1611 = vunpack.c.l.b16 %v1118
  %v1612 = vunpack.c.l.b16 %v1119
  %v1613 = vunpack.c.l.b16 %v1120
  %v1614 = vunpack.c.l.b16 %v1121
  %v1615 = vunpack.c.l.b16 %v1122
  %v1616 = vpack.c.b16 %v1601, %v1600
  %v1617 = vpack.c.b16 %v1603, %v1602
  %v1618 = vpack.c.b16 %v1605, %v1604
  %v1619 = vpack.c.b16 %v1607, %v1606
  %v1620 = vpack.c.b16 %v1609, %v1608
  %v1621 = vpack.c.b16 %v1611, %v1610
  %v1622 = vpack.c.b16 %v1613, %v1612
  %v1623 = vpack.c.b16 %v1615, %v1614
  %1632 = vmatprep.subr.bf16.mxu0 0
  %1633 = vmatpush1.bf16.msra.mxu0 %v1616
  %1634 = vmatprep.subr.bf16.mxu0 0
  %1635 = vmatpush1.bf16.msra.mxu0 %v1617
  %1636 = vmatprep.subr.bf16.mxu0 0
  %1637 = vmatpush1.bf16.msra.mxu0 %v1618
  %1638 = vmatprep.subr.bf16.mxu0 0
  %1639 = vmatpush1.bf16.msra.mxu0 %v1619
  %1640 = vmatprep.subr.bf16.mxu0 0
  %1641 = vmatpush1.bf16.msra.mxu0 %v1620
  %1642 = vmatprep.subr.bf16.mxu0 0
  %1643 = vmatpush1.bf16.msra.mxu0 %v1621
  %1644 = vmatprep.subr.bf16.mxu0 0
  %1645 = vmatpush1.bf16.msra.mxu0 %v1622
  %1646 = vmatprep.subr.bf16.mxu0 0
  %1647 = vmatpush1.bf16.msra.mxu0 %v1623
  %1648 = vmatprep.subr.bf16.mxu0 0
  %1649 = vmatpush1.bf16.msra.mxu0 0
  %1650 = vmatprep.subr.bf16.mxu0 0
  %1651 = vmatpush1.bf16.msra.mxu0 0
  %1652 = vmatprep.subr.bf16.mxu0 0
  %1653 = vmatpush1.bf16.msra.mxu0 0
  %1654 = vmatprep.subr.bf16.mxu0 0
  %1655 = vmatpush1.bf16.msra.mxu0 0
  %1656 = vmatprep.subr.bf16.mxu0 0
  %1657 = vmatpush1.bf16.msra.mxu0 0
  %1658 = vmatprep.subr.bf16.mxu0 0
  %1659 = vmatpush1.bf16.msra.mxu0 0
  %1660 = vmatprep.subr.bf16.mxu0 0
  %1661 = vmatpush1.bf16.msra.mxu0 0
  %1662 = vmatprep.subr.bf16.mxu0 0
  %1663 = vmatpush1.bf16.msra.mxu0 0
  %1664 = vmatprep.mubr.bf16.mxu0 0
  %1665 = vmatmul.mubr.bf16.gmra.mrb[0].mxu0 %v1576
  %v1666 = vpop.f32.mrb[0].mxu0
  %v1667 = vadd.f32 0.0, %v1666
  %v1668 = vpop.f32.mrb[0].mxu0
  %v1669 = vpop.f32.mrb[0].mxu0
  %v1670 = vadd.f32 0.0, %v1669
  %v1671 = vpop.f32.mrb[0].mxu0
  %1672 = vmatprep.mubr.bf16.mxu0 0
  %1673 = vmatmul.mubr.bf16.gmra.mrb[0].mxu0 %v1577
  %v1674 = vpop.f32.mrb[0].mxu0
  %v1675 = vadd.f32 0.0, %v1674
  %v1676 = vpop.f32.mrb[0].mxu0
  %v1677 = vpop.f32.mrb[0].mxu0
  %v1678 = vadd.f32 0.0, %v1677
  %v1679 = vpop.f32.mrb[0].mxu0
  %1680 = vmatprep.mubr.bf16.mxu0 0
  %1681 = vmatmul.mubr.bf16.gmra.mrb[0].mxu0 %v1578
  %v1682 = vpop.f32.mrb[0].mxu0
  %v1683 = vadd.f32 0.0, %v1682
  %v1684 = vpop.f32.mrb[0].mxu0
  %v1685 = vpop.f32.mrb[0].mxu0
  %v1686 = vadd.f32 0.0, %v1685
  %v1687 = vpop.f32.mrb[0].mxu0
  %1688 = vmatprep.mubr.bf16.mxu0 0
  %1689 = vmatmul.mubr.bf16.gmra.mrb[0].mxu0 %v1579
  %v1690 = vpop.f32.mrb[0].mxu0
  %v1691 = vadd.f32 0.0, %v1690
  %v1692 = vpop.f32.mrb[0].mxu0
  %v1693 = vpop.f32.mrb[0].mxu0
  %v1694 = vadd.f32 0.0, %v1693
  %v1695 = vpop.f32.mrb[0].mxu0
  %1696 = vmatprep.mubr.bf16.mxu0 0
  %1697 = vmatmul.mubr.bf16.gmra.mrb[0].mxu0 %v1580
  %v1698 = vpop.f32.mrb[0].mxu0
  %v1699 = vadd.f32 0.0, %v1698
  %v1700 = vpop.f32.mrb[0].mxu0
  %v1701 = vpop.f32.mrb[0].mxu0
  %v1702 = vadd.f32 0.0, %v1701
  %v1703 = vpop.f32.mrb[0].mxu0
  %1704 = vmatprep.mubr.bf16.mxu0 0
  %1705 = vmatmul.mubr.bf16.gmra.mrb[0].mxu0 %v1581
  %v1706 = vpop.f32.mrb[0].mxu0
  %v1707 = vadd.f32 0.0, %v1706
  %v1708 = vpop.f32.mrb[0].mxu0
  %v1709 = vpop.f32.mrb[0].mxu0
  %v1710 = vadd.f32 0.0, %v1709
  %v1711 = vpop.f32.mrb[0].mxu0
  %1712 = vmatprep.mubr.bf16.mxu0 0
  %1713 = vmatmul.mubr.bf16.gmra.mrb[0].mxu0 %v1582
  %v1714 = vpop.f32.mrb[0].mxu0
  %v1715 = vadd.f32 0.0, %v1714
  %v1716 = vpop.f32.mrb[0].mxu0
  %v1717 = vpop.f32.mrb[0].mxu0
  %v1718 = vadd.f32 0.0, %v1717
  %v1719 = vpop.f32.mrb[0].mxu0
  %1720 = vmatprep.mubr.bf16.mxu0 0
  %1721 = vmatmul.mubr.bf16.gmra.mrb[0].mxu0 %v1583
  %v1722 = vpop.f32.mrb[0].mxu0
  %v1723 = vadd.f32 0.0, %v1722
  %v1724 = vpop.f32.mrb[0].mxu0
  %v1725 = vpop.f32.mrb[0].mxu0
  %v1726 = vadd.f32 0.0, %v1725
  %v1727 = vpop.f32.mrb[0].mxu0
  %1728 = vdwg.mxu0
  %v1729 = vxor.u32 %v1667, 2147483648
  %v1730 = vxor.u32 %v1670, 2147483648
  %v1731 = vxor.u32 %v1675, 2147483648
  %v1732 = vxor.u32 %v1678, 2147483648
  %v1733 = vxor.u32 %v1683, 2147483648
  %v1734 = vxor.u32 %v1686, 2147483648
  %v1735 = vxor.u32 %v1691, 2147483648
  %v1736 = vxor.u32 %v1694, 2147483648
  %v1737 = vxor.u32 %v1699, 2147483648
  %v1738 = vxor.u32 %v1702, 2147483648
  %v1739 = vxor.u32 %v1707, 2147483648
  %v1740 = vxor.u32 %v1710, 2147483648
  %v1741 = vxor.u32 %v1715, 2147483648
  %v1742 = vxor.u32 %v1718, 2147483648
  %v1743 = vxor.u32 %v1723, 2147483648
  %v1744 = vxor.u32 %v1726, 2147483648
  %v1745 = vmul.f32 %v1729, 1.442695
  %v1746 = vpow.pop %v1745
  %v1747 = vmul.f32 %v1730, 1.442695
  %v1748 = vpow.pop %v1747
  %v1749 = vmul.f32 %v1731, 1.442695
  %v1750 = vpow.pop %v1749
  %v1751 = vmul.f32 %v1732, 1.442695
  %v1752 = vpow.pop %v1751
  %v1753 = vmul.f32 %v1733, 1.442695
  %v1754 = vpow.pop %v1753
  %v1755 = vmul.f32 %v1734, 1.442695
  %v1756 = vpow.pop %v1755
  %v1757 = vmul.f32 %v1735, 1.442695
  %v1758 = vpow.pop %v1757
  %v1759 = vmul.f32 %v1736, 1.442695
  %v1760 = vpow.pop %v1759
  %v1761 = vmul.f32 %v1737, 1.442695
  %v1762 = vpow.pop %v1761
  %v1763 = vmul.f32 %v1738, 1.442695
  %v1764 = vpow.pop %v1763
  %v1765 = vmul.f32 %v1739, 1.442695
  %v1766 = vpow.pop %v1765
  %v1767 = vmul.f32 %v1740, 1.442695
  %v1768 = vpow.pop %v1767
  %v1769 = vmul.f32 %v1741, 1.442695
  %v1770 = vpow.pop %v1769
  %v1771 = vmul.f32 %v1742, 1.442695
  %v1772 = vpow.pop %v1771
  %v1773 = vmul.f32 %v1743, 1.442695
  %v1774 = vpow.pop %v1773
  %v1775 = vmul.f32 %v1744, 1.442695
  %v1776 = vpow.pop %v1775
  %v1777 = vadd.f32 %v1746, 1.0
  %v1778 = vadd.f32 %v1748, 1.0
  %v1779 = vadd.f32 %v1750, 1.0
  %v1780 = vadd.f32 %v1752, 1.0
  %v1781 = vadd.f32 %v1754, 1.0
  %v1782 = vadd.f32 %v1756, 1.0
  %v1783 = vadd.f32 %v1758, 1.0
  %v1784 = vadd.f32 %v1760, 1.0
  %v1785 = vadd.f32 %v1762, 1.0
  %v1786 = vadd.f32 %v1764, 1.0
  %v1787 = vadd.f32 %v1766, 1.0
  %v1788 = vadd.f32 %v1768, 1.0
  %v1789 = vadd.f32 %v1770, 1.0
  %v1790 = vadd.f32 %v1772, 1.0
  %v1791 = vadd.f32 %v1774, 1.0
  %v1792 = vadd.f32 %v1776, 1.0
  %v1793 = vrcp.pop %v1777
  %v1794 = vmul.f32 1.0, %v1793
  %v1795 = vrcp.pop %v1778
  %v1796 = vmul.f32 1.0, %v1795
  %v1797 = vrcp.pop %v1779
  %v1798 = vmul.f32 1.0, %v1797
  %v1799 = vrcp.pop %v1780
  %v1800 = vmul.f32 1.0, %v1799
  %v1801 = vrcp.pop %v1781
  %v1802 = vmul.f32 1.0, %v1801
  %v1803 = vrcp.pop %v1782
  %v1804 = vmul.f32 1.0, %v1803
  %v1805 = vrcp.pop %v1783
  %v1806 = vmul.f32 1.0, %v1805
  %v1807 = vrcp.pop %v1784
  %v1808 = vmul.f32 1.0, %v1807
  %v1809 = vrcp.pop %v1785
  %v1810 = vmul.f32 1.0, %v1809
  %v1811 = vrcp.pop %v1786
  %v1812 = vmul.f32 1.0, %v1811
  %v1813 = vrcp.pop %v1787
  %v1814 = vmul.f32 1.0, %v1813
  %v1815 = vrcp.pop %v1788
  %v1816 = vmul.f32 1.0, %v1815
  %v1817 = vrcp.pop %v1789
  %v1818 = vmul.f32 1.0, %v1817
  %v1819 = vrcp.pop %v1790
  %v1820 = vmul.f32 1.0, %v1819
  %v1821 = vrcp.pop %v1791
  %v1822 = vmul.f32 1.0, %v1821
  %v1823 = vrcp.pop %v1792
  %v1824 = vmul.f32 1.0, %v1823
  %v1825 = vmul.f32 %v1794, %v1560
  %v1826 = vmul.f32 %v1796, %v1561
  %v1827 = vmul.f32 %v1798, %v1562
  %v1828 = vmul.f32 %v1800, %v1563
  %v1829 = vmul.f32 %v1802, %v1564
  %v1830 = vmul.f32 %v1804, %v1565
  %v1831 = vmul.f32 %v1806, %v1566
  %v1832 = vmul.f32 %v1808, %v1567
  %v1833 = vmul.f32 %v1810, %v1568
  %v1834 = vmul.f32 %v1812, %v1569
  %v1835 = vmul.f32 %v1814, %v1570
  %v1836 = vmul.f32 %v1816, %v1571
  %v1837 = vmul.f32 %v1818, %v1572
  %v1838 = vmul.f32 %v1820, %v1573
  %v1839 = vmul.f32 %v1822, %v1574
  %v1840 = vmul.f32 %v1824, %v1575
  %1841 = vst [vmem:[#allocation5] sm:$0xff] %v1825
  %1842 = vst [vmem:[#allocation5 + $0x8] sm:$0xff] %v1826
  %1843 = vst [vmem:[#allocation5 + $0x10] sm:$0xff] %v1827
  %1844 = vst [vmem:[#allocation5 + $0x18] sm:$0xff] %v1828
  %1845 = vst [vmem:[#allocation5 + $0x20] sm:$0xff] %v1829
  %1846 = vst [vmem:[#allocation5 + $0x28] sm:$0xff] %v1830
  %1847 = vst [vmem:[#allocation5 + $0x30] sm:$0xff] %v1831
  %1848 = vst [vmem:[#allocation5 + $0x38] sm:$0xff] %v1832
  %1849 = vst [vmem:[#allocation5 + $0x40] sm:$0xff] %v1833
  %1850 = vst [vmem:[#allocation5 + $0x48] sm:$0xff] %v1834
  %1851 = vst [vmem:[#allocation5 + $0x50] sm:$0xff] %v1835
  %1852 = vst [vmem:[#allocation5 + $0x58] sm:$0xff] %v1836
  %1853 = vst [vmem:[#allocation5 + $0x60] sm:$0xff] %v1837
  %1854 = vst [vmem:[#allocation5 + $0x68] sm:$0xff] %v1838
  %1855 = vst [vmem:[#allocation5 + $0x70] sm:$0xff] %v1839
  %1856 = vst [vmem:[#allocation5 + $0x78] sm:$0xff] %v1840
  %v1857 = vld [vmem:[%s8] sm:$0xf]
  %v1858 = vld [vmem:[%s8 + $0x4] sm:$0xf]
  %v1859 = vld [vmem:[%s8 + $0x8] sm:$0xf]
  %v1860 = vld [vmem:[%s8 + $0xc] sm:$0xf]
  %v1861 = vld [vmem:[%s8 + $0x10] sm:$0xf]
  %v1862 = vld [vmem:[%s8 + $0x14] sm:$0xf]
  %v1863 = vld [vmem:[%s8 + $0x18] sm:$0xf]
  %v1864 = vld [vmem:[%s8 + $0x1c] sm:$0xf]
  %v1865 = vld [vmem:[%s8 + $0x20] sm:$0xf]
  %v1866 = vld [vmem:[%s8 + $0x24] sm:$0xf]
  %v1867 = vld [vmem:[%s8 + $0x28] sm:$0xf]
  %v1868 = vld [vmem:[%s8 + $0x2c] sm:$0xf]
  %v1869 = vld [vmem:[%s8 + $0x30] sm:$0xf]
  %v1870 = vld [vmem:[%s8 + $0x34] sm:$0xf]
  %v1871 = vld [vmem:[%s8 + $0x38] sm:$0xf]
  %v1872 = vld [vmem:[%s8 + $0x3c] sm:$0xf]
  %v1873 = vld [vmem:[%s9] sm:$0x1]
  %v1874 = vld [vmem:[%s10] sm:$0xf]
  %v1875 = vld [vmem:[%s10 + $0x4] sm:$0xf]
  %v1876 = vld [vmem:[%s10 + $0x8] sm:$0xf]
  %v1877 = vld [vmem:[%s10 + $0xc] sm:$0xf]
  %v1878 = vld [vmem:[%s10 + $0x10] sm:$0xf]
  %v1879 = vld [vmem:[%s10 + $0x14] sm:$0xf]
  %v1880 = vld [vmem:[%s10 + $0x18] sm:$0xf]
  %v1881 = vld [vmem:[%s10 + $0x1c] sm:$0xf]
  %v1882 = vld [vmem:[%s10 + $0x20] sm:$0xf]
  %v1883 = vld [vmem:[%s10 + $0x24] sm:$0xf]
  %v1884 = vld [vmem:[%s10 + $0x28] sm:$0xf]
  %v1885 = vld [vmem:[%s10 + $0x2c] sm:$0xf]
  %v1886 = vld [vmem:[%s10 + $0x30] sm:$0xf]
  %v1887 = vld [vmem:[%s10 + $0x34] sm:$0xf]
  %v1888 = vld [vmem:[%s10 + $0x38] sm:$0xf]
  %v1889 = vld [vmem:[%s10 + $0x3c] sm:$0xf]
  %v1890 = vld [vmem:[#allocation5] sm:$0xff]
  %v1891 = vld [vmem:[#allocation5 + $0x8] sm:$0xff]
  %v1892 = vld [vmem:[#allocation5 + $0x10] sm:$0xff]
  %v1893 = vld [vmem:[#allocation5 + $0x18] sm:$0xff]
  %v1894 = vld [vmem:[#allocation5 + $0x20] sm:$0xff]
  %v1895 = vld [vmem:[#allocation5 + $0x28] sm:$0xff]
  %v1896 = vld [vmem:[#allocation5 + $0x30] sm:$0xff]
  %v1897 = vld [vmem:[#allocation5 + $0x38] sm:$0xff]
  %v1898 = vld [vmem:[#allocation5 + $0x40] sm:$0xff]
  %v1899 = vld [vmem:[#allocation5 + $0x48] sm:$0xff]
  %v1900 = vld [vmem:[#allocation5 + $0x50] sm:$0xff]
  %v1901 = vld [vmem:[#allocation5 + $0x58] sm:$0xff]
  %v1902 = vld [vmem:[#allocation5 + $0x60] sm:$0xff]
  %v1903 = vld [vmem:[#allocation5 + $0x68] sm:$0xff]
  %v1904 = vld [vmem:[#allocation5 + $0x70] sm:$0xff]
  %v1905 = vld [vmem:[#allocation5 + $0x78] sm:$0xff]
  %v1906 = vpack.c.bf16 %v1891, %v1890
  %v1907 = vpack.c.bf16 %v1893, %v1892
  %v1908 = vpack.c.bf16 %v1895, %v1894
  %v1909 = vpack.c.bf16 %v1897, %v1896
  %v1910 = vpack.c.bf16 %v1899, %v1898
  %v1911 = vpack.c.bf16 %v1901, %v1900
  %v1912 = vpack.c.bf16 %v1903, %v1902
  %v1913 = vpack.c.bf16 %v1905, %v1904
  %v1930 = vunpack.c.l.b16 %v1857
  %v1931 = vunpack.c.l.b16 %v1858
  %v1932 = vunpack.c.l.b16 %v1859
  %v1933 = vunpack.c.l.b16 %v1860
  %v1934 = vunpack.c.l.b16 %v1861
  %v1935 = vunpack.c.l.b16 %v1862
  %v1936 = vunpack.c.l.b16 %v1863
  %v1937 = vunpack.c.l.b16 %v1864
  %v1938 = vunpack.c.l.b16 %v1865
  %v1939 = vunpack.c.l.b16 %v1866
  %v1940 = vunpack.c.l.b16 %v1867
  %v1941 = vunpack.c.l.b16 %v1868
  %v1942 = vunpack.c.l.b16 %v1869
  %v1943 = vunpack.c.l.b16 %v1870
  %v1944 = vunpack.c.l.b16 %v1871
  %v1945 = vunpack.c.l.b16 %v1872
  %v1946 = vpack.c.b16 %v1931, %v1930
  %v1947 = vpack.c.b16 %v1933, %v1932
  %v1948 = vpack.c.b16 %v1935, %v1934
  %v1949 = vpack.c.b16 %v1937, %v1936
  %v1950 = vpack.c.b16 %v1939, %v1938
  %v1951 = vpack.c.b16 %v1941, %v1940
  %v1952 = vpack.c.b16 %v1943, %v1942
  %v1953 = vpack.c.b16 %v1945, %v1944
  %1962 = vmatprep.subr.bf16.mxu0 0
  %1963 = vmatpush1.bf16.msra.mxu0 %v1946
  %1964 = vmatprep.subr.bf16.mxu0 0
  %1965 = vmatpush1.bf16.msra.mxu0 %v1947
  %1966 = vmatprep.subr.bf16.mxu0 0
  %1967 = vmatpush1.bf16.msra.mxu0 %v1948
  %1968 = vmatprep.subr.bf16.mxu0 0
  %1969 = vmatpush1.bf16.msra.mxu0 %v1949
  %1970 = vmatprep.subr.bf16.mxu0 0
  %1971 = vmatpush1.bf16.msra.mxu0 %v1950
  %1972 = vmatprep.subr.bf16.mxu0 0
  %1973 = vmatpush1.bf16.msra.mxu0 %v1951
  %1974 = vmatprep.subr.bf16.mxu0 0
  %1975 = vmatpush1.bf16.msra.mxu0 %v1952
  %1976 = vmatprep.subr.bf16.mxu0 0
  %1977 = vmatpush1.bf16.msra.mxu0 %v1953
  %1978 = vmatprep.subr.bf16.mxu0 0
  %1979 = vmatpush1.bf16.msra.mxu0 0
  %1980 = vmatprep.subr.bf16.mxu0 0
  %1981 = vmatpush1.bf16.msra.mxu0 0
  %1982 = vmatprep.subr.bf16.mxu0 0
  %1983 = vmatpush1.bf16.msra.mxu0 0
  %1984 = vmatprep.subr.bf16.mxu0 0
  %1985 = vmatpush1.bf16.msra.mxu0 0
  %1986 = vmatprep.subr.bf16.mxu0 0
  %1987 = vmatpush1.bf16.msra.mxu0 0
  %1988 = vmatprep.subr.bf16.mxu0 0
  %1989 = vmatpush1.bf16.msra.mxu0 0
  %1990 = vmatprep.subr.bf16.mxu0 0
  %1991 = vmatpush1.bf16.msra.mxu0 0
  %1992 = vmatprep.subr.bf16.mxu0 0
  %1993 = vmatpush1.bf16.msra.mxu0 0
  %1994 = vmatprep.mubr.bf16.mxu0 0
  %1995 = vmatmul.mubr.bf16.gmra.mrb[0].mxu0 %v1906
  %v1996 = vpop.f32.mrb[0].mxu0
  %v1997 = vadd.f32 0.0, %v1996
  %v1998 = vpop.f32.mrb[0].mxu0
  %v1999 = vpop.f32.mrb[0].mxu0
  %v2000 = vadd.f32 0.0, %v1999
  %v2001 = vpop.f32.mrb[0].mxu0
  %2002 = vmatprep.mubr.bf16.mxu0 0
  %2003 = vmatmul.mubr.bf16.gmra.mrb[0].mxu0 %v1907
  %v2004 = vpop.f32.mrb[0].mxu0
  %v2005 = vadd.f32 0.0, %v2004
  %v2006 = vpop.f32.mrb[0].mxu0
  %v2007 = vpop.f32.mrb[0].mxu0
  %v2008 = vadd.f32 0.0, %v2007
  %v2009 = vpop.f32.mrb[0].mxu0
  %2010 = vmatprep.mubr.bf16.mxu0 0
  %2011 = vmatmul.mubr.bf16.gmra.mrb[0].mxu0 %v1908
  %v2012 = vpop.f32.mrb[0].mxu0
  %v2013 = vadd.f32 0.0, %v2012
  %v2014 = vpop.f32.mrb[0].mxu0
  %v2015 = vpop.f32.mrb[0].mxu0
  %v2016 = vadd.f32 0.0, %v2015
  %v2017 = vpop.f32.mrb[0].mxu0
  %2018 = vmatprep.mubr.bf16.mxu0 0
  %2019 = vmatmul.mubr.bf16.gmra.mrb[0].mxu0 %v1909
  %v2020 = vpop.f32.mrb[0].mxu0
  %v2021 = vadd.f32 0.0, %v2020
  %v2022 = vpop.f32.mrb[0].mxu0
  %v2023 = vpop.f32.mrb[0].mxu0
  %v2024 = vadd.f32 0.0, %v2023
  %v2025 = vpop.f32.mrb[0].mxu0
  %2026 = vmatprep.mubr.bf16.mxu0 0
  %2027 = vmatmul.mubr.bf16.gmra.mrb[0].mxu0 %v1910
  %v2028 = vpop.f32.mrb[0].mxu0
  %v2029 = vadd.f32 0.0, %v2028
  %v2030 = vpop.f32.mrb[0].mxu0
  %v2031 = vpop.f32.mrb[0].mxu0
  %v2032 = vadd.f32 0.0, %v2031
  %v2033 = vpop.f32.mrb[0].mxu0
  %2034 = vmatprep.mubr.bf16.mxu0 0
  %2035 = vmatmul.mubr.bf16.gmra.mrb[0].mxu0 %v1911
  %v2036 = vpop.f32.mrb[0].mxu0
  %v2037 = vadd.f32 0.0, %v2036
  %v2038 = vpop.f32.mrb[0].mxu0
  %v2039 = vpop.f32.mrb[0].mxu0
  %v2040 = vadd.f32 0.0, %v2039
  %v2041 = vpop.f32.mrb[0].mxu0
  %2042 = vmatprep.mubr.bf16.mxu0 0
  %2043 = vmatmul.mubr.bf16.gmra.mrb[0].mxu0 %v1912
  %v2044 = vpop.f32.mrb[0].mxu0
  %v2045 = vadd.f32 0.0, %v2044
  %v2046 = vpop.f32.mrb[0].mxu0
  %v2047 = vpop.f32.mrb[0].mxu0
  %v2048 = vadd.f32 0.0, %v2047
  %v2049 = vpop.f32.mrb[0].mxu0
  %2050 = vmatprep.mubr.bf16.mxu0 0
  %2051 = vmatmul.mubr.bf16.gmra.mrb[0].mxu0 %v1913
  %v2052 = vpop.f32.mrb[0].mxu0
  %v2053 = vadd.f32 0.0, %v2052
  %v2054 = vpop.f32.mrb[0].mxu0
  %v2055 = vpop.f32.mrb[0].mxu0
  %v2056 = vadd.f32 0.0, %v2055
  %v2057 = vpop.f32.mrb[0].mxu0
  %2058 = vdwg.mxu0
  %v2059 = vpack.c.bf16 %v2000, %v1997
  %v2060 = vpack.c.bf16 %v2008, %v2005
  %v2061 = vpack.c.bf16 %v2016, %v2013
  %v2062 = vpack.c.bf16 %v2024, %v2021
  %v2063 = vpack.c.bf16 %v2032, %v2029
  %v2064 = vpack.c.bf16 %v2040, %v2037
  %v2065 = vpack.c.bf16 %v2048, %v2045
  %v2066 = vpack.c.bf16 %v2056, %v2053
  %2067 = vst [vmem:[#allocation4] sm:$0xff] %v2059
  %2068 = vst [vmem:[#allocation4 + $0x8] sm:$0xff] %v2060
  %2069 = vst [vmem:[#allocation4 + $0x10] sm:$0xff] %v2061
  %2070 = vst [vmem:[#allocation4 + $0x18] sm:$0xff] %v2062
  %2071 = vst [vmem:[#allocation4 + $0x20] sm:$0xff] %v2063
  %2072 = vst [vmem:[#allocation4 + $0x28] sm:$0xff] %v2064
  %2073 = vst [vmem:[#allocation4 + $0x30] sm:$0xff] %v2065
  %2074 = vst [vmem:[#allocation4 + $0x38] sm:$0xff] %v2066
  %s2075 = sshll.u32 %s213, 4
  %2076 = dma.done %s419, %s2075
  %v2077 = vld [vmem:[%s418] sm:$0xff]
  %v2078 = vld [vmem:[%s418 + $0x8] sm:$0xff]
  %v2079 = vld [vmem:[%s418 + $0x10] sm:$0xff]
  %v2080 = vld [vmem:[%s418 + $0x18] sm:$0xff]
  %v2081 = vld [vmem:[%s418 + $0x20] sm:$0xff]
  %v2082 = vld [vmem:[%s418 + $0x28] sm:$0xff]
  %v2083 = vld [vmem:[%s418 + $0x30] sm:$0xff]
  %v2084 = vld [vmem:[%s418 + $0x38] sm:$0xff]
  %v2085 = vld [vmem:[#allocation4] sm:$0xff]
  %v2086 = vld [vmem:[#allocation4 + $0x8] sm:$0xff]
  %v2087 = vld [vmem:[#allocation4 + $0x10] sm:$0xff]
  %v2088 = vld [vmem:[#allocation4 + $0x18] sm:$0xff]
  %v2089 = vld [vmem:[#allocation4 + $0x20] sm:$0xff]
  %v2090 = vld [vmem:[#allocation4 + $0x28] sm:$0xff]
  %v2091 = vld [vmem:[#allocation4 + $0x30] sm:$0xff]
  %v2092 = vld [vmem:[#allocation4 + $0x38] sm:$0xff]
  %v2094 = vlaneseq
  %v2095 = vshrl.u32 %v2094, 7
  %v2096 = vsub.s32 0, %v2095
  %v2097 = vrot.slane %v1873, %v2096
  %2099 = vmatprep.subr.bf16.mxu0 0
  %2100 = vmatpush1.bf16.msra.mxu0 %v2085
  %2101 = vmatprep.subr.bf16.mxu0 0
  %2102 = vmatpush1.bf16.msra.mxu0 %v2086
  %2103 = vmatprep.subr.bf16.mxu0 0
  %2104 = vmatpush1.bf16.msra.mxu0 %v2087
  %2105 = vmatprep.subr.bf16.mxu0 0
  %2106 = vmatpush1.bf16.msra.mxu0 %v2088
  %2107 = vmatprep.subr.bf16.mxu0 0
  %2108 = vmatpush1.bf16.msra.mxu0 %v2089
  %2109 = vmatprep.subr.bf16.mxu0 0
  %2110 = vmatpush1.bf16.msra.mxu0 %v2090
  %2111 = vmatprep.subr.bf16.mxu0 0
  %2112 = vmatpush1.bf16.msra.mxu0 %v2091
  %2113 = vmatprep.subr.bf16.mxu0 0
  %2114 = vmatpush1.bf16.msra.mxu0 %v2092
  %2115 = vmatprep.subr.bf16.mxu0 0
  %2116 = vmatpush1.bf16.msra.mxu0 0
  %2117 = vmatprep.subr.bf16.mxu0 0
  %2118 = vmatpush1.bf16.msra.mxu0 0
  %2119 = vmatprep.subr.bf16.mxu0 0
  %2120 = vmatpush1.bf16.msra.mxu0 0
  %2121 = vmatprep.subr.bf16.mxu0 0
  %2122 = vmatpush1.bf16.msra.mxu0 0
  %2123 = vmatprep.subr.bf16.mxu0 0
  %2124 = vmatpush1.bf16.msra.mxu0 0
  %2125 = vmatprep.subr.bf16.mxu0 0
  %2126 = vmatpush1.bf16.msra.mxu0 0
  %2127 = vmatprep.subr.bf16.mxu0 0
  %2128 = vmatpush1.bf16.msra.mxu0 0
  %2129 = vmatprep.subr.bf16.mxu0 0
  %2130 = vmatpush1.bf16.msra.mxu0 0
  %2131 = vmatprep.mubr.bf16.mxu0 0
  %2132 = vmatmul.mubr.bf16.gmra.mrb[0].mxu0 %v2077
  %v2133 = vpop.f32.mrb[0].mxu0
  %v2134 = vadd.f32 %v2097, %v2133
  %v2135 = vpop.f32.mrb[0].mxu0
  %v2136 = vpop.f32.mrb[0].mxu0
  %v2137 = vadd.f32 %v2097, %v2136
  %v2138 = vpop.f32.mrb[0].mxu0
  %2139 = vmatprep.mubr.bf16.mxu0 0
  %2140 = vmatmul.mubr.bf16.gmra.mrb[0].mxu0 %v2078
  %v2141 = vpop.f32.mrb[0].mxu0
  %v2142 = vadd.f32 %v2097, %v2141
  %v2143 = vpop.f32.mrb[0].mxu0
  %v2144 = vpop.f32.mrb[0].mxu0
  %v2145 = vadd.f32 %v2097, %v2144
  %v2146 = vpop.f32.mrb[0].mxu0
  %2147 = vmatprep.mubr.bf16.mxu0 0
  %2148 = vmatmul.mubr.bf16.gmra.mrb[0].mxu0 %v2079
  %v2149 = vpop.f32.mrb[0].mxu0
  %v2150 = vadd.f32 %v2097, %v2149
  %v2151 = vpop.f32.mrb[0].mxu0
  %v2152 = vpop.f32.mrb[0].mxu0
  %v2153 = vadd.f32 %v2097, %v2152
  %v2154 = vpop.f32.mrb[0].mxu0
  %2155 = vmatprep.mubr.bf16.mxu0 0
  %2156 = vmatmul.mubr.bf16.gmra.mrb[0].mxu0 %v2080
  %v2157 = vpop.f32.mrb[0].mxu0
  %v2158 = vadd.f32 %v2097, %v2157
  %v2159 = vpop.f32.mrb[0].mxu0
  %v2160 = vpop.f32.mrb[0].mxu0
  %v2161 = vadd.f32 %v2097, %v2160
  %v2162 = vpop.f32.mrb[0].mxu0
  %2163 = vmatprep.mubr.bf16.mxu0 0
  %2164 = vmatmul.mubr.bf16.gmra.mrb[0].mxu0 %v2081
  %v2165 = vpop.f32.mrb[0].mxu0
  %v2166 = vadd.f32 %v2097, %v2165
  %v2167 = vpop.f32.mrb[0].mxu0
  %v2168 = vpop.f32.mrb[0].mxu0
  %v2169 = vadd.f32 %v2097, %v2168
  %v2170 = vpop.f32.mrb[0].mxu0
  %2171 = vmatprep.mubr.bf16.mxu0 0
  %2172 = vmatmul.mubr.bf16.gmra.mrb[0].mxu0 %v2082
  %v2173 = vpop.f32.mrb[0].mxu0
  %v2174 = vadd.f32 %v2097, %v2173
  %v2175 = vpop.f32.mrb[0].mxu0
  %v2176 = vpop.f32.mrb[0].mxu0
  %v2177 = vadd.f32 %v2097, %v2176
  %v2178 = vpop.f32.mrb[0].mxu0
  %2179 = vmatprep.mubr.bf16.mxu0 0
  %2180 = vmatmul.mubr.bf16.gmra.mrb[0].mxu0 %v2083
  %v2181 = vpop.f32.mrb[0].mxu0
  %v2182 = vadd.f32 %v2097, %v2181
  %v2183 = vpop.f32.mrb[0].mxu0
  %v2184 = vpop.f32.mrb[0].mxu0
  %v2185 = vadd.f32 %v2097, %v2184
  %v2186 = vpop.f32.mrb[0].mxu0
  %2187 = vmatprep.mubr.bf16.mxu0 0
  %2188 = vmatmul.mubr.bf16.gmra.mrb[0].mxu0 %v2084
  %v2189 = vpop.f32.mrb[0].mxu0
  %v2190 = vadd.f32 %v2097, %v2189
  %v2191 = vpop.f32.mrb[0].mxu0
  %v2192 = vpop.f32.mrb[0].mxu0
  %v2193 = vadd.f32 %v2097, %v2192
  %v2194 = vpop.f32.mrb[0].mxu0
  %2195 = vdwg.mxu0
  %v2196 = vmul.f32 %v2134, %v646
  %v2197 = vmul.f32 %v2137, %v647
  %v2198 = vmul.f32 %v2142, %v648
  %v2199 = vmul.f32 %v2145, %v649
  %v2200 = vmul.f32 %v2150, %v650
  %v2201 = vmul.f32 %v2153, %v651
  %v2202 = vmul.f32 %v2158, %v652
  %v2203 = vmul.f32 %v2161, %v653
  %v2204 = vmul.f32 %v2166, %v654
  %v2205 = vmul.f32 %v2169, %v655
  %v2206 = vmul.f32 %v2174, %v656
  %v2207 = vmul.f32 %v2177, %v657
  %v2208 = vmul.f32 %v2182, %v658
  %v2209 = vmul.f32 %v2185, %v659
  %v2210 = vmul.f32 %v2190, %v660
  %v2211 = vmul.f32 %v2193, %v661
  %v2212 = vadd.f32 %v2196, %v2197
  %v2213 = vadd.f32 %v2212, %v2198
  %v2214 = vadd.f32 %v2213, %v2199
  %v2215 = vadd.f32 %v2214, %v2200
  %v2216 = vadd.f32 %v2215, %v2201
  %v2217 = vadd.f32 %v2216, %v2202
  %v2218 = vadd.f32 %v2217, %v2203
  %v2219 = vadd.f32 %v2218, %v2204
  %v2220 = vadd.f32 %v2219, %v2205
  %v2221 = vadd.f32 %v2220, %v2206
  %v2222 = vadd.f32 %v2221, %v2207
  %v2223 = vadd.f32 %v2222, %v2208
  %v2224 = vadd.f32 %v2223, %v2209
  %v2225 = vadd.f32 %v2224, %v2210
  %v2226 = vadd.f32 %v2225, %v2211
  %v2227 = vrot.slane %v2226, 4
  %v2228 = vadd.f32 %v2226, %v2227
  %v2229 = vrot.slane %v2228, 2
  %v2230 = vadd.f32 %v2228, %v2229
  %v2231 = vrot.slane %v2230, 1
  %v2232 = vadd.f32 %v2230, %v2231
  %v2233 = vadd.f32 %v2232, 0.0
  %v2234 = vmul.f32 %v2134, %v2196
  %v2235 = vmul.f32 %v2137, %v2197
  %v2236 = vmul.f32 %v2142, %v2198
  %v2237 = vmul.f32 %v2145, %v2199
  %v2238 = vmul.f32 %v2150, %v2200
  %v2239 = vmul.f32 %v2153, %v2201
  %v2240 = vmul.f32 %v2158, %v2202
  %v2241 = vmul.f32 %v2161, %v2203
  %v2242 = vmul.f32 %v2166, %v2204
  %v2243 = vmul.f32 %v2169, %v2205
  %v2244 = vmul.f32 %v2174, %v2206
  %v2245 = vmul.f32 %v2177, %v2207
  %v2246 = vmul.f32 %v2182, %v2208
  %v2247 = vmul.f32 %v2185, %v2209
  %v2248 = vmul.f32 %v2190, %v2210
  %v2249 = vmul.f32 %v2193, %v2211
  %v2250 = vadd.f32 %v2234, %v2235
  %v2251 = vadd.f32 %v2250, %v2236
  %v2252 = vadd.f32 %v2251, %v2237
  %v2253 = vadd.f32 %v2252, %v2238
  %v2254 = vadd.f32 %v2253, %v2239
  %v2255 = vadd.f32 %v2254, %v2240
  %v2256 = vadd.f32 %v2255, %v2241
  %v2257 = vadd.f32 %v2256, %v2242
  %v2258 = vadd.f32 %v2257, %v2243
  %v2259 = vadd.f32 %v2258, %v2244
  %v2260 = vadd.f32 %v2259, %v2245
  %v2261 = vadd.f32 %v2260, %v2246
  %v2262 = vadd.f32 %v2261, %v2247
  %v2263 = vadd.f32 %v2262, %v2248
  %v2264 = vadd.f32 %v2263, %v2249
  %v2265 = vrot.slane %v2264, 4
  %v2266 = vadd.f32 %v2264, %v2265
  %v2267 = vrot.slane %v2266, 2
  %v2268 = vadd.f32 %v2266, %v2267
  %v2269 = vrot.slane %v2268, 1
  %v2270 = vadd.f32 %v2268, %v2269
  %v2271 = vadd.f32 %v2270, 0.0
  %2272 = vst [vmem:[#allocation5] sm:$0xff] %v2134
  %2273 = vst [vmem:[#allocation5 + $0x8] sm:$0xff] %v2137
  %2274 = vst [vmem:[#allocation5 + $0x10] sm:$0xff] %v2142
  %2275 = vst [vmem:[#allocation5 + $0x18] sm:$0xff] %v2145
  %2276 = vst [vmem:[#allocation5 + $0x20] sm:$0xff] %v2150
  %2277 = vst [vmem:[#allocation5 + $0x28] sm:$0xff] %v2153
  %2278 = vst [vmem:[#allocation5 + $0x30] sm:$0xff] %v2158
  %2279 = vst [vmem:[#allocation5 + $0x38] sm:$0xff] %v2161
  %2280 = vst [vmem:[#allocation5 + $0x40] sm:$0xff] %v2166
  %2281 = vst [vmem:[#allocation5 + $0x48] sm:$0xff] %v2169
  %2282 = vst [vmem:[#allocation5 + $0x50] sm:$0xff] %v2174
  %2283 = vst [vmem:[#allocation5 + $0x58] sm:$0xff] %v2177
  %2284 = vst [vmem:[#allocation5 + $0x60] sm:$0xff] %v2182
  %2285 = vst [vmem:[#allocation5 + $0x68] sm:$0xff] %v2185
  %2286 = vst [vmem:[#allocation5 + $0x70] sm:$0xff] %v2190
  %2287 = vst [vmem:[#allocation5 + $0x78] sm:$0xff] %v2193
  %v2288 = vmul.f32 %v2233, 0.0625
  %v2289 = vmul.f32 %v2271, 0.0625
  %v2290 = vmul.f32 %v2288, %v2288
  %v2291 = vsub.f32 %v2289, %v2290
  %v2292 = vmax.f32 %v2291, 0.0
  %v2293 = vadd.f32 %v2292, 1e-05
  %v2294 = vrsqrt.pop %v2293
  %v2295 = vld [vmem:[#allocation5] sm:$0xff]
  %v2296 = vld [vmem:[#allocation5 + $0x8] sm:$0xff]
  %v2297 = vld [vmem:[#allocation5 + $0x10] sm:$0xff]
  %v2298 = vld [vmem:[#allocation5 + $0x18] sm:$0xff]
  %v2299 = vld [vmem:[#allocation5 + $0x20] sm:$0xff]
  %v2300 = vld [vmem:[#allocation5 + $0x28] sm:$0xff]
  %v2301 = vld [vmem:[#allocation5 + $0x30] sm:$0xff]
  %v2302 = vld [vmem:[#allocation5 + $0x38] sm:$0xff]
  %v2303 = vld [vmem:[#allocation5 + $0x40] sm:$0xff]
  %v2304 = vld [vmem:[#allocation5 + $0x48] sm:$0xff]
  %v2305 = vld [vmem:[#allocation5 + $0x50] sm:$0xff]
  %v2306 = vld [vmem:[#allocation5 + $0x58] sm:$0xff]
  %v2307 = vld [vmem:[#allocation5 + $0x60] sm:$0xff]
  %v2308 = vld [vmem:[#allocation5 + $0x68] sm:$0xff]
  %v2309 = vld [vmem:[#allocation5 + $0x70] sm:$0xff]
  %v2310 = vld [vmem:[#allocation5 + $0x78] sm:$0xff]
  %v2311 = vsub.f32 %v2295, %v2288
  %v2312 = vsub.f32 %v2296, %v2288
  %v2313 = vsub.f32 %v2297, %v2288
  %v2314 = vsub.f32 %v2298, %v2288
  %v2315 = vsub.f32 %v2299, %v2288
  %v2316 = vsub.f32 %v2300, %v2288
  %v2317 = vsub.f32 %v2301, %v2288
  %v2318 = vsub.f32 %v2302, %v2288
  %v2319 = vsub.f32 %v2303, %v2288
  %v2320 = vsub.f32 %v2304, %v2288
  %v2321 = vsub.f32 %v2305, %v2288
  %v2322 = vsub.f32 %v2306, %v2288
  %v2323 = vsub.f32 %v2307, %v2288
  %v2324 = vsub.f32 %v2308, %v2288
  %v2325 = vsub.f32 %v2309, %v2288
  %v2326 = vsub.f32 %v2310, %v2288
  %v2327 = vmul.f32 %v2311, %v2294
  %v2328 = vmul.f32 %v2312, %v2294
  %v2329 = vmul.f32 %v2313, %v2294
  %v2330 = vmul.f32 %v2314, %v2294
  %v2331 = vmul.f32 %v2315, %v2294
  %v2332 = vmul.f32 %v2316, %v2294
  %v2333 = vmul.f32 %v2317, %v2294
  %v2334 = vmul.f32 %v2318, %v2294
  %v2335 = vmul.f32 %v2319, %v2294
  %v2336 = vmul.f32 %v2320, %v2294
  %v2337 = vmul.f32 %v2321, %v2294
  %v2338 = vmul.f32 %v2322, %v2294
  %v2339 = vmul.f32 %v2323, %v2294
  %v2340 = vmul.f32 %v2324, %v2294
  %v2341 = vmul.f32 %v2325, %v2294
  %v2342 = vmul.f32 %v2326, %v2294
  %v2343 = vpack.c.bf16 %v2328, %v2327
  %v2344 = vpack.c.bf16 %v2330, %v2329
  %v2345 = vpack.c.bf16 %v2332, %v2331
  %v2346 = vpack.c.bf16 %v2334, %v2333
  %v2347 = vpack.c.bf16 %v2336, %v2335
  %v2348 = vpack.c.bf16 %v2338, %v2337
  %v2349 = vpack.c.bf16 %v2340, %v2339
  %v2350 = vpack.c.bf16 %v2342, %v2341
  %v2367 = vunpack.c.l.b16 %v1874
  %v2368 = vunpack.c.l.b16 %v1875
  %v2369 = vunpack.c.l.b16 %v1876
  %v2370 = vunpack.c.l.b16 %v1877
  %v2371 = vunpack.c.l.b16 %v1878
  %v2372 = vunpack.c.l.b16 %v1879
  %v2373 = vunpack.c.l.b16 %v1880
  %v2374 = vunpack.c.l.b16 %v1881
  %v2375 = vunpack.c.l.b16 %v1882
  %v2376 = vunpack.c.l.b16 %v1883
  %v2377 = vunpack.c.l.b16 %v1884
  %v2378 = vunpack.c.l.b16 %v1885
  %v2379 = vunpack.c.l.b16 %v1886
  %v2380 = vunpack.c.l.b16 %v1887
  %v2381 = vunpack.c.l.b16 %v1888
  %v2382 = vunpack.c.l.b16 %v1889
  %v2383 = vpack.c.b16 %v2368, %v2367
  %v2384 = vpack.c.b16 %v2370, %v2369
  %v2385 = vpack.c.b16 %v2372, %v2371
  %v2386 = vpack.c.b16 %v2374, %v2373
  %v2387 = vpack.c.b16 %v2376, %v2375
  %v2388 = vpack.c.b16 %v2378, %v2377
  %v2389 = vpack.c.b16 %v2380, %v2379
  %v2390 = vpack.c.b16 %v2382, %v2381
  %2399 = vmatprep.subr.bf16.mxu0 0
  %2400 = vmatpush1.bf16.msra.mxu0 %v2383
  %2401 = vmatprep.subr.bf16.mxu0 0
  %2402 = vmatpush1.bf16.msra.mxu0 %v2384
  %2403 = vmatprep.subr.bf16.mxu0 0
  %2404 = vmatpush1.bf16.msra.mxu0 %v2385
  %2405 = vmatprep.subr.bf16.mxu0 0
  %2406 = vmatpush1.bf16.msra.mxu0 %v2386
  %2407 = vmatprep.subr.bf16.mxu0 0
  %2408 = vmatpush1.bf16.msra.mxu0 %v2387
  %2409 = vmatprep.subr.bf16.mxu0 0
  %2410 = vmatpush1.bf16.msra.mxu0 %v2388
  %2411 = vmatprep.subr.bf16.mxu0 0
  %2412 = vmatpush1.bf16.msra.mxu0 %v2389
  %2413 = vmatprep.subr.bf16.mxu0 0
  %2414 = vmatpush1.bf16.msra.mxu0 %v2390
  %2415 = vmatprep.subr.bf16.mxu0 0
  %2416 = vmatpush1.bf16.msra.mxu0 0
  %2417 = vmatprep.subr.bf16.mxu0 0
  %2418 = vmatpush1.bf16.msra.mxu0 0
  %2419 = vmatprep.subr.bf16.mxu0 0
  %2420 = vmatpush1.bf16.msra.mxu0 0
  %2421 = vmatprep.subr.bf16.mxu0 0
  %2422 = vmatpush1.bf16.msra.mxu0 0
  %2423 = vmatprep.subr.bf16.mxu0 0
  %2424 = vmatpush1.bf16.msra.mxu0 0
  %2425 = vmatprep.subr.bf16.mxu0 0
  %2426 = vmatpush1.bf16.msra.mxu0 0
  %2427 = vmatprep.subr.bf16.mxu0 0
  %2428 = vmatpush1.bf16.msra.mxu0 0
  %2429 = vmatprep.subr.bf16.mxu0 0
  %2430 = vmatpush1.bf16.msra.mxu0 0
  %2431 = vmatprep.mubr.bf16.mxu0 0
  %2432 = vmatmul.mubr.bf16.gmra.mrb[0].mxu0 %v2343
  %v2433 = vpop.f32.mrb[0].mxu0
  %v2434 = vadd.f32 0.0, %v2433
  %v2435 = vpop.f32.mrb[0].mxu0
  %v2436 = vpop.f32.mrb[0].mxu0
  %v2437 = vadd.f32 0.0, %v2436
  %v2438 = vpop.f32.mrb[0].mxu0
  %2439 = vmatprep.mubr.bf16.mxu0 0
  %2440 = vmatmul.mubr.bf16.gmra.mrb[0].mxu0 %v2344
  %v2441 = vpop.f32.mrb[0].mxu0
  %v2442 = vadd.f32 0.0, %v2441
  %v2443 = vpop.f32.mrb[0].mxu0
  %v2444 = vpop.f32.mrb[0].mxu0
  %v2445 = vadd.f32 0.0, %v2444
  %v2446 = vpop.f32.mrb[0].mxu0
  %2447 = vmatprep.mubr.bf16.mxu0 0
  %2448 = vmatmul.mubr.bf16.gmra.mrb[0].mxu0 %v2345
  %v2449 = vpop.f32.mrb[0].mxu0
  %v2450 = vadd.f32 0.0, %v2449
  %v2451 = vpop.f32.mrb[0].mxu0
  %v2452 = vpop.f32.mrb[0].mxu0
  %v2453 = vadd.f32 0.0, %v2452
  %v2454 = vpop.f32.mrb[0].mxu0
  %2455 = vmatprep.mubr.bf16.mxu0 0
  %2456 = vmatmul.mubr.bf16.gmra.mrb[0].mxu0 %v2346
  %v2457 = vpop.f32.mrb[0].mxu0
  %v2458 = vadd.f32 0.0, %v2457
  %v2459 = vpop.f32.mrb[0].mxu0
  %v2460 = vpop.f32.mrb[0].mxu0
  %v2461 = vadd.f32 0.0, %v2460
  %v2462 = vpop.f32.mrb[0].mxu0
  %2463 = vmatprep.mubr.bf16.mxu0 0
  %2464 = vmatmul.mubr.bf16.gmra.mrb[0].mxu0 %v2347
  %v2465 = vpop.f32.mrb[0].mxu0
  %v2466 = vadd.f32 0.0, %v2465
  %v2467 = vpop.f32.mrb[0].mxu0
  %v2468 = vpop.f32.mrb[0].mxu0
  %v2469 = vadd.f32 0.0, %v2468
  %v2470 = vpop.f32.mrb[0].mxu0
  %2471 = vmatprep.mubr.bf16.mxu0 0
  %2472 = vmatmul.mubr.bf16.gmra.mrb[0].mxu0 %v2348
  %v2473 = vpop.f32.mrb[0].mxu0
  %v2474 = vadd.f32 0.0, %v2473
  %v2475 = vpop.f32.mrb[0].mxu0
  %v2476 = vpop.f32.mrb[0].mxu0
  %v2477 = vadd.f32 0.0, %v2476
  %v2478 = vpop.f32.mrb[0].mxu0
  %2479 = vmatprep.mubr.bf16.mxu0 0
  %2480 = vmatmul.mubr.bf16.gmra.mrb[0].mxu0 %v2349
  %v2481 = vpop.f32.mrb[0].mxu0
  %v2482 = vadd.f32 0.0, %v2481
  %v2483 = vpop.f32.mrb[0].mxu0
  %v2484 = vpop.f32.mrb[0].mxu0
  %v2485 = vadd.f32 0.0, %v2484
  %v2486 = vpop.f32.mrb[0].mxu0
  %2487 = vmatprep.mubr.bf16.mxu0 0
  %2488 = vmatmul.mubr.bf16.gmra.mrb[0].mxu0 %v2350
  %v2489 = vpop.f32.mrb[0].mxu0
  %v2490 = vadd.f32 0.0, %v2489
  %v2491 = vpop.f32.mrb[0].mxu0
  %v2492 = vpop.f32.mrb[0].mxu0
  %v2493 = vadd.f32 0.0, %v2492
  %v2494 = vpop.f32.mrb[0].mxu0
  %2495 = vdwg.mxu0
  %v2496 = vxor.u32 %v2434, 2147483648
  %v2497 = vxor.u32 %v2437, 2147483648
  %v2498 = vxor.u32 %v2442, 2147483648
  %v2499 = vxor.u32 %v2445, 2147483648
  %v2500 = vxor.u32 %v2450, 2147483648
  %v2501 = vxor.u32 %v2453, 2147483648
  %v2502 = vxor.u32 %v2458, 2147483648
  %v2503 = vxor.u32 %v2461, 2147483648
  %v2504 = vxor.u32 %v2466, 2147483648
  %v2505 = vxor.u32 %v2469, 2147483648
  %v2506 = vxor.u32 %v2474, 2147483648
  %v2507 = vxor.u32 %v2477, 2147483648
  %v2508 = vxor.u32 %v2482, 2147483648
  %v2509 = vxor.u32 %v2485, 2147483648
  %v2510 = vxor.u32 %v2490, 2147483648
  %v2511 = vxor.u32 %v2493, 2147483648
  %v2512 = vmul.f32 %v2496, 1.442695
  %v2513 = vpow.pop %v2512
  %v2514 = vmul.f32 %v2497, 1.442695
  %v2515 = vpow.pop %v2514
  %v2516 = vmul.f32 %v2498, 1.442695
  %v2517 = vpow.pop %v2516
  %v2518 = vmul.f32 %v2499, 1.442695
  %v2519 = vpow.pop %v2518
  %v2520 = vmul.f32 %v2500, 1.442695
  %v2521 = vpow.pop %v2520
  %v2522 = vmul.f32 %v2501, 1.442695
  %v2523 = vpow.pop %v2522
  %v2524 = vmul.f32 %v2502, 1.442695
  %v2525 = vpow.pop %v2524
  %v2526 = vmul.f32 %v2503, 1.442695
  %v2527 = vpow.pop %v2526
  %v2528 = vmul.f32 %v2504, 1.442695
  %v2529 = vpow.pop %v2528
  %v2530 = vmul.f32 %v2505, 1.442695
  %v2531 = vpow.pop %v2530
  %v2532 = vmul.f32 %v2506, 1.442695
  %v2533 = vpow.pop %v2532
  %v2534 = vmul.f32 %v2507, 1.442695
  %v2535 = vpow.pop %v2534
  %v2536 = vmul.f32 %v2508, 1.442695
  %v2537 = vpow.pop %v2536
  %v2538 = vmul.f32 %v2509, 1.442695
  %v2539 = vpow.pop %v2538
  %v2540 = vmul.f32 %v2510, 1.442695
  %v2541 = vpow.pop %v2540
  %v2542 = vmul.f32 %v2511, 1.442695
  %v2543 = vpow.pop %v2542
  %v2544 = vadd.f32 %v2513, 1.0
  %v2545 = vadd.f32 %v2515, 1.0
  %v2546 = vadd.f32 %v2517, 1.0
  %v2547 = vadd.f32 %v2519, 1.0
  %v2548 = vadd.f32 %v2521, 1.0
  %v2549 = vadd.f32 %v2523, 1.0
  %v2550 = vadd.f32 %v2525, 1.0
  %v2551 = vadd.f32 %v2527, 1.0
  %v2552 = vadd.f32 %v2529, 1.0
  %v2553 = vadd.f32 %v2531, 1.0
  %v2554 = vadd.f32 %v2533, 1.0
  %v2555 = vadd.f32 %v2535, 1.0
  %v2556 = vadd.f32 %v2537, 1.0
  %v2557 = vadd.f32 %v2539, 1.0
  %v2558 = vadd.f32 %v2541, 1.0
  %v2559 = vadd.f32 %v2543, 1.0
  %v2560 = vrcp.pop %v2544
  %v2561 = vmul.f32 1.0, %v2560
  %v2562 = vrcp.pop %v2545
  %v2563 = vmul.f32 1.0, %v2562
  %v2564 = vrcp.pop %v2546
  %v2565 = vmul.f32 1.0, %v2564
  %v2566 = vrcp.pop %v2547
  %v2567 = vmul.f32 1.0, %v2566
  %v2568 = vrcp.pop %v2548
  %v2569 = vmul.f32 1.0, %v2568
  %v2570 = vrcp.pop %v2549
  %v2571 = vmul.f32 1.0, %v2570
  %v2572 = vrcp.pop %v2550
  %v2573 = vmul.f32 1.0, %v2572
  %v2574 = vrcp.pop %v2551
  %v2575 = vmul.f32 1.0, %v2574
  %v2576 = vrcp.pop %v2552
  %v2577 = vmul.f32 1.0, %v2576
  %v2578 = vrcp.pop %v2553
  %v2579 = vmul.f32 1.0, %v2578
  %v2580 = vrcp.pop %v2554
  %v2581 = vmul.f32 1.0, %v2580
  %v2582 = vrcp.pop %v2555
  %v2583 = vmul.f32 1.0, %v2582
  %v2584 = vrcp.pop %v2556
  %v2585 = vmul.f32 1.0, %v2584
  %v2586 = vrcp.pop %v2557
  %v2587 = vmul.f32 1.0, %v2586
  %v2588 = vrcp.pop %v2558
  %v2589 = vmul.f32 1.0, %v2588
  %v2590 = vrcp.pop %v2559
  %v2591 = vmul.f32 1.0, %v2590
  %v2592 = vmul.f32 %v2561, %v2327
  %v2593 = vmul.f32 %v2563, %v2328
  %v2594 = vmul.f32 %v2565, %v2329
  %v2595 = vmul.f32 %v2567, %v2330
  %v2596 = vmul.f32 %v2569, %v2331
  %v2597 = vmul.f32 %v2571, %v2332
  %v2598 = vmul.f32 %v2573, %v2333
  %v2599 = vmul.f32 %v2575, %v2334
  %v2600 = vmul.f32 %v2577, %v2335
  %v2601 = vmul.f32 %v2579, %v2336
  %v2602 = vmul.f32 %v2581, %v2337
  %v2603 = vmul.f32 %v2583, %v2338
  %v2604 = vmul.f32 %v2585, %v2339
  %v2605 = vmul.f32 %v2587, %v2340
  %v2606 = vmul.f32 %v2589, %v2341
  %v2607 = vmul.f32 %v2591, %v2342
  %2608 = vst [vmem:[#allocation5] sm:$0xff] %v2592
  %2609 = vst [vmem:[#allocation5 + $0x8] sm:$0xff] %v2593
  %2610 = vst [vmem:[#allocation5 + $0x10] sm:$0xff] %v2594
  %2611 = vst [vmem:[#allocation5 + $0x18] sm:$0xff] %v2595
  %2612 = vst [vmem:[#allocation5 + $0x20] sm:$0xff] %v2596
  %2613 = vst [vmem:[#allocation5 + $0x28] sm:$0xff] %v2597
  %2614 = vst [vmem:[#allocation5 + $0x30] sm:$0xff] %v2598
  %2615 = vst [vmem:[#allocation5 + $0x38] sm:$0xff] %v2599
  %2616 = vst [vmem:[#allocation5 + $0x40] sm:$0xff] %v2600
  %2617 = vst [vmem:[#allocation5 + $0x48] sm:$0xff] %v2601
  %2618 = vst [vmem:[#allocation5 + $0x50] sm:$0xff] %v2602
  %2619 = vst [vmem:[#allocation5 + $0x58] sm:$0xff] %v2603
  %2620 = vst [vmem:[#allocation5 + $0x60] sm:$0xff] %v2604
  %2621 = vst [vmem:[#allocation5 + $0x68] sm:$0xff] %v2605
  %2622 = vst [vmem:[#allocation5 + $0x70] sm:$0xff] %v2606
  %2623 = vst [vmem:[#allocation5 + $0x78] sm:$0xff] %v2607
  %v2624 = vld [vmem:[#allocation5] sm:$0xff]
  %v2625 = vld [vmem:[#allocation5 + $0x8] sm:$0xff]
  %v2626 = vld [vmem:[#allocation5 + $0x10] sm:$0xff]
  %v2627 = vld [vmem:[#allocation5 + $0x18] sm:$0xff]
  %v2628 = vld [vmem:[#allocation5 + $0x20] sm:$0xff]
  %v2629 = vld [vmem:[#allocation5 + $0x28] sm:$0xff]
  %v2630 = vld [vmem:[#allocation5 + $0x30] sm:$0xff]
  %v2631 = vld [vmem:[#allocation5 + $0x38] sm:$0xff]
  %v2632 = vld [vmem:[#allocation5 + $0x40] sm:$0xff]
  %v2633 = vld [vmem:[#allocation5 + $0x48] sm:$0xff]
  %v2634 = vld [vmem:[#allocation5 + $0x50] sm:$0xff]
  %v2635 = vld [vmem:[#allocation5 + $0x58] sm:$0xff]
  %v2636 = vld [vmem:[#allocation5 + $0x60] sm:$0xff]
  %v2637 = vld [vmem:[#allocation5 + $0x68] sm:$0xff]
  %v2638 = vld [vmem:[#allocation5 + $0x70] sm:$0xff]
  %v2639 = vld [vmem:[#allocation5 + $0x78] sm:$0xff]
  %v2640 = vpack.c.bf16 %v2625, %v2624
  %v2641 = vpack.c.bf16 %v2627, %v2626
  %v2642 = vpack.c.bf16 %v2629, %v2628
  %v2643 = vpack.c.bf16 %v2631, %v2630
  %v2644 = vpack.c.bf16 %v2633, %v2632
  %v2645 = vpack.c.bf16 %v2635, %v2634
  %v2646 = vpack.c.bf16 %v2637, %v2636
  %v2647 = vpack.c.bf16 %v2639, %v2638
  %v2648 = vld [vmem:[%s11] sm:$0xf]
  %v2649 = vld [vmem:[%s11 + $0x4] sm:$0xf]
  %v2650 = vld [vmem:[%s11 + $0x8] sm:$0xf]
  %v2651 = vld [vmem:[%s11 + $0xc] sm:$0xf]
  %v2652 = vld [vmem:[%s11 + $0x10] sm:$0xf]
  %v2653 = vld [vmem:[%s11 + $0x14] sm:$0xf]
  %v2654 = vld [vmem:[%s11 + $0x18] sm:$0xf]
  %v2655 = vld [vmem:[%s11 + $0x1c] sm:$0xf]
  %v2656 = vld [vmem:[%s11 + $0x20] sm:$0xf]
  %v2657 = vld [vmem:[%s11 + $0x24] sm:$0xf]
  %v2658 = vld [vmem:[%s11 + $0x28] sm:$0xf]
  %v2659 = vld [vmem:[%s11 + $0x2c] sm:$0xf]
  %v2660 = vld [vmem:[%s11 + $0x30] sm:$0xf]
  %v2661 = vld [vmem:[%s11 + $0x34] sm:$0xf]
  %v2662 = vld [vmem:[%s11 + $0x38] sm:$0xf]
  %v2663 = vld [vmem:[%s11 + $0x3c] sm:$0xf]
  %v2664 = vld [vmem:[%s12] sm:$0x1]
  %v2666 = vlaneseq
  %v2667 = vshrl.u32 %v2666, 7
  %v2668 = vsub.s32 0, %v2667
  %v2669 = vrot.slane %v2664, %v2668
  %v2687 = vunpack.c.l.b16 %v2648
  %v2688 = vunpack.c.l.b16 %v2649
  %v2689 = vunpack.c.l.b16 %v2650
  %v2690 = vunpack.c.l.b16 %v2651
  %v2691 = vunpack.c.l.b16 %v2652
  %v2692 = vunpack.c.l.b16 %v2653
  %v2693 = vunpack.c.l.b16 %v2654
  %v2694 = vunpack.c.l.b16 %v2655
  %v2695 = vunpack.c.l.b16 %v2656
  %v2696 = vunpack.c.l.b16 %v2657
  %v2697 = vunpack.c.l.b16 %v2658
  %v2698 = vunpack.c.l.b16 %v2659
  %v2699 = vunpack.c.l.b16 %v2660
  %v2700 = vunpack.c.l.b16 %v2661
  %v2701 = vunpack.c.l.b16 %v2662
  %v2702 = vunpack.c.l.b16 %v2663
  %v2703 = vpack.c.b16 %v2688, %v2687
  %v2704 = vpack.c.b16 %v2690, %v2689
  %v2705 = vpack.c.b16 %v2692, %v2691
  %v2706 = vpack.c.b16 %v2694, %v2693
  %v2707 = vpack.c.b16 %v2696, %v2695
  %v2708 = vpack.c.b16 %v2698, %v2697
  %v2709 = vpack.c.b16 %v2700, %v2699
  %v2710 = vpack.c.b16 %v2702, %v2701
  %2719 = vmatprep.subr.bf16.mxu0 0
  %2720 = vmatpush1.bf16.msra.mxu0 %v2703
  %2721 = vmatprep.subr.bf16.mxu0 0
  %2722 = vmatpush1.bf16.msra.mxu0 %v2704
  %2723 = vmatprep.subr.bf16.mxu0 0
  %2724 = vmatpush1.bf16.msra.mxu0 %v2705
  %2725 = vmatprep.subr.bf16.mxu0 0
  %2726 = vmatpush1.bf16.msra.mxu0 %v2706
  %2727 = vmatprep.subr.bf16.mxu0 0
  %2728 = vmatpush1.bf16.msra.mxu0 %v2707
  %2729 = vmatprep.subr.bf16.mxu0 0
  %2730 = vmatpush1.bf16.msra.mxu0 %v2708
  %2731 = vmatprep.subr.bf16.mxu0 0
  %2732 = vmatpush1.bf16.msra.mxu0 %v2709
  %2733 = vmatprep.subr.bf16.mxu0 0
  %2734 = vmatpush1.bf16.msra.mxu0 %v2710
  %2735 = vmatprep.subr.bf16.mxu0 0
  %2736 = vmatpush1.bf16.msra.mxu0 0
  %2737 = vmatprep.subr.bf16.mxu0 0
  %2738 = vmatpush1.bf16.msra.mxu0 0
  %2739 = vmatprep.subr.bf16.mxu0 0
  %2740 = vmatpush1.bf16.msra.mxu0 0
  %2741 = vmatprep.subr.bf16.mxu0 0
  %2742 = vmatpush1.bf16.msra.mxu0 0
  %2743 = vmatprep.subr.bf16.mxu0 0
  %2744 = vmatpush1.bf16.msra.mxu0 0
  %2745 = vmatprep.subr.bf16.mxu0 0
  %2746 = vmatpush1.bf16.msra.mxu0 0
  %2747 = vmatprep.subr.bf16.mxu0 0
  %2748 = vmatpush1.bf16.msra.mxu0 0
  %2749 = vmatprep.subr.bf16.mxu0 0
  %2750 = vmatpush1.bf16.msra.mxu0 0
  %2751 = vmatprep.mubr.bf16.mxu0 0
  %2752 = vmatmul.mubr.bf16.gmra.mrb[0].mxu0 %v2640
  %v2753 = vpop.f32.mrb[0].mxu0
  %v2754 = vadd.f32 %v2669, %v2753
  %v2755 = vpop.f32.mrb[0].mxu0
  %v2756 = vpop.f32.mrb[0].mxu0
  %v2757 = vadd.f32 %v2669, %v2756
  %v2758 = vpop.f32.mrb[0].mxu0
  %2759 = vmatprep.mubr.bf16.mxu0 0
  %2760 = vmatmul.mubr.bf16.gmra.mrb[0].mxu0 %v2641
  %v2761 = vpop.f32.mrb[0].mxu0
  %v2762 = vadd.f32 %v2669, %v2761
  %v2763 = vpop.f32.mrb[0].mxu0
  %v2764 = vpop.f32.mrb[0].mxu0
  %v2765 = vadd.f32 %v2669, %v2764
  %v2766 = vpop.f32.mrb[0].mxu0
  %2767 = vmatprep.mubr.bf16.mxu0 0
  %2768 = vmatmul.mubr.bf16.gmra.mrb[0].mxu0 %v2642
  %v2769 = vpop.f32.mrb[0].mxu0
  %v2770 = vadd.f32 %v2669, %v2769
  %v2771 = vpop.f32.mrb[0].mxu0
  %v2772 = vpop.f32.mrb[0].mxu0
  %v2773 = vadd.f32 %v2669, %v2772
  %v2774 = vpop.f32.mrb[0].mxu0
  %2775 = vmatprep.mubr.bf16.mxu0 0
  %2776 = vmatmul.mubr.bf16.gmra.mrb[0].mxu0 %v2643
  %v2777 = vpop.f32.mrb[0].mxu0
  %v2778 = vadd.f32 %v2669, %v2777
  %v2779 = vpop.f32.mrb[0].mxu0
  %v2780 = vpop.f32.mrb[0].mxu0
  %v2781 = vadd.f32 %v2669, %v2780
  %v2782 = vpop.f32.mrb[0].mxu0
  %2783 = vmatprep.mubr.bf16.mxu0 0
  %2784 = vmatmul.mubr.bf16.gmra.mrb[0].mxu0 %v2644
  %v2785 = vpop.f32.mrb[0].mxu0
  %v2786 = vadd.f32 %v2669, %v2785
  %v2787 = vpop.f32.mrb[0].mxu0
  %v2788 = vpop.f32.mrb[0].mxu0
  %v2789 = vadd.f32 %v2669, %v2788
  %v2790 = vpop.f32.mrb[0].mxu0
  %2791 = vmatprep.mubr.bf16.mxu0 0
  %2792 = vmatmul.mubr.bf16.gmra.mrb[0].mxu0 %v2645
  %v2793 = vpop.f32.mrb[0].mxu0
  %v2794 = vadd.f32 %v2669, %v2793
  %v2795 = vpop.f32.mrb[0].mxu0
  %v2796 = vpop.f32.mrb[0].mxu0
  %v2797 = vadd.f32 %v2669, %v2796
  %v2798 = vpop.f32.mrb[0].mxu0
  %2799 = vmatprep.mubr.bf16.mxu0 0
  %2800 = vmatmul.mubr.bf16.gmra.mrb[0].mxu0 %v2646
  %v2801 = vpop.f32.mrb[0].mxu0
  %v2802 = vadd.f32 %v2669, %v2801
  %v2803 = vpop.f32.mrb[0].mxu0
  %v2804 = vpop.f32.mrb[0].mxu0
  %v2805 = vadd.f32 %v2669, %v2804
  %v2806 = vpop.f32.mrb[0].mxu0
  %2807 = vmatprep.mubr.bf16.mxu0 0
  %2808 = vmatmul.mubr.bf16.gmra.mrb[0].mxu0 %v2647
  %v2809 = vpop.f32.mrb[0].mxu0
  %v2810 = vadd.f32 %v2669, %v2809
  %v2811 = vpop.f32.mrb[0].mxu0
  %v2812 = vpop.f32.mrb[0].mxu0
  %v2813 = vadd.f32 %v2669, %v2812
  %v2814 = vpop.f32.mrb[0].mxu0
  %2815 = vdwg.mxu0
  %v2816 = vlaneseq
  %v2817 = vand.u32 %v2816, 127
  %vm2818 = vcmp.lt.s32.totalorder %v2817, 4
  %v2819 = vsel %vm2818, %v2754, -1e+30
  %v2820 = vsel %vm2818, %v2757, -1e+30
  %v2821 = vsel %vm2818, %v2762, -1e+30
  %v2822 = vsel %vm2818, %v2765, -1e+30
  %v2823 = vsel %vm2818, %v2770, -1e+30
  %v2824 = vsel %vm2818, %v2773, -1e+30
  %v2825 = vsel %vm2818, %v2778, -1e+30
  %v2826 = vsel %vm2818, %v2781, -1e+30
  %v2827 = vsel %vm2818, %v2786, -1e+30
  %v2828 = vsel %vm2818, %v2789, -1e+30
  %v2829 = vsel %vm2818, %v2794, -1e+30
  %v2830 = vsel %vm2818, %v2797, -1e+30
  %v2831 = vsel %vm2818, %v2802, -1e+30
  %v2832 = vsel %vm2818, %v2805, -1e+30
  %v2833 = vsel %vm2818, %v2810, -1e+30
  %v2834 = vsel %vm2818, %v2813, -1e+30
  %2835 = vmax.xlane.f32.xlu0 %v2819
  %v2836 = vpop.xlane.xlu0 %2835
  %2837 = vmax.xlane.f32.xlu0 %v2820
  %v2838 = vpop.xlane.xlu0 %2837
  %2839 = vmax.xlane.f32.xlu0 %v2821
  %v2840 = vpop.xlane.xlu0 %2839
  %2841 = vmax.xlane.f32.xlu0 %v2822
  %v2842 = vpop.xlane.xlu0 %2841
  %2843 = vmax.xlane.f32.xlu0 %v2823
  %v2844 = vpop.xlane.xlu0 %2843
  %2845 = vmax.xlane.f32.xlu0 %v2824
  %v2846 = vpop.xlane.xlu0 %2845
  %2847 = vmax.xlane.f32.xlu0 %v2825
  %v2848 = vpop.xlane.xlu0 %2847
  %2849 = vmax.xlane.f32.xlu0 %v2826
  %v2850 = vpop.xlane.xlu0 %2849
  %2851 = vmax.xlane.f32.xlu0 %v2827
  %v2852 = vpop.xlane.xlu0 %2851
  %2853 = vmax.xlane.f32.xlu0 %v2828
  %v2854 = vpop.xlane.xlu0 %2853
  %2855 = vmax.xlane.f32.xlu0 %v2829
  %v2856 = vpop.xlane.xlu0 %2855
  %2857 = vmax.xlane.f32.xlu0 %v2830
  %v2858 = vpop.xlane.xlu0 %2857
  %2859 = vmax.xlane.f32.xlu0 %v2831
  %v2860 = vpop.xlane.xlu0 %2859
  %2861 = vmax.xlane.f32.xlu0 %v2832
  %v2862 = vpop.xlane.xlu0 %2861
  %2863 = vmax.xlane.f32.xlu0 %v2833
  %v2864 = vpop.xlane.xlu0 %2863
  %2865 = vmax.xlane.f32.xlu0 %v2834
  %v2866 = vpop.xlane.xlu0 %2865
  %v2867 = vsub.f32 %v2819, %v2836
  %v2868 = vsub.f32 %v2820, %v2838
  %v2869 = vsub.f32 %v2821, %v2840
  %v2870 = vsub.f32 %v2822, %v2842
  %v2871 = vsub.f32 %v2823, %v2844
  %v2872 = vsub.f32 %v2824, %v2846
  %v2873 = vsub.f32 %v2825, %v2848
  %v2874 = vsub.f32 %v2826, %v2850
  %v2875 = vsub.f32 %v2827, %v2852
  %v2876 = vsub.f32 %v2828, %v2854
  %v2877 = vsub.f32 %v2829, %v2856
  %v2878 = vsub.f32 %v2830, %v2858
  %v2879 = vsub.f32 %v2831, %v2860
  %v2880 = vsub.f32 %v2832, %v2862
  %v2881 = vsub.f32 %v2833, %v2864
  %v2882 = vsub.f32 %v2834, %v2866
  %v2883 = vmul.f32 %v2867, 1.442695
  %v2884 = vpow.pop %v2883
  %v2885 = vmul.f32 %v2868, 1.442695
  %v2886 = vpow.pop %v2885
  %v2887 = vmul.f32 %v2869, 1.442695
  %v2888 = vpow.pop %v2887
  %v2889 = vmul.f32 %v2870, 1.442695
  %v2890 = vpow.pop %v2889
  %v2891 = vmul.f32 %v2871, 1.442695
  %v2892 = vpow.pop %v2891
  %v2893 = vmul.f32 %v2872, 1.442695
  %v2894 = vpow.pop %v2893
  %v2895 = vmul.f32 %v2873, 1.442695
  %v2896 = vpow.pop %v2895
  %v2897 = vmul.f32 %v2874, 1.442695
  %v2898 = vpow.pop %v2897
  %v2899 = vmul.f32 %v2875, 1.442695
  %v2900 = vpow.pop %v2899
  %v2901 = vmul.f32 %v2876, 1.442695
  %v2902 = vpow.pop %v2901
  %v2903 = vmul.f32 %v2877, 1.442695
  %v2904 = vpow.pop %v2903
  %v2905 = vmul.f32 %v2878, 1.442695
  %v2906 = vpow.pop %v2905
  %v2907 = vmul.f32 %v2879, 1.442695
  %v2908 = vpow.pop %v2907
  %v2909 = vmul.f32 %v2880, 1.442695
  %v2910 = vpow.pop %v2909
  %v2911 = vmul.f32 %v2881, 1.442695
  %v2912 = vpow.pop %v2911
  %v2913 = vmul.f32 %v2882, 1.442695
  %v2914 = vpow.pop %v2913
  %2915 = vadd.xlane.f32.xlu0 %v2884
  %v2916 = vpop.xlane.xlu0 %2915
  %2917 = vadd.xlane.f32.xlu0 %v2886
  %v2918 = vpop.xlane.xlu0 %2917
  %2919 = vadd.xlane.f32.xlu0 %v2888
  %v2920 = vpop.xlane.xlu0 %2919
  %2921 = vadd.xlane.f32.xlu0 %v2890
  %v2922 = vpop.xlane.xlu0 %2921
  %2923 = vadd.xlane.f32.xlu0 %v2892
  %v2924 = vpop.xlane.xlu0 %2923
  %2925 = vadd.xlane.f32.xlu0 %v2894
  %v2926 = vpop.xlane.xlu0 %2925
  %2927 = vadd.xlane.f32.xlu0 %v2896
  %v2928 = vpop.xlane.xlu0 %2927
  %2929 = vadd.xlane.f32.xlu0 %v2898
  %v2930 = vpop.xlane.xlu0 %2929
  %2931 = vadd.xlane.f32.xlu0 %v2900
  %v2932 = vpop.xlane.xlu0 %2931
  %2933 = vadd.xlane.f32.xlu0 %v2902
  %v2934 = vpop.xlane.xlu0 %2933
  %2935 = vadd.xlane.f32.xlu0 %v2904
  %v2936 = vpop.xlane.xlu0 %2935
  %2937 = vadd.xlane.f32.xlu0 %v2906
  %v2938 = vpop.xlane.xlu0 %2937
  %2939 = vadd.xlane.f32.xlu0 %v2908
  %v2940 = vpop.xlane.xlu0 %2939
  %2941 = vadd.xlane.f32.xlu0 %v2910
  %v2942 = vpop.xlane.xlu0 %2941
  %2943 = vadd.xlane.f32.xlu0 %v2912
  %v2944 = vpop.xlane.xlu0 %2943
  %2945 = vadd.xlane.f32.xlu0 %v2914
  %v2946 = vpop.xlane.xlu0 %2945
  %v2947 = vlog2.pop %v2916
  %v2948 = vmul.f32 %v2947, 0.6931472
  %v2949 = vlog2.pop %v2918
  %v2950 = vmul.f32 %v2949, 0.6931472
  %v2951 = vlog2.pop %v2920
  %v2952 = vmul.f32 %v2951, 0.6931472
  %v2953 = vlog2.pop %v2922
  %v2954 = vmul.f32 %v2953, 0.6931472
  %v2955 = vlog2.pop %v2924
  %v2956 = vmul.f32 %v2955, 0.6931472
  %v2957 = vlog2.pop %v2926
  %v2958 = vmul.f32 %v2957, 0.6931472
  %v2959 = vlog2.pop %v2928
  %v2960 = vmul.f32 %v2959, 0.6931472
  %v2961 = vlog2.pop %v2930
  %v2962 = vmul.f32 %v2961, 0.6931472
  %v2963 = vlog2.pop %v2932
  %v2964 = vmul.f32 %v2963, 0.6931472
  %v2965 = vlog2.pop %v2934
  %v2966 = vmul.f32 %v2965, 0.6931472
  %v2967 = vlog2.pop %v2936
  %v2968 = vmul.f32 %v2967, 0.6931472
  %v2969 = vlog2.pop %v2938
  %v2970 = vmul.f32 %v2969, 0.6931472
  %v2971 = vlog2.pop %v2940
  %v2972 = vmul.f32 %v2971, 0.6931472
  %v2973 = vlog2.pop %v2942
  %v2974 = vmul.f32 %v2973, 0.6931472
  %v2975 = vlog2.pop %v2944
  %v2976 = vmul.f32 %v2975, 0.6931472
  %v2977 = vlog2.pop %v2946
  %v2978 = vmul.f32 %v2977, 0.6931472
  %v2979 = vsub.f32 %v2867, %v2948
  %v2980 = vsub.f32 %v2868, %v2950
  %v2981 = vsub.f32 %v2869, %v2952
  %v2982 = vsub.f32 %v2870, %v2954
  %v2983 = vsub.f32 %v2871, %v2956
  %v2984 = vsub.f32 %v2872, %v2958
  %v2985 = vsub.f32 %v2873, %v2960
  %v2986 = vsub.f32 %v2874, %v2962
  %v2987 = vsub.f32 %v2875, %v2964
  %v2988 = vsub.f32 %v2876, %v2966
  %v2989 = vsub.f32 %v2877, %v2968
  %v2990 = vsub.f32 %v2878, %v2970
  %v2991 = vsub.f32 %v2879, %v2972
  %v2992 = vsub.f32 %v2880, %v2974
  %v2993 = vsub.f32 %v2881, %v2976
  %v2994 = vsub.f32 %v2882, %v2978
  %2995 = vst [vmem:[%s13] sm:$0xff] %v2979
  %2996 = vst [vmem:[%s13 + $0x8] sm:$0xff] %v2980
  %2997 = vst [vmem:[%s13 + $0x10] sm:$0xff] %v2981
  %2998 = vst [vmem:[%s13 + $0x18] sm:$0xff] %v2982
  %2999 = vst [vmem:[%s13 + $0x20] sm:$0xff] %v2983
  %3000 = vst [vmem:[%s13 + $0x28] sm:$0xff] %v2984
  %3001 = vst [vmem:[%s13 + $0x30] sm:$0xff] %v2985
  %3002 = vst [vmem:[%s13 + $0x38] sm:$0xff] %v2986
  %3003 = vst [vmem:[%s13 + $0x40] sm:$0xff] %v2987
  %3004 = vst [vmem:[%s13 + $0x48] sm:$0xff] %v2988
  %3005 = vst [vmem:[%s13 + $0x50] sm:$0xff] %v2989
  %3006 = vst [vmem:[%s13 + $0x58] sm:$0xff] %v2990
  %3007 = vst [vmem:[%s13 + $0x60] sm:$0xff] %v2991
  %3008 = vst [vmem:[%s13 + $0x68] sm:$0xff] %v2992
  %3009 = vst [vmem:[%s13 + $0x70] sm:$0xff] %v2993
  %3010 = vst [vmem:[%s13 + $0x78] sm:$0xff] %v2994
  // Predicated region
  $region182: #{asym_gnn_forward.1} parent=0 // pred_check
    _
  $region183: #{asym_gnn_forward.1} parent=0 // pred_check_branch
    %3012 = sbr.rel (0) target = $region185
  $region184: #{asym_gnn_forward.1} parent=0 // pred_region
    _
  $region185: #{asym_gnn_forward.1} parent=0 // pred_fallthru
    _
  // Predicated region
  $region186: #{asym_gnn_forward.1} parent=0 // pred_check
    _
  $region187: #{asym_gnn_forward.1} parent=0 // pred_check_branch
    %3014 = sbr.rel (0) target = $region189
  $region188: #{asym_gnn_forward.1} parent=0 // pred_region
    _
  $region189: #{asym_gnn_forward.1} parent=0 // pred_fallthru
    _
  %3015 = vsyncmov [#allocation3]
  %s3016 = vpop.sfrf %3015
  %p3017 = scmp.eq.s32.totalorder %s3016, 0
  %p3018 = pneg %p3017
  %3020 = shalt.err (%p3018)
  %s3021 = scalar_lea.sflag [#allocation3], 1
  %3022 = vsyncmov %s3021
  %s3023 = vpop.sfrf %3022
  %p3024 = scmp.eq.s32.totalorder %s3023, 0
  %p3025 = pneg %p3024
  %3027 = shalt.err (%p3025)
  %s3028 = scalar_lea.sflag [#allocation3], 2
  %3029 = vsyncmov %s3028
  %s3030 = vpop.sfrf %3029
  %p3031 = scmp.eq.s32.totalorder %s3030, 0
  %p3032 = pneg %p3031
  %3034 = shalt.err (%p3032)
  %s3035 = scalar_lea.sflag [#allocation3], 3
  %3036 = vsyncmov %s3035
  %s3037 = vpop.sfrf %3036
  %p3038 = scmp.eq.s32.totalorder %s3037, 0
  %p3039 = pneg %p3038
  %3041 = shalt.err (%p3039)

</llo_original>
